<compile_context>
chip_gen: v7x
topology: tpu7x:2x2x1
jax: 0.10.0
libtpu: 0.0.40
codegen_flags: <defaults>
</compile_context>

<pallas_src>
import math
import jax
import jax.numpy as jnp
from jax.experimental import pallas as pl
from jax.experimental.pallas import tpu as pltpu

# Logical (PyTorch) dims and lane-padded dims.
D_IN, D_HID, D_LAT = 784, 400, 20
D_IN_P, D_HID_P, D_LAT_P = 896, 512, 128      # 7*128, 4*128, 1*128
TB_MAX = 256                                  # max batch tile (rows per grid step)


def vae_kernel(x_ref, eps_ref,
               w1_ref, b1_ref,
               w2_ref, b2_ref,                # fused [mu | logvar] projection, N = 2*D_LAT_P
               w3_ref, b3_ref,
               w4_ref, b4_ref,
               recon_ref, mu_ref, logvar_ref):
    # ---- encode ----
    h1 = jnp.dot(x_ref[...], w1_ref[...],
                 preferred_element_type=jnp.float32) + b1_ref[...]      # (TB, 512) f32
    h1 = jnp.maximum(h1, 0.0)

    ml = jnp.dot(h1.astype(jnp.bfloat16), w2_ref[...],
                 preferred_element_type=jnp.float32) + b2_ref[...]      # (TB, 256) f32
    mu = ml[:, :D_LAT_P]
    logvar = ml[:, D_LAT_P:]

    # ---- reparameterize (training mode) ----
    std = jnp.exp(0.5 * logvar)
    z = eps_ref[...] * std + mu                                         # (TB, 128) f32

    # ---- decode ----
    h3 = jnp.dot(z.astype(jnp.bfloat16), w3_ref[...],
                 preferred_element_type=jnp.float32) + b3_ref[...]      # (TB, 512) f32
    h3 = jnp.maximum(h3, 0.0)

    logits = jnp.dot(h3.astype(jnp.bfloat16), w4_ref[...],
                     preferred_element_type=jnp.float32) + b4_ref[...]  # (TB, 896) f32
    # sigmoid: exp and approx-reciprocal both use the EUP slot (free vs. VPU divide)
    recon_ref[...] = pl.reciprocal(1.0 + jnp.exp(-logits), approx=True)

    mu_ref[...] = mu
    logvar_ref[...] = logvar


def _pad2(a, rows, cols):
    """Zero-pad a 2D array up to (rows, cols)."""
    return jnp.pad(a, ((0, rows - a.shape[0]), (0, cols - a.shape[1])))


def vae_forward(x, eps, params):
    """x: (B, 784) f32, eps: (B, 20) f32. Returns (recon, mu, logvar) like the PyTorch module."""
    B = x.shape[0]
    (w1, b1, w21, b21, w22, b22, w3, b3, w4, b4) = params

    # ---- lane-pad + bf16-cast parameters (zero padding keeps the math exact) ----
    w1p = _pad2(w1, D_IN_P, D_HID_P).astype(jnp.bfloat16)
    b1p = _pad2(b1, 1, D_HID_P)                                          # f32
    w2p = jnp.concatenate([_pad2(w21, D_HID_P, D_LAT_P),
                           _pad2(w22, D_HID_P, D_LAT_P)], axis=1).astype(jnp.bfloat16)
    b2p = jnp.concatenate([_pad2(b21, 1, D_LAT_P),
                           _pad2(b22, 1, D_LAT_P)], axis=1)              # f32, (1, 256)
    w3p = _pad2(w3, D_LAT_P, D_HID_P).astype(jnp.bfloat16)
    b3p = _pad2(b3, 1, D_HID_P)
    w4p = _pad2(w4, D_HID_P, D_IN_P).astype(jnp.bfloat16)
    b4p = _pad2(b4, 1, D_IN_P)

    # ---- adaptive batch tile: multiple of 8 sublanes, capped at TB_MAX ----
    b8 = ((B + 7) // 8) * 8
    tb = min(TB_MAX, b8)
    Bp = ((b8 + tb - 1) // tb) * tb
    n_tiles = Bp // tb

    xp = _pad2(x, Bp, D_IN_P).astype(jnp.bfloat16)
    epsp = _pad2(eps, Bp, D_LAT_P)                                       # f32 (zeros in padding)

    row_spec = lambda shape: pl.BlockSpec(shape, lambda i: (i, 0))       # batch-tiled
    const_spec = lambda shape: pl.BlockSpec(shape, lambda i: (0, 0))     # VMEM-resident weights

    recon_p, mu_p, logvar_p = pl.pallas_call(
        vae_kernel,
        out_shape=(jax.ShapeDtypeStruct((Bp, D_IN_P), jnp.float32),
                   jax.ShapeDtypeStruct((Bp, D_LAT_P), jnp.float32),
                   jax.ShapeDtypeStruct((Bp, D_LAT_P), jnp.float32)),
        grid=(n_tiles,),
        in_specs=[row_spec((tb, D_IN_P)),
                  row_spec((tb, D_LAT_P)),
                  const_spec((D_IN_P, D_HID_P)), const_spec((1, D_HID_P)),
                  const_spec((D_HID_P, 2 * D_LAT_P)), const_spec((1, 2 * D_LAT_P)),
                  const_spec((D_LAT_P, D_HID_P)), const_spec((1, D_HID_P)),
                  const_spec((D_HID_P, D_IN_P)), const_spec((1, D_IN_P))],
        out_specs=(row_spec((tb, D_IN_P)),
                   row_spec((tb, D_LAT_P)),
                   row_spec((tb, D_LAT_P))),
        compiler_params=pltpu.CompilerParams(
            dimension_semantics=("parallel",),
            vmem_limit_bytes=32 << 20),
    )(xp, epsp, w1p, b1p, w2p, b2p, w3p, b3p, w4p, b4p)

    return (recon_p[:B, :D_IN], mu_p[:B, :D_LAT], logvar_p[:B, :D_LAT])


vae_forward_jit = jax.jit(vae_forward)


def init_linear(key, fan_in, fan_out):
    """PyTorch-style nn.Linear init: U(-1/sqrt(fan_in), 1/sqrt(fan_in)).
    Weight stored transposed vs PyTorch: (in, out). Bias stored as (1, out)."""
    kw, kb = jax.random.split(key)
    bound = 1.0 / math.sqrt(fan_in)
    w = jax.random.uniform(kw, (fan_in, fan_out), jnp.float32, -bound, bound)
    b = jax.random.uniform(kb, (1, fan_out), jnp.float32, -bound, bound)
    return w, b


if __name__ == "__main__":
    key = jax.random.PRNGKey(0)
    k_x, k_eps, k1, k21, k22, k3, k4 = jax.random.split(key, 7)

    B = 2
    x = jax.random.uniform(k_x, (B, D_IN), jnp.float32)       # MNIST-like pixels in [0, 1)
    eps = jax.random.normal(k_eps, (B, D_LAT), jnp.float32)   # reparameterization noise

    w1, b1 = init_linear(k1, D_IN, D_HID)
    w21, b21 = init_linear(k21, D_HID, D_LAT)
    w22, b22 = init_linear(k22, D_HID, D_LAT)
    w3, b3 = init_linear(k3, D_LAT, D_HID)
    w4, b4 = init_linear(k4, D_HID, D_IN)
    params = (w1, b1, w21, b21, w22, b22, w3, b3, w4, b4)

    recon, mu, logvar = vae_forward_jit(x, eps, params)
    jax.block_until_ready((recon, mu, logvar))

    # Plain-JAX f32 reference of the same math (kernel uses bf16 MXU inputs -> loose tolerance).
    h1 = jnp.maximum(x @ w1 + b1, 0.0)
    mu_r = h1 @ w21 + b21
    lv_r = h1 @ w22 + b22
    z_r = mu_r + eps * jnp.exp(0.5 * lv_r)
    h3 = jnp.maximum(z_r @ w3 + b3, 0.0)
    recon_r = jax.nn.sigmoid(h3 @ w4 + b4)

    assert recon.shape == (B, D_IN) and mu.shape == (B, D_LAT) and logvar.shape == (B, D_LAT)
    assert jnp.allclose(recon, recon_r, atol=5e-2, rtol=5e-2)
    assert jnp.allclose(mu, mu_r, atol=5e-2, rtol=5e-2)
    assert jnp.allclose(logvar, lv_r, atol=5e-2, rtol=5e-2)

    print("KERNEL_OK")
</pallas_src>

<mosaic_0001>
module attributes {stable_mosaic.version = 11 : i64} {
  func.func @vae_kernel(%arg0: i32, %arg1: memref<8x896xbf16, #tpu.memory_space<vmem>>, %arg2: memref<8x128xf32, #tpu.memory_space<vmem>>, %arg3: memref<896x512xbf16, #tpu.memory_space<vmem>>, %arg4: memref<1x512xf32, #tpu.memory_space<vmem>>, %arg5: memref<512x256xbf16, #tpu.memory_space<vmem>>, %arg6: memref<1x256xf32, #tpu.memory_space<vmem>>, %arg7: memref<128x512xbf16, #tpu.memory_space<vmem>>, %arg8: memref<1x512xf32, #tpu.memory_space<vmem>>, %arg9: memref<512x896xbf16, #tpu.memory_space<vmem>>, %arg10: memref<1x896xf32, #tpu.memory_space<vmem>>, %arg11: memref<8x896xf32, #tpu.memory_space<vmem>>, %arg12: memref<8x128xf32, #tpu.memory_space<vmem>>, %arg13: memref<8x128xf32, #tpu.memory_space<vmem>>) attributes {dimension_semantics = [#tpu.dimension_semantics<parallel>], iteration_bounds = array<i64: 1>, scalar_prefetch = 0 : i64, scratch_operands = 0 : i64, tpu.core_type = #tpu.core_type<tc>, window_params = [{transform_indices = @transform_0, window_bounds = array<i64: 8, 896>}, {transform_indices = @transform_1, window_bounds = array<i64: 8, 128>}, {pipeline_mode = #tpu.pipeline_mode<synchronous>, transform_indices = @transform_2, window_bounds = array<i64: 896, 512>}, {pipeline_mode = #tpu.pipeline_mode<synchronous>, transform_indices = @transform_3, window_bounds = array<i64: 1, 512>}, {pipeline_mode = #tpu.pipeline_mode<synchronous>, transform_indices = @transform_4, window_bounds = array<i64: 512, 256>}, {pipeline_mode = #tpu.pipeline_mode<synchronous>, transform_indices = @transform_5, window_bounds = array<i64: 1, 256>}, {pipeline_mode = #tpu.pipeline_mode<synchronous>, transform_indices = @transform_6, window_bounds = array<i64: 128, 512>}, {pipeline_mode = #tpu.pipeline_mode<synchronous>, transform_indices = @transform_7, window_bounds = array<i64: 1, 512>}, {pipeline_mode = #tpu.pipeline_mode<synchronous>, transform_indices = @transform_8, window_bounds = array<i64: 512, 896>}, {pipeline_mode = #tpu.pipeline_mode<synchronous>, transform_indices = @transform_9, window_bounds = array<i64: 1, 896>}, {transform_indices = @transform_10, window_bounds = array<i64: 8, 896>}, {transform_indices = @transform_11, window_bounds = array<i64: 8, 128>}, {transform_indices = @transform_12, window_bounds = array<i64: 8, 128>}]} {
    %c0 = arith.constant 0 : index
    %c0_0 = arith.constant 0 : index
    %0 = vector.load %arg1[%c0, %c0_0] : memref<8x896xbf16, #tpu.memory_space<vmem>>, vector<8x896xbf16>
    %c0_1 = arith.constant 0 : index
    %c0_2 = arith.constant 0 : index
    %1 = vector.load %arg3[%c0_1, %c0_2] : memref<896x512xbf16, #tpu.memory_space<vmem>>, vector<896x512xbf16>
    %cst = arith.constant dense<0.000000e+00> : vector<8x512xf32>
    %2 = tpu.matmul %0, %1, %cst {dimension_numbers = #tpu.dot_dimension_numbers<[1], [0], [0], [1], [0, 0, 1, 1], [], []>} : vector<8x896xbf16>, vector<896x512xbf16>, vector<8x512xf32> -> vector<8x512xf32>
    %c0_3 = arith.constant 0 : index
    %c0_4 = arith.constant 0 : index
    %3 = vector.load %arg4[%c0_3, %c0_4] : memref<1x512xf32, #tpu.memory_space<vmem>>, vector<1x512xf32>
    %4 = vector.broadcast %3 : vector<1x512xf32> to vector<8x512xf32>
    %5 = arith.addf %2, %4 : vector<8x512xf32>
    %cst_5 = arith.constant 0.000000e+00 : f32
    %6 = vector.broadcast %cst_5 : f32 to vector<8x512xf32>
    %7 = arith.maximumf %5, %6 : vector<8x512xf32>
    %8 = arith.truncf %7 : vector<8x512xf32> to vector<8x512xbf16>
    %c0_6 = arith.constant 0 : index
    %c0_7 = arith.constant 0 : index
    %9 = vector.load %arg5[%c0_6, %c0_7] : memref<512x256xbf16, #tpu.memory_space<vmem>>, vector<512x256xbf16>
    %cst_8 = arith.constant dense<0.000000e+00> : vector<8x256xf32>
    %10 = tpu.matmul %8, %9, %cst_8 {dimension_numbers = #tpu.dot_dimension_numbers<[1], [0], [0], [1], [0, 0, 1, 1], [], []>} : vector<8x512xbf16>, vector<512x256xbf16>, vector<8x256xf32> -> vector<8x256xf32>
    %c0_9 = arith.constant 0 : index
    %c0_10 = arith.constant 0 : index
    %11 = vector.load %arg6[%c0_9, %c0_10] : memref<1x256xf32, #tpu.memory_space<vmem>>, vector<1x256xf32>
    %12 = vector.broadcast %11 : vector<1x256xf32> to vector<8x256xf32>
    %13 = arith.addf %10, %12 : vector<8x256xf32>
    %14 = vector.extract_strided_slice %13 {offsets = [0, 0], sizes = [8, 128], strides = [1, 1]} : vector<8x256xf32> to vector<8x128xf32>
    %15 = vector.extract_strided_slice %13 {offsets = [0, 128], sizes = [8, 128], strides = [1, 1]} : vector<8x256xf32> to vector<8x128xf32>
    %cst_11 = arith.constant 5.000000e-01 : f32
    %16 = vector.broadcast %cst_11 : f32 to vector<8x128xf32>
    %17 = arith.mulf %16, %15 : vector<8x128xf32>
    %18 = math.exp %17 : vector<8x128xf32>
    %c0_12 = arith.constant 0 : index
    %c0_13 = arith.constant 0 : index
    %19 = vector.load %arg2[%c0_12, %c0_13] : memref<8x128xf32, #tpu.memory_space<vmem>>, vector<8x128xf32>
    %20 = arith.mulf %19, %18 : vector<8x128xf32>
    %21 = arith.addf %20, %14 : vector<8x128xf32>
    %22 = arith.truncf %21 : vector<8x128xf32> to vector<8x128xbf16>
    %c0_14 = arith.constant 0 : index
    %c0_15 = arith.constant 0 : index
    %23 = vector.load %arg7[%c0_14, %c0_15] : memref<128x512xbf16, #tpu.memory_space<vmem>>, vector<128x512xbf16>
    %cst_16 = arith.constant dense<0.000000e+00> : vector<8x512xf32>
    %24 = tpu.matmul %22, %23, %cst_16 {dimension_numbers = #tpu.dot_dimension_numbers<[1], [0], [0], [1], [0, 0, 1, 1], [], []>} : vector<8x128xbf16>, vector<128x512xbf16>, vector<8x512xf32> -> vector<8x512xf32>
    %c0_17 = arith.constant 0 : index
    %c0_18 = arith.constant 0 : index
    %25 = vector.load %arg8[%c0_17, %c0_18] : memref<1x512xf32, #tpu.memory_space<vmem>>, vector<1x512xf32>
    %26 = vector.broadcast %25 : vector<1x512xf32> to vector<8x512xf32>
    %27 = arith.addf %24, %26 : vector<8x512xf32>
    %cst_19 = arith.constant 0.000000e+00 : f32
    %28 = vector.broadcast %cst_19 : f32 to vector<8x512xf32>
    %29 = arith.maximumf %27, %28 : vector<8x512xf32>
    %30 = arith.truncf %29 : vector<8x512xf32> to vector<8x512xbf16>
    %c0_20 = arith.constant 0 : index
    %c0_21 = arith.constant 0 : index
    %31 = vector.load %arg9[%c0_20, %c0_21] : memref<512x896xbf16, #tpu.memory_space<vmem>>, vector<512x896xbf16>
    %cst_22 = arith.constant dense<0.000000e+00> : vector<8x896xf32>
    %32 = tpu.matmul %30, %31, %cst_22 {dimension_numbers = #tpu.dot_dimension_numbers<[1], [0], [0], [1], [0, 0, 1, 1], [], []>} : vector<8x512xbf16>, vector<512x896xbf16>, vector<8x896xf32> -> vector<8x896xf32>
    %c0_23 = arith.constant 0 : index
    %c0_24 = arith.constant 0 : index
    %33 = vector.load %arg10[%c0_23, %c0_24] : memref<1x896xf32, #tpu.memory_space<vmem>>, vector<1x896xf32>
    %34 = vector.broadcast %33 : vector<1x896xf32> to vector<8x896xf32>
    %35 = arith.addf %32, %34 : vector<8x896xf32>
    %cst_25 = arith.constant 0.000000e+00 : f32
    %36 = vector.broadcast %cst_25 : f32 to vector<8x896xf32>
    %37 = arith.subf %36, %35 : vector<8x896xf32>
    %38 = math.exp %37 : vector<8x896xf32>
    %cst_26 = arith.constant 1.000000e+00 : f32
    %39 = vector.broadcast %cst_26 : f32 to vector<8x896xf32>
    %40 = arith.addf %39, %38 : vector<8x896xf32>
    %41 = tpu.reciprocal %40 {approx = true} : vector<8x896xf32> -> vector<8x896xf32>
    %c0_27 = arith.constant 0 : index
    %c0_28 = arith.constant 0 : index
    %42 = vector.load %arg11[%c0_27, %c0_28] : memref<8x896xf32, #tpu.memory_space<vmem>>, vector<8x896xf32>
    tpu.vector_store %arg11[%c0_27, %c0_28], %41 {strides = array<i32>} : memref<8x896xf32, #tpu.memory_space<vmem>>, vector<8x896xf32>,
    %c0_29 = arith.constant 0 : index
    %c0_30 = arith.constant 0 : index
    %43 = vector.load %arg12[%c0_29, %c0_30] : memref<8x128xf32, #tpu.memory_space<vmem>>, vector<8x128xf32>
    tpu.vector_store %arg12[%c0_29, %c0_30], %14 {strides = array<i32>} : memref<8x128xf32, #tpu.memory_space<vmem>>, vector<8x128xf32>,
    %c0_31 = arith.constant 0 : index
    %c0_32 = arith.constant 0 : index
    %44 = vector.load %arg13[%c0_31, %c0_32] : memref<8x128xf32, #tpu.memory_space<vmem>>, vector<8x128xf32>
    tpu.vector_store %arg13[%c0_31, %c0_32], %15 {strides = array<i32>} : memref<8x128xf32, #tpu.memory_space<vmem>>, vector<8x128xf32>,
    return
  }
  func.func @transform_0(%arg0: i32) -> (i32, i32) {
    %c0_i32 = arith.constant 0 : i32
    %c0_i32_0 = arith.constant 0 : i32
    return %arg0, %c0_i32 : i32, i32
  }
  func.func @transform_1(%arg0: i32) -> (i32, i32) {
    %c0_i32 = arith.constant 0 : i32
    %c0_i32_0 = arith.constant 0 : i32
    return %arg0, %c0_i32 : i32, i32
  }
  func.func @transform_2(%arg0: i32) -> (i32, i32) {
    %c0_i32 = arith.constant 0 : i32
    %c0_i32_0 = arith.constant 0 : i32
    %c0_i32_1 = arith.constant 0 : i32
    return %c0_i32, %c0_i32_0 : i32, i32
  }
  func.func @transform_3(%arg0: i32) -> (i32, i32) {
    %c0_i32 = arith.constant 0 : i32
    %c0_i32_0 = arith.constant 0 : i32
    %c0_i32_1 = arith.constant 0 : i32
    return %c0_i32, %c0_i32_0 : i32, i32
  }
  func.func @transform_4(%arg0: i32) -> (i32, i32) {
    %c0_i32 = arith.constant 0 : i32
    %c0_i32_0 = arith.constant 0 : i32
    %c0_i32_1 = arith.constant 0 : i32
    return %c0_i32, %c0_i32_0 : i32, i32
  }
  func.func @transform_5(%arg0: i32) -> (i32, i32) {
    %c0_i32 = arith.constant 0 : i32
    %c0_i32_0 = arith.constant 0 : i32
    %c0_i32_1 = arith.constant 0 : i32
    return %c0_i32, %c0_i32_0 : i32, i32
  }
  func.func @transform_6(%arg0: i32) -> (i32, i32) {
    %c0_i32 = arith.constant 0 : i32
    %c0_i32_0 = arith.constant 0 : i32
    %c0_i32_1 = arith.constant 0 : i32
    return %c0_i32, %c0_i32_0 : i32, i32
  }
  func.func @transform_7(%arg0: i32) -> (i32, i32) {
    %c0_i32 = arith.constant 0 : i32
    %c0_i32_0 = arith.constant 0 : i32
    %c0_i32_1 = arith.constant 0 : i32
    return %c0_i32, %c0_i32_0 : i32, i32
  }
  func.func @transform_8(%arg0: i32) -> (i32, i32) {
    %c0_i32 = arith.constant 0 : i32
    %c0_i32_0 = arith.constant 0 : i32
    %c0_i32_1 = arith.constant 0 : i32
    return %c0_i32, %c0_i32_0 : i32, i32
  }
  func.func @transform_9(%arg0: i32) -> (i32, i32) {
    %c0_i32 = arith.constant 0 : i32
    %c0_i32_0 = arith.constant 0 : i32
    %c0_i32_1 = arith.constant 0 : i32
    return %c0_i32, %c0_i32_0 : i32, i32
  }
  func.func @transform_10(%arg0: i32) -> (i32, i32) {
    %c0_i32 = arith.constant 0 : i32
    %c0_i32_0 = arith.constant 0 : i32
    return %arg0, %c0_i32 : i32, i32
  }
  func.func @transform_11(%arg0: i32) -> (i32, i32) {
    %c0_i32 = arith.constant 0 : i32
    %c0_i32_0 = arith.constant 0 : i32
    return %arg0, %c0_i32 : i32, i32
  }
  func.func @transform_12(%arg0: i32) -> (i32, i32) {
    %c0_i32 = arith.constant 0 : i32
    %c0_i32_0 = arith.constant 0 : i32
    return %arg0, %c0_i32 : i32, i32
  }
}

</mosaic_0001>

<llo_original>
// kernel: vae_forward.1
$region0: #{vae_forward.1}
  #allocation0 [shape = 'u32[]', space=smem, size = 0x4, offset = 0x4, fixed_abs, tag = 'smem constant byte address 0x4 - core index']
  #allocation1 [shape = 'u32[144,128]{1,0:T(1,128)}', space=vmem, size = 0x12000, scoped, tag = 'internal scratch']
  %s0 = inlined_call_operand.vmem [shape: bf16[8,896], index: 0, kind: input, shape index: {}]
  %s1 = inlined_call_operand.vmem [shape: f32[8,128], index: 1, kind: input, shape index: {}]
  %s2 = inlined_call_operand.vmem [shape: bf16[896,512], index: 2, kind: input, shape index: {}]
  %s3 = inlined_call_operand.vmem [shape: f32[1,512], index: 3, kind: input, shape index: {}]
  %s4 = inlined_call_operand.vmem [shape: bf16[512,256], index: 4, kind: input, shape index: {}]
  %s5 = inlined_call_operand.vmem [shape: f32[1,256], index: 5, kind: input, shape index: {}]
  %s6 = inlined_call_operand.vmem [shape: bf16[128,512], index: 6, kind: input, shape index: {}]
  %s7 = inlined_call_operand.vmem [shape: f32[1,512], index: 7, kind: input, shape index: {}]
  %s8 = inlined_call_operand.vmem [shape: bf16[512,896], index: 8, kind: input, shape index: {}]
  %s9 = inlined_call_operand.vmem [shape: f32[1,896], index: 9, kind: input, shape index: {}]
  %s10 = inlined_call_operand.vmem [shape: f32[8,896], index: 10, kind: output, shape index: {0}]
  %s11 = inlined_call_operand.vmem [shape: f32[8,128], index: 11, kind: output, shape index: {1}]
  %s12 = inlined_call_operand.vmem [shape: f32[8,128], index: 12, kind: output, shape index: {2}]
  %13 = xla_tuple %s10, %s11, %s12
  %s14 = sld [smem:[#allocation0]]
  $region66: #{vae_forward.1} parent=0
    _
  %s16 = ssub.s32 1, %s14
  %s17 = scalar_select 0, %s16, %s14
  // Predicated region
  $region2: #{vae_forward.1} parent=0 // pred_check
    _
  $region3: #{vae_forward.1} parent=0 // pred_check_branch
    %19 = sbr.rel (0) target = $region5
  $region4: #{vae_forward.1} parent=0 // pred_region
    _
  $region5: #{vae_forward.1} parent=0 // pred_fallthru
    _
  // Predicated region
  $region6: #{vae_forward.1} parent=0 // pred_check
    _
  $region7: #{vae_forward.1} parent=0 // pred_check_branch
    %21 = sbr.rel (0) target = $region9
  $region8: #{vae_forward.1} parent=0 // pred_region
    _
  $region9: #{vae_forward.1} parent=0 // pred_fallthru
    _
  // Predicated region
  $region10: #{vae_forward.1} parent=0 // pred_check
    _
  $region11: #{vae_forward.1} parent=0 // pred_check_branch
    %23 = sbr.rel (0) target = $region13
  $region12: #{vae_forward.1} parent=0 // pred_region
    _
  $region13: #{vae_forward.1} parent=0 // pred_fallthru
    _
  // Predicated region
  $region14: #{vae_forward.1} parent=0 // pred_check
    _
  $region15: #{vae_forward.1} parent=0 // pred_check_branch
    %25 = sbr.rel (0) target = $region17
  $region16: #{vae_forward.1} parent=0 // pred_region
    _
  $region17: #{vae_forward.1} parent=0 // pred_fallthru
    _
  // Predicated region
  $region18: #{vae_forward.1} parent=0 // pred_check
    _
  $region19: #{vae_forward.1} parent=0 // pred_check_branch
    %27 = sbr.rel (0) target = $region21
  $region20: #{vae_forward.1} parent=0 // pred_region
    _
  $region21: #{vae_forward.1} parent=0 // pred_fallthru
    _
  // Predicated region
  $region22: #{vae_forward.1} parent=0 // pred_check
    _
  $region23: #{vae_forward.1} parent=0 // pred_check_branch
    %29 = sbr.rel (0) target = $region25
  $region24: #{vae_forward.1} parent=0 // pred_region
    _
  $region25: #{vae_forward.1} parent=0 // pred_fallthru
    _
  // Predicated region
  $region26: #{vae_forward.1} parent=0 // pred_check
    _
  $region27: #{vae_forward.1} parent=0 // pred_check_branch
    %31 = sbr.rel (0) target = $region29
  $region28: #{vae_forward.1} parent=0 // pred_region
    _
  $region29: #{vae_forward.1} parent=0 // pred_fallthru
    _
  // Predicated region
  $region30: #{vae_forward.1} parent=0 // pred_check
    _
  $region31: #{vae_forward.1} parent=0 // pred_check_branch
    %33 = sbr.rel (0) target = $region33
  $region32: #{vae_forward.1} parent=0 // pred_region
    _
  $region33: #{vae_forward.1} parent=0 // pred_fallthru
    _
  // Predicated region
  $region34: #{vae_forward.1} parent=0 // pred_check
    _
  $region35: #{vae_forward.1} parent=0 // pred_check_branch
    %35 = sbr.rel (0) target = $region37
  $region36: #{vae_forward.1} parent=0 // pred_region
    _
  $region37: #{vae_forward.1} parent=0 // pred_fallthru
    _
  // Predicated region
  $region38: #{vae_forward.1} parent=0 // pred_check
    _
  $region39: #{vae_forward.1} parent=0 // pred_check_branch
    %37 = sbr.rel (0) target = $region41
  $region40: #{vae_forward.1} parent=0 // pred_region
    _
  $region41: #{vae_forward.1} parent=0 // pred_fallthru
    _
  %v39 = vld [vmem:[%s0] sm:$0xff]
  %v40 = vld [vmem:[%s0 + $0x8] sm:$0xff]
  %v41 = vld [vmem:[%s0 + $0x10] sm:$0xff]
  %v42 = vld [vmem:[%s0 + $0x18] sm:$0xf]
  %v43 = vld [vmem:[%s2] sm:$0xff]
  %v44 = vld [vmem:[%s2 + $0x8] sm:$0xff]
  %v45 = vld [vmem:[%s2 + $0x10] sm:$0xff]
  %v46 = vld [vmem:[%s2 + $0x18] sm:$0xff]
  %v47 = vld [vmem:[%s2 + $0x20] sm:$0xff]
  %v48 = vld [vmem:[%s2 + $0x28] sm:$0xff]
  %v49 = vld [vmem:[%s2 + $0x30] sm:$0xff]
  %v50 = vld [vmem:[%s2 + $0x38] sm:$0xff]
  %v51 = vld [vmem:[%s2 + $0x40] sm:$0xff]
  %v52 = vld [vmem:[%s2 + $0x48] sm:$0xff]
  %v53 = vld [vmem:[%s2 + $0x50] sm:$0xff]
  %v54 = vld [vmem:[%s2 + $0x58] sm:$0xff]
  %v55 = vld [vmem:[%s2 + $0x60] sm:$0xff]
  %v56 = vld [vmem:[%s2 + $0x68] sm:$0xff]
  %v57 = vld [vmem:[%s2 + $0x70] sm:$0xff]
  %v58 = vld [vmem:[%s2 + $0x78] sm:$0xff]
  %v59 = vld [vmem:[%s2 + $0x80] sm:$0xff]
  %v60 = vld [vmem:[%s2 + $0x88] sm:$0xff]
  %v61 = vld [vmem:[%s2 + $0x90] sm:$0xff]
  %v62 = vld [vmem:[%s2 + $0x98] sm:$0xff]
  %v63 = vld [vmem:[%s2 + $0xa0] sm:$0xff]
  %v64 = vld [vmem:[%s2 + $0xa8] sm:$0xff]
  %v65 = vld [vmem:[%s2 + $0xb0] sm:$0xff]
  %v66 = vld [vmem:[%s2 + $0xb8] sm:$0xff]
  %v67 = vld [vmem:[%s2 + $0xc0] sm:$0xff]
  %v68 = vld [vmem:[%s2 + $0xc8] sm:$0xff]
  %v69 = vld [vmem:[%s2 + $0xd0] sm:$0xff]
  %v70 = vld [vmem:[%s2 + $0xd8] sm:$0xff]
  %v71 = vld [vmem:[%s2 + $0xe0] sm:$0xff]
  %v72 = vld [vmem:[%s2 + $0xe8] sm:$0xff]
  %v73 = vld [vmem:[%s2 + $0xf0] sm:$0xff]
  %v74 = vld [vmem:[%s2 + $0xf8] sm:$0xff]
  %v75 = vld [vmem:[%s2 + $0x100] sm:$0xff]
  %v76 = vld [vmem:[%s2 + $0x108] sm:$0xff]
  %v77 = vld [vmem:[%s2 + $0x110] sm:$0xff]
  %v78 = vld [vmem:[%s2 + $0x118] sm:$0xff]
  %v79 = vld [vmem:[%s2 + $0x120] sm:$0xff]
  %v80 = vld [vmem:[%s2 + $0x128] sm:$0xff]
  %v81 = vld [vmem:[%s2 + $0x130] sm:$0xff]
  %v82 = vld [vmem:[%s2 + $0x138] sm:$0xff]
  %v83 = vld [vmem:[%s2 + $0x140] sm:$0xff]
  %v84 = vld [vmem:[%s2 + $0x148] sm:$0xff]
  %v85 = vld [vmem:[%s2 + $0x150] sm:$0xff]
  %v86 = vld [vmem:[%s2 + $0x158] sm:$0xff]
  %v87 = vld [vmem:[%s2 + $0x160] sm:$0xff]
  %v88 = vld [vmem:[%s2 + $0x168] sm:$0xff]
  %v89 = vld [vmem:[%s2 + $0x170] sm:$0xff]
  %v90 = vld [vmem:[%s2 + $0x178] sm:$0xff]
  %v91 = vld [vmem:[%s2 + $0x180] sm:$0xff]
  %v92 = vld [vmem:[%s2 + $0x188] sm:$0xff]
  %v93 = vld [vmem:[%s2 + $0x190] sm:$0xff]
  %v94 = vld [vmem:[%s2 + $0x198] sm:$0xff]
  %v95 = vld [vmem:[%s2 + $0x1a0] sm:$0xff]
  %v96 = vld [vmem:[%s2 + $0x1a8] sm:$0xff]
  %v97 = vld [vmem:[%s2 + $0x1b0] sm:$0xff]
  %v98 = vld [vmem:[%s2 + $0x1b8] sm:$0xff]
  %v99 = vld [vmem:[%s2 + $0x1c0] sm:$0xff]
  %v100 = vld [vmem:[%s2 + $0x1c8] sm:$0xff]
  %v101 = vld [vmem:[%s2 + $0x1d0] sm:$0xff]
  %v102 = vld [vmem:[%s2 + $0x1d8] sm:$0xff]
  %v103 = vld [vmem:[%s2 + $0x1e0] sm:$0xff]
  %v104 = vld [vmem:[%s2 + $0x1e8] sm:$0xff]
  %v105 = vld [vmem:[%s2 + $0x1f0] sm:$0xff]
  %v106 = vld [vmem:[%s2 + $0x1f8] sm:$0xff]
  %v107 = vld [vmem:[%s2 + $0x200] sm:$0xff]
  %v108 = vld [vmem:[%s2 + $0x208] sm:$0xff]
  %v109 = vld [vmem:[%s2 + $0x210] sm:$0xff]
  %v110 = vld [vmem:[%s2 + $0x218] sm:$0xff]
  %v111 = vld [vmem:[%s2 + $0x220] sm:$0xff]
  %v112 = vld [vmem:[%s2 + $0x228] sm:$0xff]
  %v113 = vld [vmem:[%s2 + $0x230] sm:$0xff]
  %v114 = vld [vmem:[%s2 + $0x238] sm:$0xff]
  %v115 = vld [vmem:[%s2 + $0x240] sm:$0xff]
  %v116 = vld [vmem:[%s2 + $0x248] sm:$0xff]
  %v117 = vld [vmem:[%s2 + $0x250] sm:$0xff]
  %v118 = vld [vmem:[%s2 + $0x258] sm:$0xff]
  %v119 = vld [vmem:[%s2 + $0x260] sm:$0xff]
  %v120 = vld [vmem:[%s2 + $0x268] sm:$0xff]
  %v121 = vld [vmem:[%s2 + $0x270] sm:$0xff]
  %v122 = vld [vmem:[%s2 + $0x278] sm:$0xff]
  %v123 = vld [vmem:[%s2 + $0x280] sm:$0xff]
  %v124 = vld [vmem:[%s2 + $0x288] sm:$0xff]
  %v125 = vld [vmem:[%s2 + $0x290] sm:$0xff]
  %v126 = vld [vmem:[%s2 + $0x298] sm:$0xff]
  %v127 = vld [vmem:[%s2 + $0x2a0] sm:$0xff]
  %v128 = vld [vmem:[%s2 + $0x2a8] sm:$0xff]
  %v129 = vld [vmem:[%s2 + $0x2b0] sm:$0xff]
  %v130 = vld [vmem:[%s2 + $0x2b8] sm:$0xff]
  %v131 = vld [vmem:[%s2 + $0x2c0] sm:$0xff]
  %v132 = vld [vmem:[%s2 + $0x2c8] sm:$0xff]
  %v133 = vld [vmem:[%s2 + $0x2d0] sm:$0xff]
  %v134 = vld [vmem:[%s2 + $0x2d8] sm:$0xff]
  %v135 = vld [vmem:[%s2 + $0x2e0] sm:$0xff]
  %v136 = vld [vmem:[%s2 + $0x2e8] sm:$0xff]
  %v137 = vld [vmem:[%s2 + $0x2f0] sm:$0xff]
  %v138 = vld [vmem:[%s2 + $0x2f8] sm:$0xff]
  %v139 = vld [vmem:[%s2 + $0x300] sm:$0xff]
  %v140 = vld [vmem:[%s2 + $0x308] sm:$0xff]
  %v141 = vld [vmem:[%s2 + $0x310] sm:$0xff]
  %v142 = vld [vmem:[%s2 + $0x318] sm:$0xff]
  %v143 = vld [vmem:[%s2 + $0x320] sm:$0xff]
  %v144 = vld [vmem:[%s2 + $0x328] sm:$0xff]
  %v145 = vld [vmem:[%s2 + $0x330] sm:$0xff]
  %v146 = vld [vmem:[%s2 + $0x338] sm:$0xff]
  %v147 = vld [vmem:[%s2 + $0x340] sm:$0xff]
  %v148 = vld [vmem:[%s2 + $0x348] sm:$0xff]
  %v149 = vld [vmem:[%s2 + $0x350] sm:$0xff]
  %v150 = vld [vmem:[%s2 + $0x358] sm:$0xff]
  %v151 = vld [vmem:[%s2 + $0x360] sm:$0xff]
  %v152 = vld [vmem:[%s2 + $0x368] sm:$0xff]
  %v153 = vld [vmem:[%s2 + $0x370] sm:$0xff]
  %v154 = vld [vmem:[%s2 + $0x378] sm:$0xff]
  %v155 = vld [vmem:[%s2 + $0x380] sm:$0xff]
  %v156 = vld [vmem:[%s2 + $0x388] sm:$0xff]
  %v157 = vld [vmem:[%s2 + $0x390] sm:$0xff]
  %v158 = vld [vmem:[%s2 + $0x398] sm:$0xff]
  %v159 = vld [vmem:[%s2 + $0x3a0] sm:$0xff]
  %v160 = vld [vmem:[%s2 + $0x3a8] sm:$0xff]
  %v161 = vld [vmem:[%s2 + $0x3b0] sm:$0xff]
  %v162 = vld [vmem:[%s2 + $0x3b8] sm:$0xff]
  %v163 = vld [vmem:[%s2 + $0x3c0] sm:$0xff]
  %v164 = vld [vmem:[%s2 + $0x3c8] sm:$0xff]
  %v165 = vld [vmem:[%s2 + $0x3d0] sm:$0xff]
  %v166 = vld [vmem:[%s2 + $0x3d8] sm:$0xff]
  %v167 = vld [vmem:[%s2 + $0x3e0] sm:$0xff]
  %v168 = vld [vmem:[%s2 + $0x3e8] sm:$0xff]
  %v169 = vld [vmem:[%s2 + $0x3f0] sm:$0xff]
  %v170 = vld [vmem:[%s2 + $0x3f8] sm:$0xff]
  %v171 = vld [vmem:[%s2 + $0x400] sm:$0xff]
  %v172 = vld [vmem:[%s2 + $0x408] sm:$0xff]
  %v173 = vld [vmem:[%s2 + $0x410] sm:$0xff]
  %v174 = vld [vmem:[%s2 + $0x418] sm:$0xff]
  %v175 = vld [vmem:[%s2 + $0x420] sm:$0xff]
  %v176 = vld [vmem:[%s2 + $0x428] sm:$0xff]
  %v177 = vld [vmem:[%s2 + $0x430] sm:$0xff]
  %v178 = vld [vmem:[%s2 + $0x438] sm:$0xff]
  %v179 = vld [vmem:[%s2 + $0x440] sm:$0xff]
  %v180 = vld [vmem:[%s2 + $0x448] sm:$0xff]
  %v181 = vld [vmem:[%s2 + $0x450] sm:$0xff]
  %v182 = vld [vmem:[%s2 + $0x458] sm:$0xff]
  %v183 = vld [vmem:[%s2 + $0x460] sm:$0xff]
  %v184 = vld [vmem:[%s2 + $0x468] sm:$0xff]
  %v185 = vld [vmem:[%s2 + $0x470] sm:$0xff]
  %v186 = vld [vmem:[%s2 + $0x478] sm:$0xff]
  %v187 = vld [vmem:[%s2 + $0x480] sm:$0xff]
  %v188 = vld [vmem:[%s2 + $0x488] sm:$0xff]
  %v189 = vld [vmem:[%s2 + $0x490] sm:$0xff]
  %v190 = vld [vmem:[%s2 + $0x498] sm:$0xff]
  %v191 = vld [vmem:[%s2 + $0x4a0] sm:$0xff]
  %v192 = vld [vmem:[%s2 + $0x4a8] sm:$0xff]
  %v193 = vld [vmem:[%s2 + $0x4b0] sm:$0xff]
  %v194 = vld [vmem:[%s2 + $0x4b8] sm:$0xff]
  %v195 = vld [vmem:[%s2 + $0x4c0] sm:$0xff]
  %v196 = vld [vmem:[%s2 + $0x4c8] sm:$0xff]
  %v197 = vld [vmem:[%s2 + $0x4d0] sm:$0xff]
  %v198 = vld [vmem:[%s2 + $0x4d8] sm:$0xff]
  %v199 = vld [vmem:[%s2 + $0x4e0] sm:$0xff]
  %v200 = vld [vmem:[%s2 + $0x4e8] sm:$0xff]
  %v201 = vld [vmem:[%s2 + $0x4f0] sm:$0xff]
  %v202 = vld [vmem:[%s2 + $0x4f8] sm:$0xff]
  %v203 = vld [vmem:[%s2 + $0x500] sm:$0xff]
  %v204 = vld [vmem:[%s2 + $0x508] sm:$0xff]
  %v205 = vld [vmem:[%s2 + $0x510] sm:$0xff]
  %v206 = vld [vmem:[%s2 + $0x518] sm:$0xff]
  %v207 = vld [vmem:[%s2 + $0x520] sm:$0xff]
  %v208 = vld [vmem:[%s2 + $0x528] sm:$0xff]
  %v209 = vld [vmem:[%s2 + $0x530] sm:$0xff]
  %v210 = vld [vmem:[%s2 + $0x538] sm:$0xff]
  %v211 = vld [vmem:[%s2 + $0x540] sm:$0xff]
  %v212 = vld [vmem:[%s2 + $0x548] sm:$0xff]
  %v213 = vld [vmem:[%s2 + $0x550] sm:$0xff]
  %v214 = vld [vmem:[%s2 + $0x558] sm:$0xff]
  %v215 = vld [vmem:[%s2 + $0x560] sm:$0xff]
  %v216 = vld [vmem:[%s2 + $0x568] sm:$0xff]
  %v217 = vld [vmem:[%s2 + $0x570] sm:$0xff]
  %v218 = vld [vmem:[%s2 + $0x578] sm:$0xff]
  %v219 = vld [vmem:[%s2 + $0x580] sm:$0xff]
  %v220 = vld [vmem:[%s2 + $0x588] sm:$0xff]
  %v221 = vld [vmem:[%s2 + $0x590] sm:$0xff]
  %v222 = vld [vmem:[%s2 + $0x598] sm:$0xff]
  %v223 = vld [vmem:[%s2 + $0x5a0] sm:$0xff]
  %v224 = vld [vmem:[%s2 + $0x5a8] sm:$0xff]
  %v225 = vld [vmem:[%s2 + $0x5b0] sm:$0xff]
  %v226 = vld [vmem:[%s2 + $0x5b8] sm:$0xff]
  %v227 = vld [vmem:[%s2 + $0x5c0] sm:$0xff]
  %v228 = vld [vmem:[%s2 + $0x5c8] sm:$0xff]
  %v229 = vld [vmem:[%s2 + $0x5d0] sm:$0xff]
  %v230 = vld [vmem:[%s2 + $0x5d8] sm:$0xff]
  %v231 = vld [vmem:[%s2 + $0x5e0] sm:$0xff]
  %v232 = vld [vmem:[%s2 + $0x5e8] sm:$0xff]
  %v233 = vld [vmem:[%s2 + $0x5f0] sm:$0xff]
  %v234 = vld [vmem:[%s2 + $0x5f8] sm:$0xff]
  %v235 = vld [vmem:[%s2 + $0x600] sm:$0xff]
  %v236 = vld [vmem:[%s2 + $0x608] sm:$0xff]
  %v237 = vld [vmem:[%s2 + $0x610] sm:$0xff]
  %v238 = vld [vmem:[%s2 + $0x618] sm:$0xff]
  %v239 = vld [vmem:[%s2 + $0x620] sm:$0xff]
  %v240 = vld [vmem:[%s2 + $0x628] sm:$0xff]
  %v241 = vld [vmem:[%s2 + $0x630] sm:$0xff]
  %v242 = vld [vmem:[%s2 + $0x638] sm:$0xff]
  %v243 = vld [vmem:[%s2 + $0x640] sm:$0xff]
  %v244 = vld [vmem:[%s2 + $0x648] sm:$0xff]
  %v245 = vld [vmem:[%s2 + $0x650] sm:$0xff]
  %v246 = vld [vmem:[%s2 + $0x658] sm:$0xff]
  %v247 = vld [vmem:[%s2 + $0x660] sm:$0xff]
  %v248 = vld [vmem:[%s2 + $0x668] sm:$0xff]
  %v249 = vld [vmem:[%s2 + $0x670] sm:$0xff]
  %v250 = vld [vmem:[%s2 + $0x678] sm:$0xff]
  %v251 = vld [vmem:[%s2 + $0x680] sm:$0xff]
  %v252 = vld [vmem:[%s2 + $0x688] sm:$0xff]
  %v253 = vld [vmem:[%s2 + $0x690] sm:$0xff]
  %v254 = vld [vmem:[%s2 + $0x698] sm:$0xff]
  %v255 = vld [vmem:[%s2 + $0x6a0] sm:$0xff]
  %v256 = vld [vmem:[%s2 + $0x6a8] sm:$0xff]
  %v257 = vld [vmem:[%s2 + $0x6b0] sm:$0xff]
  %v258 = vld [vmem:[%s2 + $0x6b8] sm:$0xff]
  %v259 = vld [vmem:[%s2 + $0x6c0] sm:$0xff]
  %v260 = vld [vmem:[%s2 + $0x6c8] sm:$0xff]
  %v261 = vld [vmem:[%s2 + $0x6d0] sm:$0xff]
  %v262 = vld [vmem:[%s2 + $0x6d8] sm:$0xff]
  %v263 = vld [vmem:[%s2 + $0x6e0] sm:$0xff]
  %v264 = vld [vmem:[%s2 + $0x6e8] sm:$0xff]
  %v265 = vld [vmem:[%s2 + $0x6f0] sm:$0xff]
  %v266 = vld [vmem:[%s2 + $0x6f8] sm:$0xff]
  %v267 = vld [vmem:[%s3] sm:$0xf]
  %v269 = vlaneseq
  %v270 = vshrl.u32 %v269, 7
  %v271 = vsub.s32 0, %v270
  %v272 = vrot.slane %v267, %v271
  %v273 = vlaneseq
  %v274 = vshrl.u32 %v273, 7
  %v275 = vsub.s32 1, %v274
  %v276 = vrot.slane %v267, %v275
  %v277 = vlaneseq
  %v278 = vshrl.u32 %v277, 7
  %v279 = vsub.s32 2, %v278
  %v280 = vrot.slane %v267, %v279
  %v281 = vlaneseq
  %v282 = vshrl.u32 %v281, 7
  %v283 = vsub.s32 3, %v282
  %v284 = vrot.slane %v267, %v283
  %v293 = vunpack.c.l.b16 %v39
  %v294 = vunpack.c.h.b16 %v39
  %v295 = vunpack.c.l.b16 %v40
  %v296 = vunpack.c.h.b16 %v40
  %v297 = vunpack.c.l.b16 %v41
  %v298 = vunpack.c.h.b16 %v41
  %v299 = vunpack.c.l.b16 %v42
  %v300 = vpack.c.b16 %v293, %v293
  %v301 = vpack.c.b16 %v294, %v294
  %v302 = vpack.c.b16 %v295, %v295
  %v303 = vpack.c.b16 %v296, %v296
  %v304 = vpack.c.b16 %v297, %v297
  %v305 = vpack.c.b16 %v298, %v298
  %v306 = vpack.c.b16 %v299, %v299
  %v538 = vunpack.c.l.b16 %v43
  %v539 = vunpack.c.h.b16 %v43
  %v540 = vunpack.c.l.b16 %v44
  %v541 = vunpack.c.h.b16 %v44
  %v542 = vunpack.c.l.b16 %v45
  %v543 = vunpack.c.h.b16 %v45
  %v544 = vunpack.c.l.b16 %v46
  %v545 = vunpack.c.h.b16 %v46
  %v546 = vunpack.c.l.b16 %v47
  %v547 = vunpack.c.h.b16 %v47
  %v548 = vunpack.c.l.b16 %v48
  %v549 = vunpack.c.h.b16 %v48
  %v550 = vunpack.c.l.b16 %v49
  %v551 = vunpack.c.h.b16 %v49
  %v552 = vunpack.c.l.b16 %v50
  %v553 = vunpack.c.h.b16 %v50
  %v554 = vunpack.c.l.b16 %v51
  %v555 = vunpack.c.h.b16 %v51
  %v556 = vunpack.c.l.b16 %v52
  %v557 = vunpack.c.h.b16 %v52
  %v558 = vunpack.c.l.b16 %v53
  %v559 = vunpack.c.h.b16 %v53
  %v560 = vunpack.c.l.b16 %v54
  %v561 = vunpack.c.h.b16 %v54
  %v562 = vunpack.c.l.b16 %v55
  %v563 = vunpack.c.h.b16 %v55
  %v564 = vunpack.c.l.b16 %v56
  %v565 = vunpack.c.h.b16 %v56
  %v566 = vunpack.c.l.b16 %v57
  %v567 = vunpack.c.h.b16 %v57
  %v568 = vunpack.c.l.b16 %v58
  %v569 = vunpack.c.h.b16 %v58
  %v570 = vunpack.c.l.b16 %v59
  %v571 = vunpack.c.h.b16 %v59
  %v572 = vunpack.c.l.b16 %v60
  %v573 = vunpack.c.h.b16 %v60
  %v574 = vunpack.c.l.b16 %v61
  %v575 = vunpack.c.h.b16 %v61
  %v576 = vunpack.c.l.b16 %v62
  %v577 = vunpack.c.h.b16 %v62
  %v578 = vunpack.c.l.b16 %v63
  %v579 = vunpack.c.h.b16 %v63
  %v580 = vunpack.c.l.b16 %v64
  %v581 = vunpack.c.h.b16 %v64
  %v582 = vunpack.c.l.b16 %v65
  %v583 = vunpack.c.h.b16 %v65
  %v584 = vunpack.c.l.b16 %v66
  %v585 = vunpack.c.h.b16 %v66
  %v586 = vunpack.c.l.b16 %v67
  %v587 = vunpack.c.h.b16 %v67
  %v588 = vunpack.c.l.b16 %v68
  %v589 = vunpack.c.h.b16 %v68
  %v590 = vunpack.c.l.b16 %v69
  %v591 = vunpack.c.h.b16 %v69
  %v592 = vunpack.c.l.b16 %v70
  %v593 = vunpack.c.h.b16 %v70
  %v594 = vunpack.c.l.b16 %v71
  %v595 = vunpack.c.h.b16 %v71
  %v596 = vunpack.c.l.b16 %v72
  %v597 = vunpack.c.h.b16 %v72
  %v598 = vunpack.c.l.b16 %v73
  %v599 = vunpack.c.h.b16 %v73
  %v600 = vunpack.c.l.b16 %v74
  %v601 = vunpack.c.h.b16 %v74
  %v602 = vunpack.c.l.b16 %v75
  %v603 = vunpack.c.h.b16 %v75
  %v604 = vunpack.c.l.b16 %v76
  %v605 = vunpack.c.h.b16 %v76
  %v606 = vunpack.c.l.b16 %v77
  %v607 = vunpack.c.h.b16 %v77
  %v608 = vunpack.c.l.b16 %v78
  %v609 = vunpack.c.h.b16 %v78
  %v610 = vunpack.c.l.b16 %v79
  %v611 = vunpack.c.h.b16 %v79
  %v612 = vunpack.c.l.b16 %v80
  %v613 = vunpack.c.h.b16 %v80
  %v614 = vunpack.c.l.b16 %v81
  %v615 = vunpack.c.h.b16 %v81
  %v616 = vunpack.c.l.b16 %v82
  %v617 = vunpack.c.h.b16 %v82
  %v618 = vunpack.c.l.b16 %v83
  %v619 = vunpack.c.h.b16 %v83
  %v620 = vunpack.c.l.b16 %v84
  %v621 = vunpack.c.h.b16 %v84
  %v622 = vunpack.c.l.b16 %v85
  %v623 = vunpack.c.h.b16 %v85
  %v624 = vunpack.c.l.b16 %v86
  %v625 = vunpack.c.h.b16 %v86
  %v626 = vunpack.c.l.b16 %v87
  %v627 = vunpack.c.h.b16 %v87
  %v628 = vunpack.c.l.b16 %v88
  %v629 = vunpack.c.h.b16 %v88
  %v630 = vunpack.c.l.b16 %v89
  %v631 = vunpack.c.h.b16 %v89
  %v632 = vunpack.c.l.b16 %v90
  %v633 = vunpack.c.h.b16 %v90
  %v634 = vunpack.c.l.b16 %v91
  %v635 = vunpack.c.h.b16 %v91
  %v636 = vunpack.c.l.b16 %v92
  %v637 = vunpack.c.h.b16 %v92
  %v638 = vunpack.c.l.b16 %v93
  %v639 = vunpack.c.h.b16 %v93
  %v640 = vunpack.c.l.b16 %v94
  %v641 = vunpack.c.h.b16 %v94
  %v642 = vunpack.c.l.b16 %v95
  %v643 = vunpack.c.h.b16 %v95
  %v644 = vunpack.c.l.b16 %v96
  %v645 = vunpack.c.h.b16 %v96
  %v646 = vunpack.c.l.b16 %v97
  %v647 = vunpack.c.h.b16 %v97
  %v648 = vunpack.c.l.b16 %v98
  %v649 = vunpack.c.h.b16 %v98
  %v650 = vunpack.c.l.b16 %v99
  %v651 = vunpack.c.h.b16 %v99
  %v652 = vunpack.c.l.b16 %v100
  %v653 = vunpack.c.h.b16 %v100
  %v654 = vunpack.c.l.b16 %v101
  %v655 = vunpack.c.h.b16 %v101
  %v656 = vunpack.c.l.b16 %v102
  %v657 = vunpack.c.h.b16 %v102
  %v658 = vunpack.c.l.b16 %v103
  %v659 = vunpack.c.h.b16 %v103
  %v660 = vunpack.c.l.b16 %v104
  %v661 = vunpack.c.h.b16 %v104
  %v662 = vunpack.c.l.b16 %v105
  %v663 = vunpack.c.h.b16 %v105
  %v664 = vunpack.c.l.b16 %v106
  %v665 = vunpack.c.h.b16 %v106
  %v666 = vunpack.c.l.b16 %v107
  %v667 = vunpack.c.h.b16 %v107
  %v668 = vunpack.c.l.b16 %v108
  %v669 = vunpack.c.h.b16 %v108
  %v670 = vunpack.c.l.b16 %v109
  %v671 = vunpack.c.h.b16 %v109
  %v672 = vunpack.c.l.b16 %v110
  %v673 = vunpack.c.h.b16 %v110
  %v674 = vunpack.c.l.b16 %v111
  %v675 = vunpack.c.h.b16 %v111
  %v676 = vunpack.c.l.b16 %v112
  %v677 = vunpack.c.h.b16 %v112
  %v678 = vunpack.c.l.b16 %v113
  %v679 = vunpack.c.h.b16 %v113
  %v680 = vunpack.c.l.b16 %v114
  %v681 = vunpack.c.h.b16 %v114
  %v682 = vunpack.c.l.b16 %v115
  %v683 = vunpack.c.h.b16 %v115
  %v684 = vunpack.c.l.b16 %v116
  %v685 = vunpack.c.h.b16 %v116
  %v686 = vunpack.c.l.b16 %v117
  %v687 = vunpack.c.h.b16 %v117
  %v688 = vunpack.c.l.b16 %v118
  %v689 = vunpack.c.h.b16 %v118
  %v690 = vunpack.c.l.b16 %v119
  %v691 = vunpack.c.h.b16 %v119
  %v692 = vunpack.c.l.b16 %v120
  %v693 = vunpack.c.h.b16 %v120
  %v694 = vunpack.c.l.b16 %v121
  %v695 = vunpack.c.h.b16 %v121
  %v696 = vunpack.c.l.b16 %v122
  %v697 = vunpack.c.h.b16 %v122
  %v698 = vunpack.c.l.b16 %v123
  %v699 = vunpack.c.h.b16 %v123
  %v700 = vunpack.c.l.b16 %v124
  %v701 = vunpack.c.h.b16 %v124
  %v702 = vunpack.c.l.b16 %v125
  %v703 = vunpack.c.h.b16 %v125
  %v704 = vunpack.c.l.b16 %v126
  %v705 = vunpack.c.h.b16 %v126
  %v706 = vunpack.c.l.b16 %v127
  %v707 = vunpack.c.h.b16 %v127
  %v708 = vunpack.c.l.b16 %v128
  %v709 = vunpack.c.h.b16 %v128
  %v710 = vunpack.c.l.b16 %v129
  %v711 = vunpack.c.h.b16 %v129
  %v712 = vunpack.c.l.b16 %v130
  %v713 = vunpack.c.h.b16 %v130
  %v714 = vunpack.c.l.b16 %v131
  %v715 = vunpack.c.h.b16 %v131
  %v716 = vunpack.c.l.b16 %v132
  %v717 = vunpack.c.h.b16 %v132
  %v718 = vunpack.c.l.b16 %v133
  %v719 = vunpack.c.h.b16 %v133
  %v720 = vunpack.c.l.b16 %v134
  %v721 = vunpack.c.h.b16 %v134
  %v722 = vunpack.c.l.b16 %v135
  %v723 = vunpack.c.h.b16 %v135
  %v724 = vunpack.c.l.b16 %v136
  %v725 = vunpack.c.h.b16 %v136
  %v726 = vunpack.c.l.b16 %v137
  %v727 = vunpack.c.h.b16 %v137
  %v728 = vunpack.c.l.b16 %v138
  %v729 = vunpack.c.h.b16 %v138
  %v730 = vunpack.c.l.b16 %v139
  %v731 = vunpack.c.h.b16 %v139
  %v732 = vunpack.c.l.b16 %v140
  %v733 = vunpack.c.h.b16 %v140
  %v734 = vunpack.c.l.b16 %v141
  %v735 = vunpack.c.h.b16 %v141
  %v736 = vunpack.c.l.b16 %v142
  %v737 = vunpack.c.h.b16 %v142
  %v738 = vunpack.c.l.b16 %v143
  %v739 = vunpack.c.h.b16 %v143
  %v740 = vunpack.c.l.b16 %v144
  %v741 = vunpack.c.h.b16 %v144
  %v742 = vunpack.c.l.b16 %v145
  %v743 = vunpack.c.h.b16 %v145
  %v744 = vunpack.c.l.b16 %v146
  %v745 = vunpack.c.h.b16 %v146
  %v746 = vunpack.c.l.b16 %v147
  %v747 = vunpack.c.h.b16 %v147
  %v748 = vunpack.c.l.b16 %v148
  %v749 = vunpack.c.h.b16 %v148
  %v750 = vunpack.c.l.b16 %v149
  %v751 = vunpack.c.h.b16 %v149
  %v752 = vunpack.c.l.b16 %v150
  %v753 = vunpack.c.h.b16 %v150
  %v754 = vunpack.c.l.b16 %v151
  %v755 = vunpack.c.h.b16 %v151
  %v756 = vunpack.c.l.b16 %v152
  %v757 = vunpack.c.h.b16 %v152
  %v758 = vunpack.c.l.b16 %v153
  %v759 = vunpack.c.h.b16 %v153
  %v760 = vunpack.c.l.b16 %v154
  %v761 = vunpack.c.h.b16 %v154
  %v762 = vunpack.c.l.b16 %v155
  %v763 = vunpack.c.h.b16 %v155
  %v764 = vunpack.c.l.b16 %v156
  %v765 = vunpack.c.h.b16 %v156
  %v766 = vunpack.c.l.b16 %v157
  %v767 = vunpack.c.h.b16 %v157
  %v768 = vunpack.c.l.b16 %v158
  %v769 = vunpack.c.h.b16 %v158
  %v770 = vunpack.c.l.b16 %v159
  %v771 = vunpack.c.h.b16 %v159
  %v772 = vunpack.c.l.b16 %v160
  %v773 = vunpack.c.h.b16 %v160
  %v774 = vunpack.c.l.b16 %v161
  %v775 = vunpack.c.h.b16 %v161
  %v776 = vunpack.c.l.b16 %v162
  %v777 = vunpack.c.h.b16 %v162
  %v778 = vunpack.c.l.b16 %v163
  %v779 = vunpack.c.h.b16 %v163
  %v780 = vunpack.c.l.b16 %v164
  %v781 = vunpack.c.h.b16 %v164
  %v782 = vunpack.c.l.b16 %v165
  %v783 = vunpack.c.h.b16 %v165
  %v784 = vunpack.c.l.b16 %v166
  %v785 = vunpack.c.h.b16 %v166
  %v786 = vunpack.c.l.b16 %v167
  %v787 = vunpack.c.h.b16 %v167
  %v788 = vunpack.c.l.b16 %v168
  %v789 = vunpack.c.h.b16 %v168
  %v790 = vunpack.c.l.b16 %v169
  %v791 = vunpack.c.h.b16 %v169
  %v792 = vunpack.c.l.b16 %v170
  %v793 = vunpack.c.h.b16 %v170
  %v794 = vunpack.c.l.b16 %v171
  %v795 = vunpack.c.h.b16 %v171
  %v796 = vunpack.c.l.b16 %v172
  %v797 = vunpack.c.h.b16 %v172
  %v798 = vunpack.c.l.b16 %v173
  %v799 = vunpack.c.h.b16 %v173
  %v800 = vunpack.c.l.b16 %v174
  %v801 = vunpack.c.h.b16 %v174
  %v802 = vunpack.c.l.b16 %v175
  %v803 = vunpack.c.h.b16 %v175
  %v804 = vunpack.c.l.b16 %v176
  %v805 = vunpack.c.h.b16 %v176
  %v806 = vunpack.c.l.b16 %v177
  %v807 = vunpack.c.h.b16 %v177
  %v808 = vunpack.c.l.b16 %v178
  %v809 = vunpack.c.h.b16 %v178
  %v810 = vunpack.c.l.b16 %v179
  %v811 = vunpack.c.h.b16 %v179
  %v812 = vunpack.c.l.b16 %v180
  %v813 = vunpack.c.h.b16 %v180
  %v814 = vunpack.c.l.b16 %v181
  %v815 = vunpack.c.h.b16 %v181
  %v816 = vunpack.c.l.b16 %v182
  %v817 = vunpack.c.h.b16 %v182
  %v818 = vunpack.c.l.b16 %v183
  %v819 = vunpack.c.h.b16 %v183
  %v820 = vunpack.c.l.b16 %v184
  %v821 = vunpack.c.h.b16 %v184
  %v822 = vunpack.c.l.b16 %v185
  %v823 = vunpack.c.h.b16 %v185
  %v824 = vunpack.c.l.b16 %v186
  %v825 = vunpack.c.h.b16 %v186
  %v826 = vunpack.c.l.b16 %v187
  %v827 = vunpack.c.h.b16 %v187
  %v828 = vunpack.c.l.b16 %v188
  %v829 = vunpack.c.h.b16 %v188
  %v830 = vunpack.c.l.b16 %v189
  %v831 = vunpack.c.h.b16 %v189
  %v832 = vunpack.c.l.b16 %v190
  %v833 = vunpack.c.h.b16 %v190
  %v834 = vunpack.c.l.b16 %v191
  %v835 = vunpack.c.h.b16 %v191
  %v836 = vunpack.c.l.b16 %v192
  %v837 = vunpack.c.h.b16 %v192
  %v838 = vunpack.c.l.b16 %v193
  %v839 = vunpack.c.h.b16 %v193
  %v840 = vunpack.c.l.b16 %v194
  %v841 = vunpack.c.h.b16 %v194
  %v842 = vunpack.c.l.b16 %v195
  %v843 = vunpack.c.h.b16 %v195
  %v844 = vunpack.c.l.b16 %v196
  %v845 = vunpack.c.h.b16 %v196
  %v846 = vunpack.c.l.b16 %v197
  %v847 = vunpack.c.h.b16 %v197
  %v848 = vunpack.c.l.b16 %v198
  %v849 = vunpack.c.h.b16 %v198
  %v850 = vunpack.c.l.b16 %v199
  %v851 = vunpack.c.h.b16 %v199
  %v852 = vunpack.c.l.b16 %v200
  %v853 = vunpack.c.h.b16 %v200
  %v854 = vunpack.c.l.b16 %v201
  %v855 = vunpack.c.h.b16 %v201
  %v856 = vunpack.c.l.b16 %v202
  %v857 = vunpack.c.h.b16 %v202
  %v858 = vunpack.c.l.b16 %v203
  %v859 = vunpack.c.h.b16 %v203
  %v860 = vunpack.c.l.b16 %v204
  %v861 = vunpack.c.h.b16 %v204
  %v862 = vunpack.c.l.b16 %v205
  %v863 = vunpack.c.h.b16 %v205
  %v864 = vunpack.c.l.b16 %v206
  %v865 = vunpack.c.h.b16 %v206
  %v866 = vunpack.c.l.b16 %v207
  %v867 = vunpack.c.h.b16 %v207
  %v868 = vunpack.c.l.b16 %v208
  %v869 = vunpack.c.h.b16 %v208
  %v870 = vunpack.c.l.b16 %v209
  %v871 = vunpack.c.h.b16 %v209
  %v872 = vunpack.c.l.b16 %v210
  %v873 = vunpack.c.h.b16 %v210
  %v874 = vunpack.c.l.b16 %v211
  %v875 = vunpack.c.h.b16 %v211
  %v876 = vunpack.c.l.b16 %v212
  %v877 = vunpack.c.h.b16 %v212
  %v878 = vunpack.c.l.b16 %v213
  %v879 = vunpack.c.h.b16 %v213
  %v880 = vunpack.c.l.b16 %v214
  %v881 = vunpack.c.h.b16 %v214
  %v882 = vunpack.c.l.b16 %v215
  %v883 = vunpack.c.h.b16 %v215
  %v884 = vunpack.c.l.b16 %v216
  %v885 = vunpack.c.h.b16 %v216
  %v886 = vunpack.c.l.b16 %v217
  %v887 = vunpack.c.h.b16 %v217
  %v888 = vunpack.c.l.b16 %v218
  %v889 = vunpack.c.h.b16 %v218
  %v890 = vunpack.c.l.b16 %v219
  %v891 = vunpack.c.h.b16 %v219
  %v892 = vunpack.c.l.b16 %v220
  %v893 = vunpack.c.h.b16 %v220
  %v894 = vunpack.c.l.b16 %v221
  %v895 = vunpack.c.h.b16 %v221
  %v896 = vunpack.c.l.b16 %v222
  %v897 = vunpack.c.h.b16 %v222
  %v898 = vunpack.c.l.b16 %v223
  %v899 = vunpack.c.h.b16 %v223
  %v900 = vunpack.c.l.b16 %v224
  %v901 = vunpack.c.h.b16 %v224
  %v902 = vunpack.c.l.b16 %v225
  %v903 = vunpack.c.h.b16 %v225
  %v904 = vunpack.c.l.b16 %v226
  %v905 = vunpack.c.h.b16 %v226
  %v906 = vunpack.c.l.b16 %v227
  %v907 = vunpack.c.h.b16 %v227
  %v908 = vunpack.c.l.b16 %v228
  %v909 = vunpack.c.h.b16 %v228
  %v910 = vunpack.c.l.b16 %v229
  %v911 = vunpack.c.h.b16 %v229
  %v912 = vunpack.c.l.b16 %v230
  %v913 = vunpack.c.h.b16 %v230
  %v914 = vunpack.c.l.b16 %v231
  %v915 = vunpack.c.h.b16 %v231
  %v916 = vunpack.c.l.b16 %v232
  %v917 = vunpack.c.h.b16 %v232
  %v918 = vunpack.c.l.b16 %v233
  %v919 = vunpack.c.h.b16 %v233
  %v920 = vunpack.c.l.b16 %v234
  %v921 = vunpack.c.h.b16 %v234
  %v922 = vunpack.c.l.b16 %v235
  %v923 = vunpack.c.h.b16 %v235
  %v924 = vunpack.c.l.b16 %v236
  %v925 = vunpack.c.h.b16 %v236
  %v926 = vunpack.c.l.b16 %v237
  %v927 = vunpack.c.h.b16 %v237
  %v928 = vunpack.c.l.b16 %v238
  %v929 = vunpack.c.h.b16 %v238
  %v930 = vunpack.c.l.b16 %v239
  %v931 = vunpack.c.h.b16 %v239
  %v932 = vunpack.c.l.b16 %v240
  %v933 = vunpack.c.h.b16 %v240
  %v934 = vunpack.c.l.b16 %v241
  %v935 = vunpack.c.h.b16 %v241
  %v936 = vunpack.c.l.b16 %v242
  %v937 = vunpack.c.h.b16 %v242
  %v938 = vunpack.c.l.b16 %v243
  %v939 = vunpack.c.h.b16 %v243
  %v940 = vunpack.c.l.b16 %v244
  %v941 = vunpack.c.h.b16 %v244
  %v942 = vunpack.c.l.b16 %v245
  %v943 = vunpack.c.h.b16 %v245
  %v944 = vunpack.c.l.b16 %v246
  %v945 = vunpack.c.h.b16 %v246
  %v946 = vunpack.c.l.b16 %v247
  %v947 = vunpack.c.h.b16 %v247
  %v948 = vunpack.c.l.b16 %v248
  %v949 = vunpack.c.h.b16 %v248
  %v950 = vunpack.c.l.b16 %v249
  %v951 = vunpack.c.h.b16 %v249
  %v952 = vunpack.c.l.b16 %v250
  %v953 = vunpack.c.h.b16 %v250
  %v954 = vunpack.c.l.b16 %v251
  %v955 = vunpack.c.h.b16 %v251
  %v956 = vunpack.c.l.b16 %v252
  %v957 = vunpack.c.h.b16 %v252
  %v958 = vunpack.c.l.b16 %v253
  %v959 = vunpack.c.h.b16 %v253
  %v960 = vunpack.c.l.b16 %v254
  %v961 = vunpack.c.h.b16 %v254
  %v962 = vunpack.c.l.b16 %v255
  %v963 = vunpack.c.h.b16 %v255
  %v964 = vunpack.c.l.b16 %v256
  %v965 = vunpack.c.h.b16 %v256
  %v966 = vunpack.c.l.b16 %v257
  %v967 = vunpack.c.h.b16 %v257
  %v968 = vunpack.c.l.b16 %v258
  %v969 = vunpack.c.h.b16 %v258
  %v970 = vunpack.c.l.b16 %v259
  %v971 = vunpack.c.h.b16 %v259
  %v972 = vunpack.c.l.b16 %v260
  %v973 = vunpack.c.h.b16 %v260
  %v974 = vunpack.c.l.b16 %v261
  %v975 = vunpack.c.h.b16 %v261
  %v976 = vunpack.c.l.b16 %v262
  %v977 = vunpack.c.h.b16 %v262
  %v978 = vunpack.c.l.b16 %v263
  %v979 = vunpack.c.h.b16 %v263
  %v980 = vunpack.c.l.b16 %v264
  %v981 = vunpack.c.h.b16 %v264
  %v982 = vunpack.c.l.b16 %v265
  %v983 = vunpack.c.h.b16 %v265
  %v984 = vunpack.c.l.b16 %v266
  %v985 = vunpack.c.h.b16 %v266
  %v986 = vpack.c.b16 %v542, %v538
  %v987 = vpack.c.b16 %v543, %v539
  %v988 = vpack.c.b16 %v544, %v540
  %v989 = vpack.c.b16 %v545, %v541
  %v990 = vpack.c.b16 %v550, %v546
  %v991 = vpack.c.b16 %v551, %v547
  %v992 = vpack.c.b16 %v552, %v548
  %v993 = vpack.c.b16 %v553, %v549
  %v994 = vpack.c.b16 %v558, %v554
  %v995 = vpack.c.b16 %v559, %v555
  %v996 = vpack.c.b16 %v560, %v556
  %v997 = vpack.c.b16 %v561, %v557
  %v998 = vpack.c.b16 %v566, %v562
  %v999 = vpack.c.b16 %v567, %v563
  %v1000 = vpack.c.b16 %v568, %v564
  %v1001 = vpack.c.b16 %v569, %v565
  %v1002 = vpack.c.b16 %v574, %v570
  %v1003 = vpack.c.b16 %v575, %v571
  %v1004 = vpack.c.b16 %v576, %v572
  %v1005 = vpack.c.b16 %v577, %v573
  %v1006 = vpack.c.b16 %v582, %v578
  %v1007 = vpack.c.b16 %v583, %v579
  %v1008 = vpack.c.b16 %v584, %v580
  %v1009 = vpack.c.b16 %v585, %v581
  %v1010 = vpack.c.b16 %v590, %v586
  %v1011 = vpack.c.b16 %v591, %v587
  %v1012 = vpack.c.b16 %v592, %v588
  %v1013 = vpack.c.b16 %v593, %v589
  %v1014 = vpack.c.b16 %v598, %v594
  %v1015 = vpack.c.b16 %v599, %v595
  %v1016 = vpack.c.b16 %v600, %v596
  %v1017 = vpack.c.b16 %v601, %v597
  %v1018 = vpack.c.b16 %v606, %v602
  %v1019 = vpack.c.b16 %v607, %v603
  %v1020 = vpack.c.b16 %v608, %v604
  %v1021 = vpack.c.b16 %v609, %v605
  %v1022 = vpack.c.b16 %v614, %v610
  %v1023 = vpack.c.b16 %v615, %v611
  %v1024 = vpack.c.b16 %v616, %v612
  %v1025 = vpack.c.b16 %v617, %v613
  %v1026 = vpack.c.b16 %v622, %v618
  %v1027 = vpack.c.b16 %v623, %v619
  %v1028 = vpack.c.b16 %v624, %v620
  %v1029 = vpack.c.b16 %v625, %v621
  %v1030 = vpack.c.b16 %v630, %v626
  %v1031 = vpack.c.b16 %v631, %v627
  %v1032 = vpack.c.b16 %v632, %v628
  %v1033 = vpack.c.b16 %v633, %v629
  %v1034 = vpack.c.b16 %v638, %v634
  %v1035 = vpack.c.b16 %v639, %v635
  %v1036 = vpack.c.b16 %v640, %v636
  %v1037 = vpack.c.b16 %v641, %v637
  %v1038 = vpack.c.b16 %v646, %v642
  %v1039 = vpack.c.b16 %v647, %v643
  %v1040 = vpack.c.b16 %v648, %v644
  %v1041 = vpack.c.b16 %v649, %v645
  %v1042 = vpack.c.b16 %v654, %v650
  %v1043 = vpack.c.b16 %v655, %v651
  %v1044 = vpack.c.b16 %v656, %v652
  %v1045 = vpack.c.b16 %v657, %v653
  %v1046 = vpack.c.b16 %v662, %v658
  %v1047 = vpack.c.b16 %v663, %v659
  %v1048 = vpack.c.b16 %v664, %v660
  %v1049 = vpack.c.b16 %v665, %v661
  %v1050 = vpack.c.b16 %v670, %v666
  %v1051 = vpack.c.b16 %v671, %v667
  %v1052 = vpack.c.b16 %v672, %v668
  %v1053 = vpack.c.b16 %v673, %v669
  %v1054 = vpack.c.b16 %v678, %v674
  %v1055 = vpack.c.b16 %v679, %v675
  %v1056 = vpack.c.b16 %v680, %v676
  %v1057 = vpack.c.b16 %v681, %v677
  %v1058 = vpack.c.b16 %v686, %v682
  %v1059 = vpack.c.b16 %v687, %v683
  %v1060 = vpack.c.b16 %v688, %v684
  %v1061 = vpack.c.b16 %v689, %v685
  %v1062 = vpack.c.b16 %v694, %v690
  %v1063 = vpack.c.b16 %v695, %v691
  %v1064 = vpack.c.b16 %v696, %v692
  %v1065 = vpack.c.b16 %v697, %v693
  %v1066 = vpack.c.b16 %v702, %v698
  %v1067 = vpack.c.b16 %v703, %v699
  %v1068 = vpack.c.b16 %v704, %v700
  %v1069 = vpack.c.b16 %v705, %v701
  %v1070 = vpack.c.b16 %v710, %v706
  %v1071 = vpack.c.b16 %v711, %v707
  %v1072 = vpack.c.b16 %v712, %v708
  %v1073 = vpack.c.b16 %v713, %v709
  %v1074 = vpack.c.b16 %v718, %v714
  %v1075 = vpack.c.b16 %v719, %v715
  %v1076 = vpack.c.b16 %v720, %v716
  %v1077 = vpack.c.b16 %v721, %v717
  %v1078 = vpack.c.b16 %v726, %v722
  %v1079 = vpack.c.b16 %v727, %v723
  %v1080 = vpack.c.b16 %v728, %v724
  %v1081 = vpack.c.b16 %v729, %v725
  %v1082 = vpack.c.b16 %v734, %v730
  %v1083 = vpack.c.b16 %v735, %v731
  %v1084 = vpack.c.b16 %v736, %v732
  %v1085 = vpack.c.b16 %v737, %v733
  %v1086 = vpack.c.b16 %v742, %v738
  %v1087 = vpack.c.b16 %v743, %v739
  %v1088 = vpack.c.b16 %v744, %v740
  %v1089 = vpack.c.b16 %v745, %v741
  %v1090 = vpack.c.b16 %v750, %v746
  %v1091 = vpack.c.b16 %v751, %v747
  %v1092 = vpack.c.b16 %v752, %v748
  %v1093 = vpack.c.b16 %v753, %v749
  %v1094 = vpack.c.b16 %v758, %v754
  %v1095 = vpack.c.b16 %v759, %v755
  %v1096 = vpack.c.b16 %v760, %v756
  %v1097 = vpack.c.b16 %v761, %v757
  %v1098 = vpack.c.b16 %v766, %v762
  %v1099 = vpack.c.b16 %v767, %v763
  %v1100 = vpack.c.b16 %v768, %v764
  %v1101 = vpack.c.b16 %v769, %v765
  %v1102 = vpack.c.b16 %v774, %v770
  %v1103 = vpack.c.b16 %v775, %v771
  %v1104 = vpack.c.b16 %v776, %v772
  %v1105 = vpack.c.b16 %v777, %v773
  %v1106 = vpack.c.b16 %v782, %v778
  %v1107 = vpack.c.b16 %v783, %v779
  %v1108 = vpack.c.b16 %v784, %v780
  %v1109 = vpack.c.b16 %v785, %v781
  %v1110 = vpack.c.b16 %v790, %v786
  %v1111 = vpack.c.b16 %v791, %v787
  %v1112 = vpack.c.b16 %v792, %v788
  %v1113 = vpack.c.b16 %v793, %v789
  %v1114 = vpack.c.b16 %v798, %v794
  %v1115 = vpack.c.b16 %v799, %v795
  %v1116 = vpack.c.b16 %v800, %v796
  %v1117 = vpack.c.b16 %v801, %v797
  %v1118 = vpack.c.b16 %v806, %v802
  %v1119 = vpack.c.b16 %v807, %v803
  %v1120 = vpack.c.b16 %v808, %v804
  %v1121 = vpack.c.b16 %v809, %v805
  %v1122 = vpack.c.b16 %v814, %v810
  %v1123 = vpack.c.b16 %v815, %v811
  %v1124 = vpack.c.b16 %v816, %v812
  %v1125 = vpack.c.b16 %v817, %v813
  %v1126 = vpack.c.b16 %v822, %v818
  %v1127 = vpack.c.b16 %v823, %v819
  %v1128 = vpack.c.b16 %v824, %v820
  %v1129 = vpack.c.b16 %v825, %v821
  %v1130 = vpack.c.b16 %v830, %v826
  %v1131 = vpack.c.b16 %v831, %v827
  %v1132 = vpack.c.b16 %v832, %v828
  %v1133 = vpack.c.b16 %v833, %v829
  %v1134 = vpack.c.b16 %v838, %v834
  %v1135 = vpack.c.b16 %v839, %v835
  %v1136 = vpack.c.b16 %v840, %v836
  %v1137 = vpack.c.b16 %v841, %v837
  %v1138 = vpack.c.b16 %v846, %v842
  %v1139 = vpack.c.b16 %v847, %v843
  %v1140 = vpack.c.b16 %v848, %v844
  %v1141 = vpack.c.b16 %v849, %v845
  %v1142 = vpack.c.b16 %v854, %v850
  %v1143 = vpack.c.b16 %v855, %v851
  %v1144 = vpack.c.b16 %v856, %v852
  %v1145 = vpack.c.b16 %v857, %v853
  %v1146 = vpack.c.b16 %v862, %v858
  %v1147 = vpack.c.b16 %v863, %v859
  %v1148 = vpack.c.b16 %v864, %v860
  %v1149 = vpack.c.b16 %v865, %v861
  %v1150 = vpack.c.b16 %v870, %v866
  %v1151 = vpack.c.b16 %v871, %v867
  %v1152 = vpack.c.b16 %v872, %v868
  %v1153 = vpack.c.b16 %v873, %v869
  %v1154 = vpack.c.b16 %v878, %v874
  %v1155 = vpack.c.b16 %v879, %v875
  %v1156 = vpack.c.b16 %v880, %v876
  %v1157 = vpack.c.b16 %v881, %v877
  %v1158 = vpack.c.b16 %v886, %v882
  %v1159 = vpack.c.b16 %v887, %v883
  %v1160 = vpack.c.b16 %v888, %v884
  %v1161 = vpack.c.b16 %v889, %v885
  %v1162 = vpack.c.b16 %v894, %v890
  %v1163 = vpack.c.b16 %v895, %v891
  %v1164 = vpack.c.b16 %v896, %v892
  %v1165 = vpack.c.b16 %v897, %v893
  %v1166 = vpack.c.b16 %v902, %v898
  %v1167 = vpack.c.b16 %v903, %v899
  %v1168 = vpack.c.b16 %v904, %v900
  %v1169 = vpack.c.b16 %v905, %v901
  %v1170 = vpack.c.b16 %v910, %v906
  %v1171 = vpack.c.b16 %v911, %v907
  %v1172 = vpack.c.b16 %v912, %v908
  %v1173 = vpack.c.b16 %v913, %v909
  %v1174 = vpack.c.b16 %v918, %v914
  %v1175 = vpack.c.b16 %v919, %v915
  %v1176 = vpack.c.b16 %v920, %v916
  %v1177 = vpack.c.b16 %v921, %v917
  %v1178 = vpack.c.b16 %v926, %v922
  %v1179 = vpack.c.b16 %v927, %v923
  %v1180 = vpack.c.b16 %v928, %v924
  %v1181 = vpack.c.b16 %v929, %v925
  %v1182 = vpack.c.b16 %v934, %v930
  %v1183 = vpack.c.b16 %v935, %v931
  %v1184 = vpack.c.b16 %v936, %v932
  %v1185 = vpack.c.b16 %v937, %v933
  %v1186 = vpack.c.b16 %v942, %v938
  %v1187 = vpack.c.b16 %v943, %v939
  %v1188 = vpack.c.b16 %v944, %v940
  %v1189 = vpack.c.b16 %v945, %v941
  %v1190 = vpack.c.b16 %v950, %v946
  %v1191 = vpack.c.b16 %v951, %v947
  %v1192 = vpack.c.b16 %v952, %v948
  %v1193 = vpack.c.b16 %v953, %v949
  %v1194 = vpack.c.b16 %v958, %v954
  %v1195 = vpack.c.b16 %v959, %v955
  %v1196 = vpack.c.b16 %v960, %v956
  %v1197 = vpack.c.b16 %v961, %v957
  %v1198 = vpack.c.b16 %v966, %v962
  %v1199 = vpack.c.b16 %v967, %v963
  %v1200 = vpack.c.b16 %v968, %v964
  %v1201 = vpack.c.b16 %v969, %v965
  %v1202 = vpack.c.b16 %v974, %v970
  %v1203 = vpack.c.b16 %v975, %v971
  %v1204 = vpack.c.b16 %v976, %v972
  %v1205 = vpack.c.b16 %v977, %v973
  %v1206 = vpack.c.b16 %v982, %v978
  %v1207 = vpack.c.b16 %v983, %v979
  %v1208 = vpack.c.b16 %v984, %v980
  %v1209 = vpack.c.b16 %v985, %v981
  %1434 = vmatprep.subr.bf16.mxu0 %v987
  %1435 = vmatpush1.bf16.msra.mxu0 %v986
  %1436 = vmatprep.subr.bf16.mxu0 %v991
  %1437 = vmatpush1.bf16.msra.mxu0 %v990
  %1438 = vmatprep.subr.bf16.mxu0 %v995
  %1439 = vmatpush1.bf16.msra.mxu0 %v994
  %1440 = vmatprep.subr.bf16.mxu0 %v999
  %1441 = vmatpush1.bf16.msra.mxu0 %v998
  %1442 = vmatprep.subr.bf16.mxu0 %v1003
  %1443 = vmatpush1.bf16.msra.mxu0 %v1002
  %1444 = vmatprep.subr.bf16.mxu0 %v1007
  %1445 = vmatpush1.bf16.msra.mxu0 %v1006
  %1446 = vmatprep.subr.bf16.mxu0 %v1011
  %1447 = vmatpush1.bf16.msra.mxu0 %v1010
  %1448 = vmatprep.subr.bf16.mxu0 %v1015
  %1449 = vmatpush1.bf16.msra.mxu0 %v1014
  %1450 = vmatprep.subr.bf16.mxu0 %v1019
  %1451 = vmatpush1.bf16.msra.mxu0 %v1018
  %1452 = vmatprep.subr.bf16.mxu0 %v1023
  %1453 = vmatpush1.bf16.msra.mxu0 %v1022
  %1454 = vmatprep.subr.bf16.mxu0 %v1027
  %1455 = vmatpush1.bf16.msra.mxu0 %v1026
  %1456 = vmatprep.subr.bf16.mxu0 %v1031
  %1457 = vmatpush1.bf16.msra.mxu0 %v1030
  %1458 = vmatprep.subr.bf16.mxu0 %v1035
  %1459 = vmatpush1.bf16.msra.mxu0 %v1034
  %1460 = vmatprep.subr.bf16.mxu0 %v1039
  %1461 = vmatpush1.bf16.msra.mxu0 %v1038
  %1462 = vmatprep.subr.bf16.mxu0 %v1043
  %1463 = vmatpush1.bf16.msra.mxu0 %v1042
  %1464 = vmatprep.subr.bf16.mxu0 %v1047
  %1465 = vmatpush1.bf16.msra.mxu0 %v1046
  %1466 = vmatprep.mubr.bf16.mxu0 %v301
  %1467 = vmatmul.mubr.bf16.gmra.mrb[0].mxu0 %v300
  %v1468 = vpop.f32.mrb[0].mxu0
  %v1469 = vadd.f32 %v272, %v1468
  %v1470 = vpop.f32.mrb[0].mxu0
  %v1471 = vadd.f32 %v276, %v1470
  %v1472 = vpop.f32.mrb[0].mxu0
  %v1473 = vpop.f32.mrb[0].mxu0
  %1474 = vdwg.mxu0
  %1475 = vmatprep.subr.bf16.mxu0 %v1051
  %1476 = vmatpush1.bf16.msra.mxu0 %v1050
  %1477 = vmatprep.subr.bf16.mxu0 %v1055
  %1478 = vmatpush1.bf16.msra.mxu0 %v1054
  %1479 = vmatprep.subr.bf16.mxu0 %v1059
  %1480 = vmatpush1.bf16.msra.mxu0 %v1058
  %1481 = vmatprep.subr.bf16.mxu0 %v1063
  %1482 = vmatpush1.bf16.msra.mxu0 %v1062
  %1483 = vmatprep.subr.bf16.mxu0 %v1067
  %1484 = vmatpush1.bf16.msra.mxu0 %v1066
  %1485 = vmatprep.subr.bf16.mxu0 %v1071
  %1486 = vmatpush1.bf16.msra.mxu0 %v1070
  %1487 = vmatprep.subr.bf16.mxu0 %v1075
  %1488 = vmatpush1.bf16.msra.mxu0 %v1074
  %1489 = vmatprep.subr.bf16.mxu0 %v1079
  %1490 = vmatpush1.bf16.msra.mxu0 %v1078
  %1491 = vmatprep.subr.bf16.mxu0 %v1083
  %1492 = vmatpush1.bf16.msra.mxu0 %v1082
  %1493 = vmatprep.subr.bf16.mxu0 %v1087
  %1494 = vmatpush1.bf16.msra.mxu0 %v1086
  %1495 = vmatprep.subr.bf16.mxu0 %v1091
  %1496 = vmatpush1.bf16.msra.mxu0 %v1090
  %1497 = vmatprep.subr.bf16.mxu0 %v1095
  %1498 = vmatpush1.bf16.msra.mxu0 %v1094
  %1499 = vmatprep.subr.bf16.mxu0 %v1099
  %1500 = vmatpush1.bf16.msra.mxu0 %v1098
  %1501 = vmatprep.subr.bf16.mxu0 %v1103
  %1502 = vmatpush1.bf16.msra.mxu0 %v1102
  %1503 = vmatprep.subr.bf16.mxu0 %v1107
  %1504 = vmatpush1.bf16.msra.mxu0 %v1106
  %1505 = vmatprep.subr.bf16.mxu0 %v1111
  %1506 = vmatpush1.bf16.msra.mxu0 %v1110
  %1507 = vmatprep.mubr.bf16.mxu0 %v303
  %1508 = vmatmul.mubr.bf16.gmra.mrb[0].mxu0 %v302
  %v1509 = vpop.f32.mrb[0].mxu0
  %v1510 = vadd.f32 %v1469, %v1509
  %v1511 = vpop.f32.mrb[0].mxu0
  %v1512 = vadd.f32 %v1471, %v1511
  %v1513 = vpop.f32.mrb[0].mxu0
  %v1514 = vpop.f32.mrb[0].mxu0
  %1515 = vdwg.mxu0
  %1516 = vmatprep.subr.bf16.mxu0 %v1115
  %1517 = vmatpush1.bf16.msra.mxu0 %v1114
  %1518 = vmatprep.subr.bf16.mxu0 %v1119
  %1519 = vmatpush1.bf16.msra.mxu0 %v1118
  %1520 = vmatprep.subr.bf16.mxu0 %v1123
  %1521 = vmatpush1.bf16.msra.mxu0 %v1122
  %1522 = vmatprep.subr.bf16.mxu0 %v1127
  %1523 = vmatpush1.bf16.msra.mxu0 %v1126
  %1524 = vmatprep.subr.bf16.mxu0 %v1131
  %1525 = vmatpush1.bf16.msra.mxu0 %v1130
  %1526 = vmatprep.subr.bf16.mxu0 %v1135
  %1527 = vmatpush1.bf16.msra.mxu0 %v1134
  %1528 = vmatprep.subr.bf16.mxu0 %v1139
  %1529 = vmatpush1.bf16.msra.mxu0 %v1138
  %1530 = vmatprep.subr.bf16.mxu0 %v1143
  %1531 = vmatpush1.bf16.msra.mxu0 %v1142
  %1532 = vmatprep.subr.bf16.mxu0 %v1147
  %1533 = vmatpush1.bf16.msra.mxu0 %v1146
  %1534 = vmatprep.subr.bf16.mxu0 %v1151
  %1535 = vmatpush1.bf16.msra.mxu0 %v1150
  %1536 = vmatprep.subr.bf16.mxu0 %v1155
  %1537 = vmatpush1.bf16.msra.mxu0 %v1154
  %1538 = vmatprep.subr.bf16.mxu0 %v1159
  %1539 = vmatpush1.bf16.msra.mxu0 %v1158
  %1540 = vmatprep.subr.bf16.mxu0 %v1163
  %1541 = vmatpush1.bf16.msra.mxu0 %v1162
  %1542 = vmatprep.subr.bf16.mxu0 %v1167
  %1543 = vmatpush1.bf16.msra.mxu0 %v1166
  %1544 = vmatprep.subr.bf16.mxu0 %v1171
  %1545 = vmatpush1.bf16.msra.mxu0 %v1170
  %1546 = vmatprep.subr.bf16.mxu0 %v1175
  %1547 = vmatpush1.bf16.msra.mxu0 %v1174
  %1548 = vmatprep.mubr.bf16.mxu0 %v305
  %1549 = vmatmul.mubr.bf16.gmra.mrb[0].mxu0 %v304
  %v1550 = vpop.f32.mrb[0].mxu0
  %v1551 = vadd.f32 %v1510, %v1550
  %v1552 = vpop.f32.mrb[0].mxu0
  %v1553 = vadd.f32 %v1512, %v1552
  %v1554 = vpop.f32.mrb[0].mxu0
  %v1555 = vpop.f32.mrb[0].mxu0
  %1556 = vdwg.mxu0
  %1557 = vmatprep.subr.bf16.mxu0 %v1179
  %1558 = vmatpush1.bf16.msra.mxu0 %v1178
  %1559 = vmatprep.subr.bf16.mxu0 %v1183
  %1560 = vmatpush1.bf16.msra.mxu0 %v1182
  %1561 = vmatprep.subr.bf16.mxu0 %v1187
  %1562 = vmatpush1.bf16.msra.mxu0 %v1186
  %1563 = vmatprep.subr.bf16.mxu0 %v1191
  %1564 = vmatpush1.bf16.msra.mxu0 %v1190
  %1565 = vmatprep.subr.bf16.mxu0 %v1195
  %1566 = vmatpush1.bf16.msra.mxu0 %v1194
  %1567 = vmatprep.subr.bf16.mxu0 %v1199
  %1568 = vmatpush1.bf16.msra.mxu0 %v1198
  %1569 = vmatprep.subr.bf16.mxu0 %v1203
  %1570 = vmatpush1.bf16.msra.mxu0 %v1202
  %1571 = vmatprep.subr.bf16.mxu0 %v1207
  %1572 = vmatpush1.bf16.msra.mxu0 %v1206
  %1573 = vmatprep.subr.bf16.mxu0 0
  %1574 = vmatpush1.bf16.msra.mxu0 0
  %1575 = vmatprep.subr.bf16.mxu0 0
  %1576 = vmatpush1.bf16.msra.mxu0 0
  %1577 = vmatprep.subr.bf16.mxu0 0
  %1578 = vmatpush1.bf16.msra.mxu0 0
  %1579 = vmatprep.subr.bf16.mxu0 0
  %1580 = vmatpush1.bf16.msra.mxu0 0
  %1581 = vmatprep.subr.bf16.mxu0 0
  %1582 = vmatpush1.bf16.msra.mxu0 0
  %1583 = vmatprep.subr.bf16.mxu0 0
  %1584 = vmatpush1.bf16.msra.mxu0 0
  %1585 = vmatprep.subr.bf16.mxu0 0
  %1586 = vmatpush1.bf16.msra.mxu0 0
  %1587 = vmatprep.subr.bf16.mxu0 0
  %1588 = vmatpush1.bf16.msra.mxu0 0
  %1589 = vmatprep.mubr.bf16.mxu0 0
  %1590 = vmatmul.mubr.bf16.gmra.mrb[0].mxu0 %v306
  %v1591 = vpop.f32.mrb[0].mxu0
  %v1592 = vadd.f32 %v1551, %v1591
  %v1593 = vpop.f32.mrb[0].mxu0
  %v1594 = vadd.f32 %v1553, %v1593
  %v1595 = vpop.f32.mrb[0].mxu0
  %v1596 = vpop.f32.mrb[0].mxu0
  %1597 = vdwg.mxu0
  %1598 = vmatprep.subr.bf16.mxu0 %v989
  %1599 = vmatpush1.bf16.msra.mxu0 %v988
  %1600 = vmatprep.subr.bf16.mxu0 %v993
  %1601 = vmatpush1.bf16.msra.mxu0 %v992
  %1602 = vmatprep.subr.bf16.mxu0 %v997
  %1603 = vmatpush1.bf16.msra.mxu0 %v996
  %1604 = vmatprep.subr.bf16.mxu0 %v1001
  %1605 = vmatpush1.bf16.msra.mxu0 %v1000
  %1606 = vmatprep.subr.bf16.mxu0 %v1005
  %1607 = vmatpush1.bf16.msra.mxu0 %v1004
  %1608 = vmatprep.subr.bf16.mxu0 %v1009
  %1609 = vmatpush1.bf16.msra.mxu0 %v1008
  %1610 = vmatprep.subr.bf16.mxu0 %v1013
  %1611 = vmatpush1.bf16.msra.mxu0 %v1012
  %1612 = vmatprep.subr.bf16.mxu0 %v1017
  %1613 = vmatpush1.bf16.msra.mxu0 %v1016
  %1614 = vmatprep.subr.bf16.mxu0 %v1021
  %1615 = vmatpush1.bf16.msra.mxu0 %v1020
  %1616 = vmatprep.subr.bf16.mxu0 %v1025
  %1617 = vmatpush1.bf16.msra.mxu0 %v1024
  %1618 = vmatprep.subr.bf16.mxu0 %v1029
  %1619 = vmatpush1.bf16.msra.mxu0 %v1028
  %1620 = vmatprep.subr.bf16.mxu0 %v1033
  %1621 = vmatpush1.bf16.msra.mxu0 %v1032
  %1622 = vmatprep.subr.bf16.mxu0 %v1037
  %1623 = vmatpush1.bf16.msra.mxu0 %v1036
  %1624 = vmatprep.subr.bf16.mxu0 %v1041
  %1625 = vmatpush1.bf16.msra.mxu0 %v1040
  %1626 = vmatprep.subr.bf16.mxu0 %v1045
  %1627 = vmatpush1.bf16.msra.mxu0 %v1044
  %1628 = vmatprep.subr.bf16.mxu0 %v1049
  %1629 = vmatpush1.bf16.msra.mxu0 %v1048
  %1630 = vmatprep.mubr.bf16.mxu0 %v301
  %1631 = vmatmul.mubr.bf16.gmra.mrb[0].mxu0 %v300
  %v1632 = vpop.f32.mrb[0].mxu0
  %v1633 = vadd.f32 %v280, %v1632
  %v1634 = vpop.f32.mrb[0].mxu0
  %v1635 = vadd.f32 %v284, %v1634
  %v1636 = vpop.f32.mrb[0].mxu0
  %v1637 = vpop.f32.mrb[0].mxu0
  %1638 = vdwg.mxu0
  %1639 = vmatprep.subr.bf16.mxu0 %v1053
  %1640 = vmatpush1.bf16.msra.mxu0 %v1052
  %1641 = vmatprep.subr.bf16.mxu0 %v1057
  %1642 = vmatpush1.bf16.msra.mxu0 %v1056
  %1643 = vmatprep.subr.bf16.mxu0 %v1061
  %1644 = vmatpush1.bf16.msra.mxu0 %v1060
  %1645 = vmatprep.subr.bf16.mxu0 %v1065
  %1646 = vmatpush1.bf16.msra.mxu0 %v1064
  %1647 = vmatprep.subr.bf16.mxu0 %v1069
  %1648 = vmatpush1.bf16.msra.mxu0 %v1068
  %1649 = vmatprep.subr.bf16.mxu0 %v1073
  %1650 = vmatpush1.bf16.msra.mxu0 %v1072
  %1651 = vmatprep.subr.bf16.mxu0 %v1077
  %1652 = vmatpush1.bf16.msra.mxu0 %v1076
  %1653 = vmatprep.subr.bf16.mxu0 %v1081
  %1654 = vmatpush1.bf16.msra.mxu0 %v1080
  %1655 = vmatprep.subr.bf16.mxu0 %v1085
  %1656 = vmatpush1.bf16.msra.mxu0 %v1084
  %1657 = vmatprep.subr.bf16.mxu0 %v1089
  %1658 = vmatpush1.bf16.msra.mxu0 %v1088
  %1659 = vmatprep.subr.bf16.mxu0 %v1093
  %1660 = vmatpush1.bf16.msra.mxu0 %v1092
  %1661 = vmatprep.subr.bf16.mxu0 %v1097
  %1662 = vmatpush1.bf16.msra.mxu0 %v1096
  %1663 = vmatprep.subr.bf16.mxu0 %v1101
  %1664 = vmatpush1.bf16.msra.mxu0 %v1100
  %1665 = vmatprep.subr.bf16.mxu0 %v1105
  %1666 = vmatpush1.bf16.msra.mxu0 %v1104
  %1667 = vmatprep.subr.bf16.mxu0 %v1109
  %1668 = vmatpush1.bf16.msra.mxu0 %v1108
  %1669 = vmatprep.subr.bf16.mxu0 %v1113
  %1670 = vmatpush1.bf16.msra.mxu0 %v1112
  %1671 = vmatprep.mubr.bf16.mxu0 %v303
  %1672 = vmatmul.mubr.bf16.gmra.mrb[0].mxu0 %v302
  %v1673 = vpop.f32.mrb[0].mxu0
  %v1674 = vadd.f32 %v1633, %v1673
  %v1675 = vpop.f32.mrb[0].mxu0
  %v1676 = vadd.f32 %v1635, %v1675
  %v1677 = vpop.f32.mrb[0].mxu0
  %v1678 = vpop.f32.mrb[0].mxu0
  %1679 = vdwg.mxu0
  %1680 = vmatprep.subr.bf16.mxu0 %v1117
  %1681 = vmatpush1.bf16.msra.mxu0 %v1116
  %1682 = vmatprep.subr.bf16.mxu0 %v1121
  %1683 = vmatpush1.bf16.msra.mxu0 %v1120
  %1684 = vmatprep.subr.bf16.mxu0 %v1125
  %1685 = vmatpush1.bf16.msra.mxu0 %v1124
  %1686 = vmatprep.subr.bf16.mxu0 %v1129
  %1687 = vmatpush1.bf16.msra.mxu0 %v1128
  %1688 = vmatprep.subr.bf16.mxu0 %v1133
  %1689 = vmatpush1.bf16.msra.mxu0 %v1132
  %1690 = vmatprep.subr.bf16.mxu0 %v1137
  %1691 = vmatpush1.bf16.msra.mxu0 %v1136
  %1692 = vmatprep.subr.bf16.mxu0 %v1141
  %1693 = vmatpush1.bf16.msra.mxu0 %v1140
  %1694 = vmatprep.subr.bf16.mxu0 %v1145
  %1695 = vmatpush1.bf16.msra.mxu0 %v1144
  %1696 = vmatprep.subr.bf16.mxu0 %v1149
  %1697 = vmatpush1.bf16.msra.mxu0 %v1148
  %1698 = vmatprep.subr.bf16.mxu0 %v1153
  %1699 = vmatpush1.bf16.msra.mxu0 %v1152
  %1700 = vmatprep.subr.bf16.mxu0 %v1157
  %1701 = vmatpush1.bf16.msra.mxu0 %v1156
  %1702 = vmatprep.subr.bf16.mxu0 %v1161
  %1703 = vmatpush1.bf16.msra.mxu0 %v1160
  %1704 = vmatprep.subr.bf16.mxu0 %v1165
  %1705 = vmatpush1.bf16.msra.mxu0 %v1164
  %1706 = vmatprep.subr.bf16.mxu0 %v1169
  %1707 = vmatpush1.bf16.msra.mxu0 %v1168
  %1708 = vmatprep.subr.bf16.mxu0 %v1173
  %1709 = vmatpush1.bf16.msra.mxu0 %v1172
  %1710 = vmatprep.subr.bf16.mxu0 %v1177
  %1711 = vmatpush1.bf16.msra.mxu0 %v1176
  %1712 = vmatprep.mubr.bf16.mxu0 %v305
  %1713 = vmatmul.mubr.bf16.gmra.mrb[0].mxu0 %v304
  %v1714 = vpop.f32.mrb[0].mxu0
  %v1715 = vadd.f32 %v1674, %v1714
  %v1716 = vpop.f32.mrb[0].mxu0
  %v1717 = vadd.f32 %v1676, %v1716
  %v1718 = vpop.f32.mrb[0].mxu0
  %v1719 = vpop.f32.mrb[0].mxu0
  %1720 = vdwg.mxu0
  %1721 = vmatprep.subr.bf16.mxu0 %v1181
  %1722 = vmatpush1.bf16.msra.mxu0 %v1180
  %1723 = vmatprep.subr.bf16.mxu0 %v1185
  %1724 = vmatpush1.bf16.msra.mxu0 %v1184
  %1725 = vmatprep.subr.bf16.mxu0 %v1189
  %1726 = vmatpush1.bf16.msra.mxu0 %v1188
  %1727 = vmatprep.subr.bf16.mxu0 %v1193
  %1728 = vmatpush1.bf16.msra.mxu0 %v1192
  %1729 = vmatprep.subr.bf16.mxu0 %v1197
  %1730 = vmatpush1.bf16.msra.mxu0 %v1196
  %1731 = vmatprep.subr.bf16.mxu0 %v1201
  %1732 = vmatpush1.bf16.msra.mxu0 %v1200
  %1733 = vmatprep.subr.bf16.mxu0 %v1205
  %1734 = vmatpush1.bf16.msra.mxu0 %v1204
  %1735 = vmatprep.subr.bf16.mxu0 %v1209
  %1736 = vmatpush1.bf16.msra.mxu0 %v1208
  %1737 = vmatprep.subr.bf16.mxu0 0
  %1738 = vmatpush1.bf16.msra.mxu0 0
  %1739 = vmatprep.subr.bf16.mxu0 0
  %1740 = vmatpush1.bf16.msra.mxu0 0
  %1741 = vmatprep.subr.bf16.mxu0 0
  %1742 = vmatpush1.bf16.msra.mxu0 0
  %1743 = vmatprep.subr.bf16.mxu0 0
  %1744 = vmatpush1.bf16.msra.mxu0 0
  %1745 = vmatprep.subr.bf16.mxu0 0
  %1746 = vmatpush1.bf16.msra.mxu0 0
  %1747 = vmatprep.subr.bf16.mxu0 0
  %1748 = vmatpush1.bf16.msra.mxu0 0
  %1749 = vmatprep.subr.bf16.mxu0 0
  %1750 = vmatpush1.bf16.msra.mxu0 0
  %1751 = vmatprep.subr.bf16.mxu0 0
  %1752 = vmatpush1.bf16.msra.mxu0 0
  %1753 = vmatprep.mubr.bf16.mxu0 0
  %1754 = vmatmul.mubr.bf16.gmra.mrb[0].mxu0 %v306
  %v1755 = vpop.f32.mrb[0].mxu0
  %v1756 = vadd.f32 %v1715, %v1755
  %v1757 = vpop.f32.mrb[0].mxu0
  %v1758 = vadd.f32 %v1717, %v1757
  %v1759 = vpop.f32.mrb[0].mxu0
  %v1760 = vpop.f32.mrb[0].mxu0
  %1761 = vdwg.mxu0
  %v1762 = vmax.f32 %v1592, 0.0
  %v1763 = vmax.f32 %v1594, 0.0
  %v1764 = vmax.f32 %v1756, 0.0
  %v1765 = vmax.f32 %v1758, 0.0
  %v1766 = vpack.c.bf16 %v1762, %v1762
  %v1767 = vpack.c.bf16 %v1763, %v1763
  %v1768 = vpack.c.bf16 %v1764, %v1764
  %v1769 = vpack.c.bf16 %v1765, %v1765
  %v1770 = vld [vmem:[%s4] sm:$0xff]
  %v1771 = vld [vmem:[%s4 + $0x8] sm:$0xff]
  %v1772 = vld [vmem:[%s4 + $0x10] sm:$0xff]
  %v1773 = vld [vmem:[%s4 + $0x18] sm:$0xff]
  %v1774 = vld [vmem:[%s4 + $0x20] sm:$0xff]
  %v1775 = vld [vmem:[%s4 + $0x28] sm:$0xff]
  %v1776 = vld [vmem:[%s4 + $0x30] sm:$0xff]
  %v1777 = vld [vmem:[%s4 + $0x38] sm:$0xff]
  %v1778 = vld [vmem:[%s4 + $0x40] sm:$0xff]
  %v1779 = vld [vmem:[%s4 + $0x48] sm:$0xff]
  %v1780 = vld [vmem:[%s4 + $0x50] sm:$0xff]
  %v1781 = vld [vmem:[%s4 + $0x58] sm:$0xff]
  %v1782 = vld [vmem:[%s4 + $0x60] sm:$0xff]
  %v1783 = vld [vmem:[%s4 + $0x68] sm:$0xff]
  %v1784 = vld [vmem:[%s4 + $0x70] sm:$0xff]
  %v1785 = vld [vmem:[%s4 + $0x78] sm:$0xff]
  %v1786 = vld [vmem:[%s4 + $0x80] sm:$0xff]
  %v1787 = vld [vmem:[%s4 + $0x88] sm:$0xff]
  %v1788 = vld [vmem:[%s4 + $0x90] sm:$0xff]
  %v1789 = vld [vmem:[%s4 + $0x98] sm:$0xff]
  %v1790 = vld [vmem:[%s4 + $0xa0] sm:$0xff]
  %v1791 = vld [vmem:[%s4 + $0xa8] sm:$0xff]
  %v1792 = vld [vmem:[%s4 + $0xb0] sm:$0xff]
  %v1793 = vld [vmem:[%s4 + $0xb8] sm:$0xff]
  %v1794 = vld [vmem:[%s4 + $0xc0] sm:$0xff]
  %v1795 = vld [vmem:[%s4 + $0xc8] sm:$0xff]
  %v1796 = vld [vmem:[%s4 + $0xd0] sm:$0xff]
  %v1797 = vld [vmem:[%s4 + $0xd8] sm:$0xff]
  %v1798 = vld [vmem:[%s4 + $0xe0] sm:$0xff]
  %v1799 = vld [vmem:[%s4 + $0xe8] sm:$0xff]
  %v1800 = vld [vmem:[%s4 + $0xf0] sm:$0xff]
  %v1801 = vld [vmem:[%s4 + $0xf8] sm:$0xff]
  %v1802 = vld [vmem:[%s4 + $0x100] sm:$0xff]
  %v1803 = vld [vmem:[%s4 + $0x108] sm:$0xff]
  %v1804 = vld [vmem:[%s4 + $0x110] sm:$0xff]
  %v1805 = vld [vmem:[%s4 + $0x118] sm:$0xff]
  %v1806 = vld [vmem:[%s4 + $0x120] sm:$0xff]
  %v1807 = vld [vmem:[%s4 + $0x128] sm:$0xff]
  %v1808 = vld [vmem:[%s4 + $0x130] sm:$0xff]
  %v1809 = vld [vmem:[%s4 + $0x138] sm:$0xff]
  %v1810 = vld [vmem:[%s4 + $0x140] sm:$0xff]
  %v1811 = vld [vmem:[%s4 + $0x148] sm:$0xff]
  %v1812 = vld [vmem:[%s4 + $0x150] sm:$0xff]
  %v1813 = vld [vmem:[%s4 + $0x158] sm:$0xff]
  %v1814 = vld [vmem:[%s4 + $0x160] sm:$0xff]
  %v1815 = vld [vmem:[%s4 + $0x168] sm:$0xff]
  %v1816 = vld [vmem:[%s4 + $0x170] sm:$0xff]
  %v1817 = vld [vmem:[%s4 + $0x178] sm:$0xff]
  %v1818 = vld [vmem:[%s4 + $0x180] sm:$0xff]
  %v1819 = vld [vmem:[%s4 + $0x188] sm:$0xff]
  %v1820 = vld [vmem:[%s4 + $0x190] sm:$0xff]
  %v1821 = vld [vmem:[%s4 + $0x198] sm:$0xff]
  %v1822 = vld [vmem:[%s4 + $0x1a0] sm:$0xff]
  %v1823 = vld [vmem:[%s4 + $0x1a8] sm:$0xff]
  %v1824 = vld [vmem:[%s4 + $0x1b0] sm:$0xff]
  %v1825 = vld [vmem:[%s4 + $0x1b8] sm:$0xff]
  %v1826 = vld [vmem:[%s4 + $0x1c0] sm:$0xff]
  %v1827 = vld [vmem:[%s4 + $0x1c8] sm:$0xff]
  %v1828 = vld [vmem:[%s4 + $0x1d0] sm:$0xff]
  %v1829 = vld [vmem:[%s4 + $0x1d8] sm:$0xff]
  %v1830 = vld [vmem:[%s4 + $0x1e0] sm:$0xff]
  %v1831 = vld [vmem:[%s4 + $0x1e8] sm:$0xff]
  %v1832 = vld [vmem:[%s4 + $0x1f0] sm:$0xff]
  %v1833 = vld [vmem:[%s4 + $0x1f8] sm:$0xff]
  %v1834 = vld [vmem:[%s5] sm:$0x3]
  %v1836 = vlaneseq
  %v1837 = vshrl.u32 %v1836, 7
  %v1838 = vsub.s32 0, %v1837
  %v1839 = vrot.slane %v1834, %v1838
  %v1840 = vlaneseq
  %v1841 = vshrl.u32 %v1840, 7
  %v1842 = vsub.s32 1, %v1841
  %v1843 = vrot.slane %v1834, %v1842
  %v1910 = vunpack.c.l.b16 %v1770
  %v1911 = vunpack.c.h.b16 %v1770
  %v1912 = vunpack.c.l.b16 %v1771
  %v1913 = vunpack.c.h.b16 %v1771
  %v1914 = vunpack.c.l.b16 %v1772
  %v1915 = vunpack.c.h.b16 %v1772
  %v1916 = vunpack.c.l.b16 %v1773
  %v1917 = vunpack.c.h.b16 %v1773
  %v1918 = vunpack.c.l.b16 %v1774
  %v1919 = vunpack.c.h.b16 %v1774
  %v1920 = vunpack.c.l.b16 %v1775
  %v1921 = vunpack.c.h.b16 %v1775
  %v1922 = vunpack.c.l.b16 %v1776
  %v1923 = vunpack.c.h.b16 %v1776
  %v1924 = vunpack.c.l.b16 %v1777
  %v1925 = vunpack.c.h.b16 %v1777
  %v1926 = vunpack.c.l.b16 %v1778
  %v1927 = vunpack.c.h.b16 %v1778
  %v1928 = vunpack.c.l.b16 %v1779
  %v1929 = vunpack.c.h.b16 %v1779
  %v1930 = vunpack.c.l.b16 %v1780
  %v1931 = vunpack.c.h.b16 %v1780
  %v1932 = vunpack.c.l.b16 %v1781
  %v1933 = vunpack.c.h.b16 %v1781
  %v1934 = vunpack.c.l.b16 %v1782
  %v1935 = vunpack.c.h.b16 %v1782
  %v1936 = vunpack.c.l.b16 %v1783
  %v1937 = vunpack.c.h.b16 %v1783
  %v1938 = vunpack.c.l.b16 %v1784
  %v1939 = vunpack.c.h.b16 %v1784
  %v1940 = vunpack.c.l.b16 %v1785
  %v1941 = vunpack.c.h.b16 %v1785
  %v1942 = vunpack.c.l.b16 %v1786
  %v1943 = vunpack.c.h.b16 %v1786
  %v1944 = vunpack.c.l.b16 %v1787
  %v1945 = vunpack.c.h.b16 %v1787
  %v1946 = vunpack.c.l.b16 %v1788
  %v1947 = vunpack.c.h.b16 %v1788
  %v1948 = vunpack.c.l.b16 %v1789
  %v1949 = vunpack.c.h.b16 %v1789
  %v1950 = vunpack.c.l.b16 %v1790
  %v1951 = vunpack.c.h.b16 %v1790
  %v1952 = vunpack.c.l.b16 %v1791
  %v1953 = vunpack.c.h.b16 %v1791
  %v1954 = vunpack.c.l.b16 %v1792
  %v1955 = vunpack.c.h.b16 %v1792
  %v1956 = vunpack.c.l.b16 %v1793
  %v1957 = vunpack.c.h.b16 %v1793
  %v1958 = vunpack.c.l.b16 %v1794
  %v1959 = vunpack.c.h.b16 %v1794
  %v1960 = vunpack.c.l.b16 %v1795
  %v1961 = vunpack.c.h.b16 %v1795
  %v1962 = vunpack.c.l.b16 %v1796
  %v1963 = vunpack.c.h.b16 %v1796
  %v1964 = vunpack.c.l.b16 %v1797
  %v1965 = vunpack.c.h.b16 %v1797
  %v1966 = vunpack.c.l.b16 %v1798
  %v1967 = vunpack.c.h.b16 %v1798
  %v1968 = vunpack.c.l.b16 %v1799
  %v1969 = vunpack.c.h.b16 %v1799
  %v1970 = vunpack.c.l.b16 %v1800
  %v1971 = vunpack.c.h.b16 %v1800
  %v1972 = vunpack.c.l.b16 %v1801
  %v1973 = vunpack.c.h.b16 %v1801
  %v1974 = vunpack.c.l.b16 %v1802
  %v1975 = vunpack.c.h.b16 %v1802
  %v1976 = vunpack.c.l.b16 %v1803
  %v1977 = vunpack.c.h.b16 %v1803
  %v1978 = vunpack.c.l.b16 %v1804
  %v1979 = vunpack.c.h.b16 %v1804
  %v1980 = vunpack.c.l.b16 %v1805
  %v1981 = vunpack.c.h.b16 %v1805
  %v1982 = vunpack.c.l.b16 %v1806
  %v1983 = vunpack.c.h.b16 %v1806
  %v1984 = vunpack.c.l.b16 %v1807
  %v1985 = vunpack.c.h.b16 %v1807
  %v1986 = vunpack.c.l.b16 %v1808
  %v1987 = vunpack.c.h.b16 %v1808
  %v1988 = vunpack.c.l.b16 %v1809
  %v1989 = vunpack.c.h.b16 %v1809
  %v1990 = vunpack.c.l.b16 %v1810
  %v1991 = vunpack.c.h.b16 %v1810
  %v1992 = vunpack.c.l.b16 %v1811
  %v1993 = vunpack.c.h.b16 %v1811
  %v1994 = vunpack.c.l.b16 %v1812
  %v1995 = vunpack.c.h.b16 %v1812
  %v1996 = vunpack.c.l.b16 %v1813
  %v1997 = vunpack.c.h.b16 %v1813
  %v1998 = vunpack.c.l.b16 %v1814
  %v1999 = vunpack.c.h.b16 %v1814
  %v2000 = vunpack.c.l.b16 %v1815
  %v2001 = vunpack.c.h.b16 %v1815
  %v2002 = vunpack.c.l.b16 %v1816
  %v2003 = vunpack.c.h.b16 %v1816
  %v2004 = vunpack.c.l.b16 %v1817
  %v2005 = vunpack.c.h.b16 %v1817
  %v2006 = vunpack.c.l.b16 %v1818
  %v2007 = vunpack.c.h.b16 %v1818
  %v2008 = vunpack.c.l.b16 %v1819
  %v2009 = vunpack.c.h.b16 %v1819
  %v2010 = vunpack.c.l.b16 %v1820
  %v2011 = vunpack.c.h.b16 %v1820
  %v2012 = vunpack.c.l.b16 %v1821
  %v2013 = vunpack.c.h.b16 %v1821
  %v2014 = vunpack.c.l.b16 %v1822
  %v2015 = vunpack.c.h.b16 %v1822
  %v2016 = vunpack.c.l.b16 %v1823
  %v2017 = vunpack.c.h.b16 %v1823
  %v2018 = vunpack.c.l.b16 %v1824
  %v2019 = vunpack.c.h.b16 %v1824
  %v2020 = vunpack.c.l.b16 %v1825
  %v2021 = vunpack.c.h.b16 %v1825
  %v2022 = vunpack.c.l.b16 %v1826
  %v2023 = vunpack.c.h.b16 %v1826
  %v2024 = vunpack.c.l.b16 %v1827
  %v2025 = vunpack.c.h.b16 %v1827
  %v2026 = vunpack.c.l.b16 %v1828
  %v2027 = vunpack.c.h.b16 %v1828
  %v2028 = vunpack.c.l.b16 %v1829
  %v2029 = vunpack.c.h.b16 %v1829
  %v2030 = vunpack.c.l.b16 %v1830
  %v2031 = vunpack.c.h.b16 %v1830
  %v2032 = vunpack.c.l.b16 %v1831
  %v2033 = vunpack.c.h.b16 %v1831
  %v2034 = vunpack.c.l.b16 %v1832
  %v2035 = vunpack.c.h.b16 %v1832
  %v2036 = vunpack.c.l.b16 %v1833
  %v2037 = vunpack.c.h.b16 %v1833
  %v2038 = vpack.c.b16 %v1912, %v1910
  %v2039 = vpack.c.b16 %v1913, %v1911
  %v2040 = vpack.c.b16 %v1916, %v1914
  %v2041 = vpack.c.b16 %v1917, %v1915
  %v2042 = vpack.c.b16 %v1920, %v1918
  %v2043 = vpack.c.b16 %v1921, %v1919
  %v2044 = vpack.c.b16 %v1924, %v1922
  %v2045 = vpack.c.b16 %v1925, %v1923
  %v2046 = vpack.c.b16 %v1928, %v1926
  %v2047 = vpack.c.b16 %v1929, %v1927
  %v2048 = vpack.c.b16 %v1932, %v1930
  %v2049 = vpack.c.b16 %v1933, %v1931
  %v2050 = vpack.c.b16 %v1936, %v1934
  %v2051 = vpack.c.b16 %v1937, %v1935
  %v2052 = vpack.c.b16 %v1940, %v1938
  %v2053 = vpack.c.b16 %v1941, %v1939
  %v2054 = vpack.c.b16 %v1944, %v1942
  %v2055 = vpack.c.b16 %v1945, %v1943
  %v2056 = vpack.c.b16 %v1948, %v1946
  %v2057 = vpack.c.b16 %v1949, %v1947
  %v2058 = vpack.c.b16 %v1952, %v1950
  %v2059 = vpack.c.b16 %v1953, %v1951
  %v2060 = vpack.c.b16 %v1956, %v1954
  %v2061 = vpack.c.b16 %v1957, %v1955
  %v2062 = vpack.c.b16 %v1960, %v1958
  %v2063 = vpack.c.b16 %v1961, %v1959
  %v2064 = vpack.c.b16 %v1964, %v1962
  %v2065 = vpack.c.b16 %v1965, %v1963
  %v2066 = vpack.c.b16 %v1968, %v1966
  %v2067 = vpack.c.b16 %v1969, %v1967
  %v2068 = vpack.c.b16 %v1972, %v1970
  %v2069 = vpack.c.b16 %v1973, %v1971
  %v2070 = vpack.c.b16 %v1976, %v1974
  %v2071 = vpack.c.b16 %v1977, %v1975
  %v2072 = vpack.c.b16 %v1980, %v1978
  %v2073 = vpack.c.b16 %v1981, %v1979
  %v2074 = vpack.c.b16 %v1984, %v1982
  %v2075 = vpack.c.b16 %v1985, %v1983
  %v2076 = vpack.c.b16 %v1988, %v1986
  %v2077 = vpack.c.b16 %v1989, %v1987
  %v2078 = vpack.c.b16 %v1992, %v1990
  %v2079 = vpack.c.b16 %v1993, %v1991
  %v2080 = vpack.c.b16 %v1996, %v1994
  %v2081 = vpack.c.b16 %v1997, %v1995
  %v2082 = vpack.c.b16 %v2000, %v1998
  %v2083 = vpack.c.b16 %v2001, %v1999
  %v2084 = vpack.c.b16 %v2004, %v2002
  %v2085 = vpack.c.b16 %v2005, %v2003
  %v2086 = vpack.c.b16 %v2008, %v2006
  %v2087 = vpack.c.b16 %v2009, %v2007
  %v2088 = vpack.c.b16 %v2012, %v2010
  %v2089 = vpack.c.b16 %v2013, %v2011
  %v2090 = vpack.c.b16 %v2016, %v2014
  %v2091 = vpack.c.b16 %v2017, %v2015
  %v2092 = vpack.c.b16 %v2020, %v2018
  %v2093 = vpack.c.b16 %v2021, %v2019
  %v2094 = vpack.c.b16 %v2024, %v2022
  %v2095 = vpack.c.b16 %v2025, %v2023
  %v2096 = vpack.c.b16 %v2028, %v2026
  %v2097 = vpack.c.b16 %v2029, %v2027
  %v2098 = vpack.c.b16 %v2032, %v2030
  %v2099 = vpack.c.b16 %v2033, %v2031
  %v2100 = vpack.c.b16 %v2036, %v2034
  %v2101 = vpack.c.b16 %v2037, %v2035
  %2166 = vmatprep.subr.bf16.mxu0 %v2039
  %2167 = vmatpush1.bf16.msra.mxu0 %v2038
  %2168 = vmatprep.subr.bf16.mxu0 %v2041
  %2169 = vmatpush1.bf16.msra.mxu0 %v2040
  %2170 = vmatprep.subr.bf16.mxu0 %v2043
  %2171 = vmatpush1.bf16.msra.mxu0 %v2042
  %2172 = vmatprep.subr.bf16.mxu0 %v2045
  %2173 = vmatpush1.bf16.msra.mxu0 %v2044
  %2174 = vmatprep.subr.bf16.mxu0 %v2047
  %2175 = vmatpush1.bf16.msra.mxu0 %v2046
  %2176 = vmatprep.subr.bf16.mxu0 %v2049
  %2177 = vmatpush1.bf16.msra.mxu0 %v2048
  %2178 = vmatprep.subr.bf16.mxu0 %v2051
  %2179 = vmatpush1.bf16.msra.mxu0 %v2050
  %2180 = vmatprep.subr.bf16.mxu0 %v2053
  %2181 = vmatpush1.bf16.msra.mxu0 %v2052
  %2182 = vmatprep.subr.bf16.mxu0 %v2055
  %2183 = vmatpush1.bf16.msra.mxu0 %v2054
  %2184 = vmatprep.subr.bf16.mxu0 %v2057
  %2185 = vmatpush1.bf16.msra.mxu0 %v2056
  %2186 = vmatprep.subr.bf16.mxu0 %v2059
  %2187 = vmatpush1.bf16.msra.mxu0 %v2058
  %2188 = vmatprep.subr.bf16.mxu0 %v2061
  %2189 = vmatpush1.bf16.msra.mxu0 %v2060
  %2190 = vmatprep.subr.bf16.mxu0 %v2063
  %2191 = vmatpush1.bf16.msra.mxu0 %v2062
  %2192 = vmatprep.subr.bf16.mxu0 %v2065
  %2193 = vmatpush1.bf16.msra.mxu0 %v2064
  %2194 = vmatprep.subr.bf16.mxu0 %v2067
  %2195 = vmatpush1.bf16.msra.mxu0 %v2066
  %2196 = vmatprep.subr.bf16.mxu0 %v2069
  %2197 = vmatpush1.bf16.msra.mxu0 %v2068
  %2198 = vmatprep.mubr.bf16.mxu0 %v1767
  %2199 = vmatmul.mubr.bf16.gmra.mrb[0].mxu0 %v1766
  %v2200 = vpop.f32.mrb[0].mxu0
  %v2201 = vadd.f32 %v1839, %v2200
  %v2202 = vpop.f32.mrb[0].mxu0
  %v2203 = vadd.f32 %v1843, %v2202
  %v2204 = vpop.f32.mrb[0].mxu0
  %v2205 = vpop.f32.mrb[0].mxu0
  %2206 = vdwg.mxu0
  %2207 = vmatprep.subr.bf16.mxu0 %v2071
  %2208 = vmatpush1.bf16.msra.mxu0 %v2070
  %2209 = vmatprep.subr.bf16.mxu0 %v2073
  %2210 = vmatpush1.bf16.msra.mxu0 %v2072
  %2211 = vmatprep.subr.bf16.mxu0 %v2075
  %2212 = vmatpush1.bf16.msra.mxu0 %v2074
  %2213 = vmatprep.subr.bf16.mxu0 %v2077
  %2214 = vmatpush1.bf16.msra.mxu0 %v2076
  %2215 = vmatprep.subr.bf16.mxu0 %v2079
  %2216 = vmatpush1.bf16.msra.mxu0 %v2078
  %2217 = vmatprep.subr.bf16.mxu0 %v2081
  %2218 = vmatpush1.bf16.msra.mxu0 %v2080
  %2219 = vmatprep.subr.bf16.mxu0 %v2083
  %2220 = vmatpush1.bf16.msra.mxu0 %v2082
  %2221 = vmatprep.subr.bf16.mxu0 %v2085
  %2222 = vmatpush1.bf16.msra.mxu0 %v2084
  %2223 = vmatprep.subr.bf16.mxu0 %v2087
  %2224 = vmatpush1.bf16.msra.mxu0 %v2086
  %2225 = vmatprep.subr.bf16.mxu0 %v2089
  %2226 = vmatpush1.bf16.msra.mxu0 %v2088
  %2227 = vmatprep.subr.bf16.mxu0 %v2091
  %2228 = vmatpush1.bf16.msra.mxu0 %v2090
  %2229 = vmatprep.subr.bf16.mxu0 %v2093
  %2230 = vmatpush1.bf16.msra.mxu0 %v2092
  %2231 = vmatprep.subr.bf16.mxu0 %v2095
  %2232 = vmatpush1.bf16.msra.mxu0 %v2094
  %2233 = vmatprep.subr.bf16.mxu0 %v2097
  %2234 = vmatpush1.bf16.msra.mxu0 %v2096
  %2235 = vmatprep.subr.bf16.mxu0 %v2099
  %2236 = vmatpush1.bf16.msra.mxu0 %v2098
  %2237 = vmatprep.subr.bf16.mxu0 %v2101
  %2238 = vmatpush1.bf16.msra.mxu0 %v2100
  %2239 = vmatprep.mubr.bf16.mxu0 %v1769
  %2240 = vmatmul.mubr.bf16.gmra.mrb[0].mxu0 %v1768
  %v2241 = vpop.f32.mrb[0].mxu0
  %v2242 = vadd.f32 %v2201, %v2241
  %v2243 = vpop.f32.mrb[0].mxu0
  %v2244 = vadd.f32 %v2203, %v2243
  %v2245 = vpop.f32.mrb[0].mxu0
  %v2246 = vpop.f32.mrb[0].mxu0
  %2247 = vdwg.mxu0
  %v2248 = vmul.f32 %v2244, 0.5
  %v2249 = vmul.f32 %v2248, 1.442695
  %v2250 = vpow.pop %v2249
  %v2251 = vld [vmem:[%s1] sm:$0xff]
  %v2252 = vmul.f32 %v2251, %v2250
  %v2253 = vadd.f32 %v2252, %v2242
  %v2254 = vpack.c.bf16 %v2253, %v2253
  %v2255 = vld [vmem:[%s6] sm:$0xff]
  %v2256 = vld [vmem:[%s6 + $0x8] sm:$0xff]
  %v2257 = vld [vmem:[%s6 + $0x10] sm:$0xff]
  %v2258 = vld [vmem:[%s6 + $0x18] sm:$0xff]
  %v2259 = vld [vmem:[%s6 + $0x20] sm:$0xff]
  %v2260 = vld [vmem:[%s6 + $0x28] sm:$0xff]
  %v2261 = vld [vmem:[%s6 + $0x30] sm:$0xff]
  %v2262 = vld [vmem:[%s6 + $0x38] sm:$0xff]
  %v2263 = vld [vmem:[%s6 + $0x40] sm:$0xff]
  %v2264 = vld [vmem:[%s6 + $0x48] sm:$0xff]
  %v2265 = vld [vmem:[%s6 + $0x50] sm:$0xff]
  %v2266 = vld [vmem:[%s6 + $0x58] sm:$0xff]
  %v2267 = vld [vmem:[%s6 + $0x60] sm:$0xff]
  %v2268 = vld [vmem:[%s6 + $0x68] sm:$0xff]
  %v2269 = vld [vmem:[%s6 + $0x70] sm:$0xff]
  %v2270 = vld [vmem:[%s6 + $0x78] sm:$0xff]
  %v2271 = vld [vmem:[%s6 + $0x80] sm:$0xff]
  %v2272 = vld [vmem:[%s6 + $0x88] sm:$0xff]
  %v2273 = vld [vmem:[%s6 + $0x90] sm:$0xff]
  %v2274 = vld [vmem:[%s6 + $0x98] sm:$0xff]
  %v2275 = vld [vmem:[%s6 + $0xa0] sm:$0xff]
  %v2276 = vld [vmem:[%s6 + $0xa8] sm:$0xff]
  %v2277 = vld [vmem:[%s6 + $0xb0] sm:$0xff]
  %v2278 = vld [vmem:[%s6 + $0xb8] sm:$0xff]
  %v2279 = vld [vmem:[%s6 + $0xc0] sm:$0xff]
  %v2280 = vld [vmem:[%s6 + $0xc8] sm:$0xff]
  %v2281 = vld [vmem:[%s6 + $0xd0] sm:$0xff]
  %v2282 = vld [vmem:[%s6 + $0xd8] sm:$0xff]
  %v2283 = vld [vmem:[%s6 + $0xe0] sm:$0xff]
  %v2284 = vld [vmem:[%s6 + $0xe8] sm:$0xff]
  %v2285 = vld [vmem:[%s6 + $0xf0] sm:$0xff]
  %v2286 = vld [vmem:[%s6 + $0xf8] sm:$0xff]
  %v2287 = vld [vmem:[%s7] sm:$0xf]
  %v2289 = vlaneseq
  %v2290 = vshrl.u32 %v2289, 7
  %v2291 = vsub.s32 0, %v2290
  %v2292 = vrot.slane %v2287, %v2291
  %v2293 = vlaneseq
  %v2294 = vshrl.u32 %v2293, 7
  %v2295 = vsub.s32 1, %v2294
  %v2296 = vrot.slane %v2287, %v2295
  %v2297 = vlaneseq
  %v2298 = vshrl.u32 %v2297, 7
  %v2299 = vsub.s32 2, %v2298
  %v2300 = vrot.slane %v2287, %v2299
  %v2301 = vlaneseq
  %v2302 = vshrl.u32 %v2301, 7
  %v2303 = vsub.s32 3, %v2302
  %v2304 = vrot.slane %v2287, %v2303
  %v2341 = vunpack.c.l.b16 %v2255
  %v2342 = vunpack.c.h.b16 %v2255
  %v2343 = vunpack.c.l.b16 %v2256
  %v2344 = vunpack.c.h.b16 %v2256
  %v2345 = vunpack.c.l.b16 %v2257
  %v2346 = vunpack.c.h.b16 %v2257
  %v2347 = vunpack.c.l.b16 %v2258
  %v2348 = vunpack.c.h.b16 %v2258
  %v2349 = vunpack.c.l.b16 %v2259
  %v2350 = vunpack.c.h.b16 %v2259
  %v2351 = vunpack.c.l.b16 %v2260
  %v2352 = vunpack.c.h.b16 %v2260
  %v2353 = vunpack.c.l.b16 %v2261
  %v2354 = vunpack.c.h.b16 %v2261
  %v2355 = vunpack.c.l.b16 %v2262
  %v2356 = vunpack.c.h.b16 %v2262
  %v2357 = vunpack.c.l.b16 %v2263
  %v2358 = vunpack.c.h.b16 %v2263
  %v2359 = vunpack.c.l.b16 %v2264
  %v2360 = vunpack.c.h.b16 %v2264
  %v2361 = vunpack.c.l.b16 %v2265
  %v2362 = vunpack.c.h.b16 %v2265
  %v2363 = vunpack.c.l.b16 %v2266
  %v2364 = vunpack.c.h.b16 %v2266
  %v2365 = vunpack.c.l.b16 %v2267
  %v2366 = vunpack.c.h.b16 %v2267
  %v2367 = vunpack.c.l.b16 %v2268
  %v2368 = vunpack.c.h.b16 %v2268
  %v2369 = vunpack.c.l.b16 %v2269
  %v2370 = vunpack.c.h.b16 %v2269
  %v2371 = vunpack.c.l.b16 %v2270
  %v2372 = vunpack.c.h.b16 %v2270
  %v2373 = vunpack.c.l.b16 %v2271
  %v2374 = vunpack.c.h.b16 %v2271
  %v2375 = vunpack.c.l.b16 %v2272
  %v2376 = vunpack.c.h.b16 %v2272
  %v2377 = vunpack.c.l.b16 %v2273
  %v2378 = vunpack.c.h.b16 %v2273
  %v2379 = vunpack.c.l.b16 %v2274
  %v2380 = vunpack.c.h.b16 %v2274
  %v2381 = vunpack.c.l.b16 %v2275
  %v2382 = vunpack.c.h.b16 %v2275
  %v2383 = vunpack.c.l.b16 %v2276
  %v2384 = vunpack.c.h.b16 %v2276
  %v2385 = vunpack.c.l.b16 %v2277
  %v2386 = vunpack.c.h.b16 %v2277
  %v2387 = vunpack.c.l.b16 %v2278
  %v2388 = vunpack.c.h.b16 %v2278
  %v2389 = vunpack.c.l.b16 %v2279
  %v2390 = vunpack.c.h.b16 %v2279
  %v2391 = vunpack.c.l.b16 %v2280
  %v2392 = vunpack.c.h.b16 %v2280
  %v2393 = vunpack.c.l.b16 %v2281
  %v2394 = vunpack.c.h.b16 %v2281
  %v2395 = vunpack.c.l.b16 %v2282
  %v2396 = vunpack.c.h.b16 %v2282
  %v2397 = vunpack.c.l.b16 %v2283
  %v2398 = vunpack.c.h.b16 %v2283
  %v2399 = vunpack.c.l.b16 %v2284
  %v2400 = vunpack.c.h.b16 %v2284
  %v2401 = vunpack.c.l.b16 %v2285
  %v2402 = vunpack.c.h.b16 %v2285
  %v2403 = vunpack.c.l.b16 %v2286
  %v2404 = vunpack.c.h.b16 %v2286
  %v2405 = vpack.c.b16 %v2345, %v2341
  %v2406 = vpack.c.b16 %v2346, %v2342
  %v2407 = vpack.c.b16 %v2347, %v2343
  %v2408 = vpack.c.b16 %v2348, %v2344
  %v2409 = vpack.c.b16 %v2353, %v2349
  %v2410 = vpack.c.b16 %v2354, %v2350
  %v2411 = vpack.c.b16 %v2355, %v2351
  %v2412 = vpack.c.b16 %v2356, %v2352
  %v2413 = vpack.c.b16 %v2361, %v2357
  %v2414 = vpack.c.b16 %v2362, %v2358
  %v2415 = vpack.c.b16 %v2363, %v2359
  %v2416 = vpack.c.b16 %v2364, %v2360
  %v2417 = vpack.c.b16 %v2369, %v2365
  %v2418 = vpack.c.b16 %v2370, %v2366
  %v2419 = vpack.c.b16 %v2371, %v2367
  %v2420 = vpack.c.b16 %v2372, %v2368
  %v2421 = vpack.c.b16 %v2377, %v2373
  %v2422 = vpack.c.b16 %v2378, %v2374
  %v2423 = vpack.c.b16 %v2379, %v2375
  %v2424 = vpack.c.b16 %v2380, %v2376
  %v2425 = vpack.c.b16 %v2385, %v2381
  %v2426 = vpack.c.b16 %v2386, %v2382
  %v2427 = vpack.c.b16 %v2387, %v2383
  %v2428 = vpack.c.b16 %v2388, %v2384
  %v2429 = vpack.c.b16 %v2393, %v2389
  %v2430 = vpack.c.b16 %v2394, %v2390
  %v2431 = vpack.c.b16 %v2395, %v2391
  %v2432 = vpack.c.b16 %v2396, %v2392
  %v2433 = vpack.c.b16 %v2401, %v2397
  %v2434 = vpack.c.b16 %v2402, %v2398
  %v2435 = vpack.c.b16 %v2403, %v2399
  %v2436 = vpack.c.b16 %v2404, %v2400
  %2469 = vmatprep.subr.bf16.mxu0 %v2406
  %2470 = vmatpush1.bf16.msra.mxu0 %v2405
  %2471 = vmatprep.subr.bf16.mxu0 %v2410
  %2472 = vmatpush1.bf16.msra.mxu0 %v2409
  %2473 = vmatprep.subr.bf16.mxu0 %v2414
  %2474 = vmatpush1.bf16.msra.mxu0 %v2413
  %2475 = vmatprep.subr.bf16.mxu0 %v2418
  %2476 = vmatpush1.bf16.msra.mxu0 %v2417
  %2477 = vmatprep.subr.bf16.mxu0 %v2422
  %2478 = vmatpush1.bf16.msra.mxu0 %v2421
  %2479 = vmatprep.subr.bf16.mxu0 %v2426
  %2480 = vmatpush1.bf16.msra.mxu0 %v2425
  %2481 = vmatprep.subr.bf16.mxu0 %v2430
  %2482 = vmatpush1.bf16.msra.mxu0 %v2429
  %2483 = vmatprep.subr.bf16.mxu0 %v2434
  %2484 = vmatpush1.bf16.msra.mxu0 %v2433
  %2485 = vmatprep.subr.bf16.mxu0 0
  %2486 = vmatpush1.bf16.msra.mxu0 0
  %2487 = vmatprep.subr.bf16.mxu0 0
  %2488 = vmatpush1.bf16.msra.mxu0 0
  %2489 = vmatprep.subr.bf16.mxu0 0
  %2490 = vmatpush1.bf16.msra.mxu0 0
  %2491 = vmatprep.subr.bf16.mxu0 0
  %2492 = vmatpush1.bf16.msra.mxu0 0
  %2493 = vmatprep.subr.bf16.mxu0 0
  %2494 = vmatpush1.bf16.msra.mxu0 0
  %2495 = vmatprep.subr.bf16.mxu0 0
  %2496 = vmatpush1.bf16.msra.mxu0 0
  %2497 = vmatprep.subr.bf16.mxu0 0
  %2498 = vmatpush1.bf16.msra.mxu0 0
  %2499 = vmatprep.subr.bf16.mxu0 0
  %2500 = vmatpush1.bf16.msra.mxu0 0
  %2501 = vmatprep.mubr.bf16.mxu0 0
  %2502 = vmatmul.mubr.bf16.gmra.mrb[0].mxu0 %v2254
  %v2503 = vpop.f32.mrb[0].mxu0
  %v2504 = vadd.f32 %v2292, %v2503
  %v2505 = vpop.f32.mrb[0].mxu0
  %v2506 = vadd.f32 %v2296, %v2505
  %v2507 = vpop.f32.mrb[0].mxu0
  %v2508 = vpop.f32.mrb[0].mxu0
  %2509 = vdwg.mxu0
  %2510 = vmatprep.subr.bf16.mxu0 %v2408
  %2511 = vmatpush1.bf16.msra.mxu0 %v2407
  %2512 = vmatprep.subr.bf16.mxu0 %v2412
  %2513 = vmatpush1.bf16.msra.mxu0 %v2411
  %2514 = vmatprep.subr.bf16.mxu0 %v2416
  %2515 = vmatpush1.bf16.msra.mxu0 %v2415
  %2516 = vmatprep.subr.bf16.mxu0 %v2420
  %2517 = vmatpush1.bf16.msra.mxu0 %v2419
  %2518 = vmatprep.subr.bf16.mxu0 %v2424
  %2519 = vmatpush1.bf16.msra.mxu0 %v2423
  %2520 = vmatprep.subr.bf16.mxu0 %v2428
  %2521 = vmatpush1.bf16.msra.mxu0 %v2427
  %2522 = vmatprep.subr.bf16.mxu0 %v2432
  %2523 = vmatpush1.bf16.msra.mxu0 %v2431
  %2524 = vmatprep.subr.bf16.mxu0 %v2436
  %2525 = vmatpush1.bf16.msra.mxu0 %v2435
  %2526 = vmatprep.subr.bf16.mxu0 0
  %2527 = vmatpush1.bf16.msra.mxu0 0
  %2528 = vmatprep.subr.bf16.mxu0 0
  %2529 = vmatpush1.bf16.msra.mxu0 0
  %2530 = vmatprep.subr.bf16.mxu0 0
  %2531 = vmatpush1.bf16.msra.mxu0 0
  %2532 = vmatprep.subr.bf16.mxu0 0
  %2533 = vmatpush1.bf16.msra.mxu0 0
  %2534 = vmatprep.subr.bf16.mxu0 0
  %2535 = vmatpush1.bf16.msra.mxu0 0
  %2536 = vmatprep.subr.bf16.mxu0 0
  %2537 = vmatpush1.bf16.msra.mxu0 0
  %2538 = vmatprep.subr.bf16.mxu0 0
  %2539 = vmatpush1.bf16.msra.mxu0 0
  %2540 = vmatprep.subr.bf16.mxu0 0
  %2541 = vmatpush1.bf16.msra.mxu0 0
  %2542 = vmatprep.mubr.bf16.mxu0 0
  %2543 = vmatmul.mubr.bf16.gmra.mrb[0].mxu0 %v2254
  %v2544 = vpop.f32.mrb[0].mxu0
  %v2545 = vadd.f32 %v2300, %v2544
  %v2546 = vpop.f32.mrb[0].mxu0
  %v2547 = vadd.f32 %v2304, %v2546
  %v2548 = vpop.f32.mrb[0].mxu0
  %v2549 = vpop.f32.mrb[0].mxu0
  %2550 = vdwg.mxu0
  %v2551 = vmax.f32 %v2504, 0.0
  %v2552 = vmax.f32 %v2506, 0.0
  %v2553 = vmax.f32 %v2545, 0.0
  %v2554 = vmax.f32 %v2547, 0.0
  %v2555 = vpack.c.bf16 %v2551, %v2551
  %v2556 = vpack.c.bf16 %v2552, %v2552
  %v2557 = vpack.c.bf16 %v2553, %v2553
  %v2558 = vpack.c.bf16 %v2554, %v2554
  %v2559 = vld [vmem:[%s8] sm:$0xff]
  %v2560 = vld [vmem:[%s8 + $0x8] sm:$0xff]
  %v2561 = vld [vmem:[%s8 + $0x10] sm:$0xff]
  %v2562 = vld [vmem:[%s8 + $0x18] sm:$0xf]
  %v2563 = vld [vmem:[%s8 + $0x1c] sm:$0xff]
  %v2564 = vld [vmem:[%s8 + $0x24] sm:$0xff]
  %v2565 = vld [vmem:[%s8 + $0x2c] sm:$0xff]
  %v2566 = vld [vmem:[%s8 + $0x34] sm:$0xf]
  %v2567 = vld [vmem:[%s8 + $0x38] sm:$0xff]
  %v2568 = vld [vmem:[%s8 + $0x40] sm:$0xff]
  %v2569 = vld [vmem:[%s8 + $0x48] sm:$0xff]
  %v2570 = vld [vmem:[%s8 + $0x50] sm:$0xf]
  %v2571 = vld [vmem:[%s8 + $0x54] sm:$0xff]
  %v2572 = vld [vmem:[%s8 + $0x5c] sm:$0xff]
  %v2573 = vld [vmem:[%s8 + $0x64] sm:$0xff]
  %v2574 = vld [vmem:[%s8 + $0x6c] sm:$0xf]
  %v2575 = vld [vmem:[%s8 + $0x70] sm:$0xff]
  %v2576 = vld [vmem:[%s8 + $0x78] sm:$0xff]
  %v2577 = vld [vmem:[%s8 + $0x80] sm:$0xff]
  %v2578 = vld [vmem:[%s8 + $0x88] sm:$0xf]
  %v2579 = vld [vmem:[%s8 + $0x8c] sm:$0xff]
  %v2580 = vld [vmem:[%s8 + $0x94] sm:$0xff]
  %v2581 = vld [vmem:[%s8 + $0x9c] sm:$0xff]
  %v2582 = vld [vmem:[%s8 + $0xa4] sm:$0xf]
  %v2583 = vld [vmem:[%s8 + $0xa8] sm:$0xff]
  %v2584 = vld [vmem:[%s8 + $0xb0] sm:$0xff]
  %v2585 = vld [vmem:[%s8 + $0xb8] sm:$0xff]
  %v2586 = vld [vmem:[%s8 + $0xc0] sm:$0xf]
  %v2587 = vld [vmem:[%s8 + $0xc4] sm:$0xff]
  %v2588 = vld [vmem:[%s8 + $0xcc] sm:$0xff]
  %v2589 = vld [vmem:[%s8 + $0xd4] sm:$0xff]
  %v2590 = vld [vmem:[%s8 + $0xdc] sm:$0xf]
  %v2591 = vld [vmem:[%s8 + $0xe0] sm:$0xff]
  %v2592 = vld [vmem:[%s8 + $0xe8] sm:$0xff]
  %v2593 = vld [vmem:[%s8 + $0xf0] sm:$0xff]
  %v2594 = vld [vmem:[%s8 + $0xf8] sm:$0xf]
  %v2595 = vld [vmem:[%s8 + $0xfc] sm:$0xff]
  %v2596 = vld [vmem:[%s8 + $0x104] sm:$0xff]
  %v2597 = vld [vmem:[%s8 + $0x10c] sm:$0xff]
  %v2598 = vld [vmem:[%s8 + $0x114] sm:$0xf]
  %v2599 = vld [vmem:[%s8 + $0x118] sm:$0xff]
  %v2600 = vld [vmem:[%s8 + $0x120] sm:$0xff]
  %v2601 = vld [vmem:[%s8 + $0x128] sm:$0xff]
  %v2602 = vld [vmem:[%s8 + $0x130] sm:$0xf]
  %v2603 = vld [vmem:[%s8 + $0x134] sm:$0xff]
  %v2604 = vld [vmem:[%s8 + $0x13c] sm:$0xff]
  %v2605 = vld [vmem:[%s8 + $0x144] sm:$0xff]
  %v2606 = vld [vmem:[%s8 + $0x14c] sm:$0xf]
  %v2607 = vld [vmem:[%s8 + $0x150] sm:$0xff]
  %v2608 = vld [vmem:[%s8 + $0x158] sm:$0xff]
  %v2609 = vld [vmem:[%s8 + $0x160] sm:$0xff]
  %v2610 = vld [vmem:[%s8 + $0x168] sm:$0xf]
  %v2611 = vld [vmem:[%s8 + $0x16c] sm:$0xff]
  %v2612 = vld [vmem:[%s8 + $0x174] sm:$0xff]
  %v2613 = vld [vmem:[%s8 + $0x17c] sm:$0xff]
  %v2614 = vld [vmem:[%s8 + $0x184] sm:$0xf]
  %v2615 = vld [vmem:[%s8 + $0x188] sm:$0xff]
  %v2616 = vld [vmem:[%s8 + $0x190] sm:$0xff]
  %v2617 = vld [vmem:[%s8 + $0x198] sm:$0xff]
  %v2618 = vld [vmem:[%s8 + $0x1a0] sm:$0xf]
  %v2619 = vld [vmem:[%s8 + $0x1a4] sm:$0xff]
  %v2620 = vld [vmem:[%s8 + $0x1ac] sm:$0xff]
  %v2621 = vld [vmem:[%s8 + $0x1b4] sm:$0xff]
  %v2622 = vld [vmem:[%s8 + $0x1bc] sm:$0xf]
  %v2623 = vld [vmem:[%s8 + $0x1c0] sm:$0xff]
  %v2624 = vld [vmem:[%s8 + $0x1c8] sm:$0xff]
  %v2625 = vld [vmem:[%s8 + $0x1d0] sm:$0xff]
  %v2626 = vld [vmem:[%s8 + $0x1d8] sm:$0xf]
  %v2627 = vld [vmem:[%s8 + $0x1dc] sm:$0xff]
  %v2628 = vld [vmem:[%s8 + $0x1e4] sm:$0xff]
  %v2629 = vld [vmem:[%s8 + $0x1ec] sm:$0xff]
  %v2630 = vld [vmem:[%s8 + $0x1f4] sm:$0xf]
  %v2631 = vld [vmem:[%s8 + $0x1f8] sm:$0xff]
  %v2632 = vld [vmem:[%s8 + $0x200] sm:$0xff]
  %v2633 = vld [vmem:[%s8 + $0x208] sm:$0xff]
  %v2634 = vld [vmem:[%s8 + $0x210] sm:$0xf]
  %v2635 = vld [vmem:[%s8 + $0x214] sm:$0xff]
  %v2636 = vld [vmem:[%s8 + $0x21c] sm:$0xff]
  %v2637 = vld [vmem:[%s8 + $0x224] sm:$0xff]
  %v2638 = vld [vmem:[%s8 + $0x22c] sm:$0xf]
  %v2639 = vld [vmem:[%s8 + $0x230] sm:$0xff]
  %v2640 = vld [vmem:[%s8 + $0x238] sm:$0xff]
  %v2641 = vld [vmem:[%s8 + $0x240] sm:$0xff]
  %v2642 = vld [vmem:[%s8 + $0x248] sm:$0xf]
  %v2643 = vld [vmem:[%s8 + $0x24c] sm:$0xff]
  %v2644 = vld [vmem:[%s8 + $0x254] sm:$0xff]
  %v2645 = vld [vmem:[%s8 + $0x25c] sm:$0xff]
  %v2646 = vld [vmem:[%s8 + $0x264] sm:$0xf]
  %v2647 = vld [vmem:[%s8 + $0x268] sm:$0xff]
  %v2648 = vld [vmem:[%s8 + $0x270] sm:$0xff]
  %v2649 = vld [vmem:[%s8 + $0x278] sm:$0xff]
  %v2650 = vld [vmem:[%s8 + $0x280] sm:$0xf]
  %v2651 = vld [vmem:[%s8 + $0x284] sm:$0xff]
  %v2652 = vld [vmem:[%s8 + $0x28c] sm:$0xff]
  %v2653 = vld [vmem:[%s8 + $0x294] sm:$0xff]
  %v2654 = vld [vmem:[%s8 + $0x29c] sm:$0xf]
  %v2655 = vld [vmem:[%s8 + $0x2a0] sm:$0xff]
  %v2656 = vld [vmem:[%s8 + $0x2a8] sm:$0xff]
  %v2657 = vld [vmem:[%s8 + $0x2b0] sm:$0xff]
  %v2658 = vld [vmem:[%s8 + $0x2b8] sm:$0xf]
  %v2659 = vld [vmem:[%s8 + $0x2bc] sm:$0xff]
  %v2660 = vld [vmem:[%s8 + $0x2c4] sm:$0xff]
  %v2661 = vld [vmem:[%s8 + $0x2cc] sm:$0xff]
  %v2662 = vld [vmem:[%s8 + $0x2d4] sm:$0xf]
  %v2663 = vld [vmem:[%s8 + $0x2d8] sm:$0xff]
  %v2664 = vld [vmem:[%s8 + $0x2e0] sm:$0xff]
  %v2665 = vld [vmem:[%s8 + $0x2e8] sm:$0xff]
  %v2666 = vld [vmem:[%s8 + $0x2f0] sm:$0xf]
  %v2667 = vld [vmem:[%s8 + $0x2f4] sm:$0xff]
  %v2668 = vld [vmem:[%s8 + $0x2fc] sm:$0xff]
  %v2669 = vld [vmem:[%s8 + $0x304] sm:$0xff]
  %v2670 = vld [vmem:[%s8 + $0x30c] sm:$0xf]
  %v2671 = vld [vmem:[%s8 + $0x310] sm:$0xff]
  %v2672 = vld [vmem:[%s8 + $0x318] sm:$0xff]
  %v2673 = vld [vmem:[%s8 + $0x320] sm:$0xff]
  %v2674 = vld [vmem:[%s8 + $0x328] sm:$0xf]
  %v2675 = vld [vmem:[%s8 + $0x32c] sm:$0xff]
  %v2676 = vld [vmem:[%s8 + $0x334] sm:$0xff]
  %v2677 = vld [vmem:[%s8 + $0x33c] sm:$0xff]
  %v2678 = vld [vmem:[%s8 + $0x344] sm:$0xf]
  %v2679 = vld [vmem:[%s8 + $0x348] sm:$0xff]
  %v2680 = vld [vmem:[%s8 + $0x350] sm:$0xff]
  %v2681 = vld [vmem:[%s8 + $0x358] sm:$0xff]
  %v2682 = vld [vmem:[%s8 + $0x360] sm:$0xf]
  %v2683 = vld [vmem:[%s8 + $0x364] sm:$0xff]
  %v2684 = vld [vmem:[%s8 + $0x36c] sm:$0xff]
  %v2685 = vld [vmem:[%s8 + $0x374] sm:$0xff]
  %v2686 = vld [vmem:[%s8 + $0x37c] sm:$0xf]
  %v2687 = vld [vmem:[%s8 + $0x380] sm:$0xff]
  %v2688 = vld [vmem:[%s8 + $0x388] sm:$0xff]
  %v2689 = vld [vmem:[%s8 + $0x390] sm:$0xff]
  %v2690 = vld [vmem:[%s8 + $0x398] sm:$0xf]
  %v2691 = vld [vmem:[%s8 + $0x39c] sm:$0xff]
  %v2692 = vld [vmem:[%s8 + $0x3a4] sm:$0xff]
  %v2693 = vld [vmem:[%s8 + $0x3ac] sm:$0xff]
  %v2694 = vld [vmem:[%s8 + $0x3b4] sm:$0xf]
  %v2695 = vld [vmem:[%s8 + $0x3b8] sm:$0xff]
  %v2696 = vld [vmem:[%s8 + $0x3c0] sm:$0xff]
  %v2697 = vld [vmem:[%s8 + $0x3c8] sm:$0xff]
  %v2698 = vld [vmem:[%s8 + $0x3d0] sm:$0xf]
  %v2699 = vld [vmem:[%s8 + $0x3d4] sm:$0xff]
  %v2700 = vld [vmem:[%s8 + $0x3dc] sm:$0xff]
  %v2701 = vld [vmem:[%s8 + $0x3e4] sm:$0xff]
  %v2702 = vld [vmem:[%s8 + $0x3ec] sm:$0xf]
  %v2703 = vld [vmem:[%s8 + $0x3f0] sm:$0xff]
  %v2704 = vld [vmem:[%s8 + $0x3f8] sm:$0xff]
  %v2705 = vld [vmem:[%s8 + $0x400] sm:$0xff]
  %v2706 = vld [vmem:[%s8 + $0x408] sm:$0xf]
  %v2707 = vld [vmem:[%s8 + $0x40c] sm:$0xff]
  %v2708 = vld [vmem:[%s8 + $0x414] sm:$0xff]
  %v2709 = vld [vmem:[%s8 + $0x41c] sm:$0xff]
  %v2710 = vld [vmem:[%s8 + $0x424] sm:$0xf]
  %v2711 = vld [vmem:[%s8 + $0x428] sm:$0xff]
  %v2712 = vld [vmem:[%s8 + $0x430] sm:$0xff]
  %v2713 = vld [vmem:[%s8 + $0x438] sm:$0xff]
  %v2714 = vld [vmem:[%s8 + $0x440] sm:$0xf]
  %v2715 = vld [vmem:[%s8 + $0x444] sm:$0xff]
  %v2716 = vld [vmem:[%s8 + $0x44c] sm:$0xff]
  %v2717 = vld [vmem:[%s8 + $0x454] sm:$0xff]
  %v2718 = vld [vmem:[%s8 + $0x45c] sm:$0xf]
  %v2719 = vld [vmem:[%s8 + $0x460] sm:$0xff]
  %v2720 = vld [vmem:[%s8 + $0x468] sm:$0xff]
  %v2721 = vld [vmem:[%s8 + $0x470] sm:$0xff]
  %v2722 = vld [vmem:[%s8 + $0x478] sm:$0xf]
  %v2723 = vld [vmem:[%s8 + $0x47c] sm:$0xff]
  %v2724 = vld [vmem:[%s8 + $0x484] sm:$0xff]
  %v2725 = vld [vmem:[%s8 + $0x48c] sm:$0xff]
  %v2726 = vld [vmem:[%s8 + $0x494] sm:$0xf]
  %v2727 = vld [vmem:[%s8 + $0x498] sm:$0xff]
  %v2728 = vld [vmem:[%s8 + $0x4a0] sm:$0xff]
  %v2729 = vld [vmem:[%s8 + $0x4a8] sm:$0xff]
  %v2730 = vld [vmem:[%s8 + $0x4b0] sm:$0xf]
  %v2731 = vld [vmem:[%s8 + $0x4b4] sm:$0xff]
  %v2732 = vld [vmem:[%s8 + $0x4bc] sm:$0xff]
  %v2733 = vld [vmem:[%s8 + $0x4c4] sm:$0xff]
  %v2734 = vld [vmem:[%s8 + $0x4cc] sm:$0xf]
  %v2735 = vld [vmem:[%s8 + $0x4d0] sm:$0xff]
  %v2736 = vld [vmem:[%s8 + $0x4d8] sm:$0xff]
  %v2737 = vld [vmem:[%s8 + $0x4e0] sm:$0xff]
  %v2738 = vld [vmem:[%s8 + $0x4e8] sm:$0xf]
  %v2739 = vld [vmem:[%s8 + $0x4ec] sm:$0xff]
  %v2740 = vld [vmem:[%s8 + $0x4f4] sm:$0xff]
  %v2741 = vld [vmem:[%s8 + $0x4fc] sm:$0xff]
  %v2742 = vld [vmem:[%s8 + $0x504] sm:$0xf]
  %v2743 = vld [vmem:[%s8 + $0x508] sm:$0xff]
  %v2744 = vld [vmem:[%s8 + $0x510] sm:$0xff]
  %v2745 = vld [vmem:[%s8 + $0x518] sm:$0xff]
  %v2746 = vld [vmem:[%s8 + $0x520] sm:$0xf]
  %v2747 = vld [vmem:[%s8 + $0x524] sm:$0xff]
  %v2748 = vld [vmem:[%s8 + $0x52c] sm:$0xff]
  %v2749 = vld [vmem:[%s8 + $0x534] sm:$0xff]
  %v2750 = vld [vmem:[%s8 + $0x53c] sm:$0xf]
  %v2751 = vld [vmem:[%s8 + $0x540] sm:$0xff]
  %v2752 = vld [vmem:[%s8 + $0x548] sm:$0xff]
  %v2753 = vld [vmem:[%s8 + $0x550] sm:$0xff]
  %v2754 = vld [vmem:[%s8 + $0x558] sm:$0xf]
  %v2755 = vld [vmem:[%s8 + $0x55c] sm:$0xff]
  %v2756 = vld [vmem:[%s8 + $0x564] sm:$0xff]
  %v2757 = vld [vmem:[%s8 + $0x56c] sm:$0xff]
  %v2758 = vld [vmem:[%s8 + $0x574] sm:$0xf]
  %v2759 = vld [vmem:[%s8 + $0x578] sm:$0xff]
  %v2760 = vld [vmem:[%s8 + $0x580] sm:$0xff]
  %v2761 = vld [vmem:[%s8 + $0x588] sm:$0xff]
  %v2762 = vld [vmem:[%s8 + $0x590] sm:$0xf]
  %v2763 = vld [vmem:[%s8 + $0x594] sm:$0xff]
  %v2764 = vld [vmem:[%s8 + $0x59c] sm:$0xff]
  %v2765 = vld [vmem:[%s8 + $0x5a4] sm:$0xff]
  %v2766 = vld [vmem:[%s8 + $0x5ac] sm:$0xf]
  %v2767 = vld [vmem:[%s8 + $0x5b0] sm:$0xff]
  %v2768 = vld [vmem:[%s8 + $0x5b8] sm:$0xff]
  %v2769 = vld [vmem:[%s8 + $0x5c0] sm:$0xff]
  %v2770 = vld [vmem:[%s8 + $0x5c8] sm:$0xf]
  %v2771 = vld [vmem:[%s8 + $0x5cc] sm:$0xff]
  %v2772 = vld [vmem:[%s8 + $0x5d4] sm:$0xff]
  %v2773 = vld [vmem:[%s8 + $0x5dc] sm:$0xff]
  %v2774 = vld [vmem:[%s8 + $0x5e4] sm:$0xf]
  %v2775 = vld [vmem:[%s8 + $0x5e8] sm:$0xff]
  %v2776 = vld [vmem:[%s8 + $0x5f0] sm:$0xff]
  %v2777 = vld [vmem:[%s8 + $0x5f8] sm:$0xff]
  %v2778 = vld [vmem:[%s8 + $0x600] sm:$0xf]
  %v2779 = vld [vmem:[%s8 + $0x604] sm:$0xff]
  %v2780 = vld [vmem:[%s8 + $0x60c] sm:$0xff]
  %v2781 = vld [vmem:[%s8 + $0x614] sm:$0xff]
  %v2782 = vld [vmem:[%s8 + $0x61c] sm:$0xf]
  %v2783 = vld [vmem:[%s8 + $0x620] sm:$0xff]
  %v2784 = vld [vmem:[%s8 + $0x628] sm:$0xff]
  %v2785 = vld [vmem:[%s8 + $0x630] sm:$0xff]
  %v2786 = vld [vmem:[%s8 + $0x638] sm:$0xf]
  %v2787 = vld [vmem:[%s8 + $0x63c] sm:$0xff]
  %v2788 = vld [vmem:[%s8 + $0x644] sm:$0xff]
  %v2789 = vld [vmem:[%s8 + $0x64c] sm:$0xff]
  %v2790 = vld [vmem:[%s8 + $0x654] sm:$0xf]
  %v2791 = vld [vmem:[%s8 + $0x658] sm:$0xff]
  %v2792 = vld [vmem:[%s8 + $0x660] sm:$0xff]
  %v2793 = vld [vmem:[%s8 + $0x668] sm:$0xff]
  %v2794 = vld [vmem:[%s8 + $0x670] sm:$0xf]
  %v2795 = vld [vmem:[%s8 + $0x674] sm:$0xff]
  %v2796 = vld [vmem:[%s8 + $0x67c] sm:$0xff]
  %v2797 = vld [vmem:[%s8 + $0x684] sm:$0xff]
  %v2798 = vld [vmem:[%s8 + $0x68c] sm:$0xf]
  %v2799 = vld [vmem:[%s8 + $0x690] sm:$0xff]
  %v2800 = vld [vmem:[%s8 + $0x698] sm:$0xff]
  %v2801 = vld [vmem:[%s8 + $0x6a0] sm:$0xff]
  %v2802 = vld [vmem:[%s8 + $0x6a8] sm:$0xf]
  %v2803 = vld [vmem:[%s8 + $0x6ac] sm:$0xff]
  %v2804 = vld [vmem:[%s8 + $0x6b4] sm:$0xff]
  %v2805 = vld [vmem:[%s8 + $0x6bc] sm:$0xff]
  %v2806 = vld [vmem:[%s8 + $0x6c4] sm:$0xf]
  %v2807 = vld [vmem:[%s8 + $0x6c8] sm:$0xff]
  %v2808 = vld [vmem:[%s8 + $0x6d0] sm:$0xff]
  %v2809 = vld [vmem:[%s8 + $0x6d8] sm:$0xff]
  %v2810 = vld [vmem:[%s8 + $0x6e0] sm:$0xf]
  %v2811 = vld [vmem:[%s8 + $0x6e4] sm:$0xff]
  %v2812 = vld [vmem:[%s8 + $0x6ec] sm:$0xff]
  %v2813 = vld [vmem:[%s8 + $0x6f4] sm:$0xff]
  %v2814 = vld [vmem:[%s8 + $0x6fc] sm:$0xf]
  %v2815 = vld [vmem:[%s9] sm:$0xff]
  %v2817 = vlaneseq
  %v2818 = vshrl.u32 %v2817, 7
  %v2819 = vsub.s32 0, %v2818
  %v2820 = vrot.slane %v2815, %v2819
  %v2821 = vlaneseq
  %v2822 = vshrl.u32 %v2821, 7
  %v2823 = vsub.s32 1, %v2822
  %v2824 = vrot.slane %v2815, %v2823
  %v2825 = vlaneseq
  %v2826 = vshrl.u32 %v2825, 7
  %v2827 = vsub.s32 2, %v2826
  %v2828 = vrot.slane %v2815, %v2827
  %v2829 = vlaneseq
  %v2830 = vshrl.u32 %v2829, 7
  %v2831 = vsub.s32 3, %v2830
  %v2832 = vrot.slane %v2815, %v2831
  %v2833 = vlaneseq
  %v2834 = vshrl.u32 %v2833, 7
  %v2835 = vsub.s32 4, %v2834
  %v2836 = vrot.slane %v2815, %v2835
  %v2837 = vlaneseq
  %v2838 = vshrl.u32 %v2837, 7
  %v2839 = vsub.s32 5, %v2838
  %v2840 = vrot.slane %v2815, %v2839
  %v2841 = vlaneseq
  %v2842 = vshrl.u32 %v2841, 7
  %v2843 = vsub.s32 6, %v2842
  %v2844 = vrot.slane %v2815, %v2843
  %v3108 = vunpack.c.l.b16 %v2559
  %v3109 = vunpack.c.h.b16 %v2559
  %v3110 = vunpack.c.l.b16 %v2560
  %v3111 = vunpack.c.h.b16 %v2560
  %v3112 = vunpack.c.l.b16 %v2561
  %v3113 = vunpack.c.h.b16 %v2561
  %v3114 = vunpack.c.l.b16 %v2562
  %v3115 = vunpack.c.l.b16 %v2563
  %v3116 = vunpack.c.h.b16 %v2563
  %v3117 = vunpack.c.l.b16 %v2564
  %v3118 = vunpack.c.h.b16 %v2564
  %v3119 = vunpack.c.l.b16 %v2565
  %v3120 = vunpack.c.h.b16 %v2565
  %v3121 = vunpack.c.l.b16 %v2566
  %v3122 = vunpack.c.l.b16 %v2567
  %v3123 = vunpack.c.h.b16 %v2567
  %v3124 = vunpack.c.l.b16 %v2568
  %v3125 = vunpack.c.h.b16 %v2568
  %v3126 = vunpack.c.l.b16 %v2569
  %v3127 = vunpack.c.h.b16 %v2569
  %v3128 = vunpack.c.l.b16 %v2570
  %v3129 = vunpack.c.l.b16 %v2571
  %v3130 = vunpack.c.h.b16 %v2571
  %v3131 = vunpack.c.l.b16 %v2572
  %v3132 = vunpack.c.h.b16 %v2572
  %v3133 = vunpack.c.l.b16 %v2573
  %v3134 = vunpack.c.h.b16 %v2573
  %v3135 = vunpack.c.l.b16 %v2574
  %v3136 = vunpack.c.l.b16 %v2575
  %v3137 = vunpack.c.h.b16 %v2575
  %v3138 = vunpack.c.l.b16 %v2576
  %v3139 = vunpack.c.h.b16 %v2576
  %v3140 = vunpack.c.l.b16 %v2577
  %v3141 = vunpack.c.h.b16 %v2577
  %v3142 = vunpack.c.l.b16 %v2578
  %v3143 = vunpack.c.l.b16 %v2579
  %v3144 = vunpack.c.h.b16 %v2579
  %v3145 = vunpack.c.l.b16 %v2580
  %v3146 = vunpack.c.h.b16 %v2580
  %v3147 = vunpack.c.l.b16 %v2581
  %v3148 = vunpack.c.h.b16 %v2581
  %v3149 = vunpack.c.l.b16 %v2582
  %v3150 = vunpack.c.l.b16 %v2583
  %v3151 = vunpack.c.h.b16 %v2583
  %v3152 = vunpack.c.l.b16 %v2584
  %v3153 = vunpack.c.h.b16 %v2584
  %v3154 = vunpack.c.l.b16 %v2585
  %v3155 = vunpack.c.h.b16 %v2585
  %v3156 = vunpack.c.l.b16 %v2586
  %v3157 = vunpack.c.l.b16 %v2587
  %v3158 = vunpack.c.h.b16 %v2587
  %v3159 = vunpack.c.l.b16 %v2588
  %v3160 = vunpack.c.h.b16 %v2588
  %v3161 = vunpack.c.l.b16 %v2589
  %v3162 = vunpack.c.h.b16 %v2589
  %v3163 = vunpack.c.l.b16 %v2590
  %v3164 = vunpack.c.l.b16 %v2591
  %v3165 = vunpack.c.h.b16 %v2591
  %v3166 = vunpack.c.l.b16 %v2592
  %v3167 = vunpack.c.h.b16 %v2592
  %v3168 = vunpack.c.l.b16 %v2593
  %v3169 = vunpack.c.h.b16 %v2593
  %v3170 = vunpack.c.l.b16 %v2594
  %v3171 = vunpack.c.l.b16 %v2595
  %v3172 = vunpack.c.h.b16 %v2595
  %v3173 = vunpack.c.l.b16 %v2596
  %v3174 = vunpack.c.h.b16 %v2596
  %v3175 = vunpack.c.l.b16 %v2597
  %v3176 = vunpack.c.h.b16 %v2597
  %v3177 = vunpack.c.l.b16 %v2598
  %v3178 = vunpack.c.l.b16 %v2599
  %v3179 = vunpack.c.h.b16 %v2599
  %v3180 = vunpack.c.l.b16 %v2600
  %v3181 = vunpack.c.h.b16 %v2600
  %v3182 = vunpack.c.l.b16 %v2601
  %v3183 = vunpack.c.h.b16 %v2601
  %v3184 = vunpack.c.l.b16 %v2602
  %v3185 = vunpack.c.l.b16 %v2603
  %v3186 = vunpack.c.h.b16 %v2603
  %v3187 = vunpack.c.l.b16 %v2604
  %v3188 = vunpack.c.h.b16 %v2604
  %v3189 = vunpack.c.l.b16 %v2605
  %v3190 = vunpack.c.h.b16 %v2605
  %v3191 = vunpack.c.l.b16 %v2606
  %v3192 = vunpack.c.l.b16 %v2607
  %v3193 = vunpack.c.h.b16 %v2607
  %v3194 = vunpack.c.l.b16 %v2608
  %v3195 = vunpack.c.h.b16 %v2608
  %v3196 = vunpack.c.l.b16 %v2609
  %v3197 = vunpack.c.h.b16 %v2609
  %v3198 = vunpack.c.l.b16 %v2610
  %v3199 = vunpack.c.l.b16 %v2611
  %v3200 = vunpack.c.h.b16 %v2611
  %v3201 = vunpack.c.l.b16 %v2612
  %v3202 = vunpack.c.h.b16 %v2612
  %v3203 = vunpack.c.l.b16 %v2613
  %v3204 = vunpack.c.h.b16 %v2613
  %v3205 = vunpack.c.l.b16 %v2614
  %v3206 = vunpack.c.l.b16 %v2615
  %v3207 = vunpack.c.h.b16 %v2615
  %v3208 = vunpack.c.l.b16 %v2616
  %v3209 = vunpack.c.h.b16 %v2616
  %v3210 = vunpack.c.l.b16 %v2617
  %v3211 = vunpack.c.h.b16 %v2617
  %v3212 = vunpack.c.l.b16 %v2618
  %v3213 = vunpack.c.l.b16 %v2619
  %v3214 = vunpack.c.h.b16 %v2619
  %v3215 = vunpack.c.l.b16 %v2620
  %v3216 = vunpack.c.h.b16 %v2620
  %v3217 = vunpack.c.l.b16 %v2621
  %v3218 = vunpack.c.h.b16 %v2621
  %v3219 = vunpack.c.l.b16 %v2622
  %v3220 = vunpack.c.l.b16 %v2623
  %v3221 = vunpack.c.h.b16 %v2623
  %v3222 = vunpack.c.l.b16 %v2624
  %v3223 = vunpack.c.h.b16 %v2624
  %v3224 = vunpack.c.l.b16 %v2625
  %v3225 = vunpack.c.h.b16 %v2625
  %v3226 = vunpack.c.l.b16 %v2626
  %v3227 = vunpack.c.l.b16 %v2627
  %v3228 = vunpack.c.h.b16 %v2627
  %v3229 = vunpack.c.l.b16 %v2628
  %v3230 = vunpack.c.h.b16 %v2628
  %v3231 = vunpack.c.l.b16 %v2629
  %v3232 = vunpack.c.h.b16 %v2629
  %v3233 = vunpack.c.l.b16 %v2630
  %v3234 = vunpack.c.l.b16 %v2631
  %v3235 = vunpack.c.h.b16 %v2631
  %v3236 = vunpack.c.l.b16 %v2632
  %v3237 = vunpack.c.h.b16 %v2632
  %v3238 = vunpack.c.l.b16 %v2633
  %v3239 = vunpack.c.h.b16 %v2633
  %v3240 = vunpack.c.l.b16 %v2634
  %v3241 = vunpack.c.l.b16 %v2635
  %v3242 = vunpack.c.h.b16 %v2635
  %v3243 = vunpack.c.l.b16 %v2636
  %v3244 = vunpack.c.h.b16 %v2636
  %v3245 = vunpack.c.l.b16 %v2637
  %v3246 = vunpack.c.h.b16 %v2637
  %v3247 = vunpack.c.l.b16 %v2638
  %v3248 = vunpack.c.l.b16 %v2639
  %v3249 = vunpack.c.h.b16 %v2639
  %v3250 = vunpack.c.l.b16 %v2640
  %v3251 = vunpack.c.h.b16 %v2640
  %v3252 = vunpack.c.l.b16 %v2641
  %v3253 = vunpack.c.h.b16 %v2641
  %v3254 = vunpack.c.l.b16 %v2642
  %v3255 = vunpack.c.l.b16 %v2643
  %v3256 = vunpack.c.h.b16 %v2643
  %v3257 = vunpack.c.l.b16 %v2644
  %v3258 = vunpack.c.h.b16 %v2644
  %v3259 = vunpack.c.l.b16 %v2645
  %v3260 = vunpack.c.h.b16 %v2645
  %v3261 = vunpack.c.l.b16 %v2646
  %v3262 = vunpack.c.l.b16 %v2647
  %v3263 = vunpack.c.h.b16 %v2647
  %v3264 = vunpack.c.l.b16 %v2648
  %v3265 = vunpack.c.h.b16 %v2648
  %v3266 = vunpack.c.l.b16 %v2649
  %v3267 = vunpack.c.h.b16 %v2649
  %v3268 = vunpack.c.l.b16 %v2650
  %v3269 = vunpack.c.l.b16 %v2651
  %v3270 = vunpack.c.h.b16 %v2651
  %v3271 = vunpack.c.l.b16 %v2652
  %v3272 = vunpack.c.h.b16 %v2652
  %v3273 = vunpack.c.l.b16 %v2653
  %v3274 = vunpack.c.h.b16 %v2653
  %v3275 = vunpack.c.l.b16 %v2654
  %v3276 = vunpack.c.l.b16 %v2655
  %v3277 = vunpack.c.h.b16 %v2655
  %v3278 = vunpack.c.l.b16 %v2656
  %v3279 = vunpack.c.h.b16 %v2656
  %v3280 = vunpack.c.l.b16 %v2657
  %v3281 = vunpack.c.h.b16 %v2657
  %v3282 = vunpack.c.l.b16 %v2658
  %v3283 = vunpack.c.l.b16 %v2659
  %v3284 = vunpack.c.h.b16 %v2659
  %v3285 = vunpack.c.l.b16 %v2660
  %v3286 = vunpack.c.h.b16 %v2660
  %v3287 = vunpack.c.l.b16 %v2661
  %v3288 = vunpack.c.h.b16 %v2661
  %v3289 = vunpack.c.l.b16 %v2662
  %v3290 = vunpack.c.l.b16 %v2663
  %v3291 = vunpack.c.h.b16 %v2663
  %v3292 = vunpack.c.l.b16 %v2664
  %v3293 = vunpack.c.h.b16 %v2664
  %v3294 = vunpack.c.l.b16 %v2665
  %v3295 = vunpack.c.h.b16 %v2665
  %v3296 = vunpack.c.l.b16 %v2666
  %v3297 = vunpack.c.l.b16 %v2667
  %v3298 = vunpack.c.h.b16 %v2667
  %v3299 = vunpack.c.l.b16 %v2668
  %v3300 = vunpack.c.h.b16 %v2668
  %v3301 = vunpack.c.l.b16 %v2669
  %v3302 = vunpack.c.h.b16 %v2669
  %v3303 = vunpack.c.l.b16 %v2670
  %v3304 = vunpack.c.l.b16 %v2671
  %v3305 = vunpack.c.h.b16 %v2671
  %v3306 = vunpack.c.l.b16 %v2672
  %v3307 = vunpack.c.h.b16 %v2672
  %v3308 = vunpack.c.l.b16 %v2673
  %v3309 = vunpack.c.h.b16 %v2673
  %v3310 = vunpack.c.l.b16 %v2674
  %v3311 = vunpack.c.l.b16 %v2675
  %v3312 = vunpack.c.h.b16 %v2675
  %v3313 = vunpack.c.l.b16 %v2676
  %v3314 = vunpack.c.h.b16 %v2676
  %v3315 = vunpack.c.l.b16 %v2677
  %v3316 = vunpack.c.h.b16 %v2677
  %v3317 = vunpack.c.l.b16 %v2678
  %v3318 = vunpack.c.l.b16 %v2679
  %v3319 = vunpack.c.h.b16 %v2679
  %v3320 = vunpack.c.l.b16 %v2680
  %v3321 = vunpack.c.h.b16 %v2680
  %v3322 = vunpack.c.l.b16 %v2681
  %v3323 = vunpack.c.h.b16 %v2681
  %v3324 = vunpack.c.l.b16 %v2682
  %v3325 = vunpack.c.l.b16 %v2683
  %v3326 = vunpack.c.h.b16 %v2683
  %v3327 = vunpack.c.l.b16 %v2684
  %v3328 = vunpack.c.h.b16 %v2684
  %v3329 = vunpack.c.l.b16 %v2685
  %v3330 = vunpack.c.h.b16 %v2685
  %v3331 = vunpack.c.l.b16 %v2686
  %v3332 = vunpack.c.l.b16 %v2687
  %v3333 = vunpack.c.h.b16 %v2687
  %v3334 = vunpack.c.l.b16 %v2688
  %v3335 = vunpack.c.h.b16 %v2688
  %v3336 = vunpack.c.l.b16 %v2689
  %v3337 = vunpack.c.h.b16 %v2689
  %v3338 = vunpack.c.l.b16 %v2690
  %v3339 = vunpack.c.l.b16 %v2691
  %v3340 = vunpack.c.h.b16 %v2691
  %v3341 = vunpack.c.l.b16 %v2692
  %v3342 = vunpack.c.h.b16 %v2692
  %v3343 = vunpack.c.l.b16 %v2693
  %v3344 = vunpack.c.h.b16 %v2693
  %v3345 = vunpack.c.l.b16 %v2694
  %v3346 = vunpack.c.l.b16 %v2695
  %v3347 = vunpack.c.h.b16 %v2695
  %v3348 = vunpack.c.l.b16 %v2696
  %v3349 = vunpack.c.h.b16 %v2696
  %v3350 = vunpack.c.l.b16 %v2697
  %v3351 = vunpack.c.h.b16 %v2697
  %v3352 = vunpack.c.l.b16 %v2698
  %v3353 = vunpack.c.l.b16 %v2699
  %v3354 = vunpack.c.h.b16 %v2699
  %v3355 = vunpack.c.l.b16 %v2700
  %v3356 = vunpack.c.h.b16 %v2700
  %v3357 = vunpack.c.l.b16 %v2701
  %v3358 = vunpack.c.h.b16 %v2701
  %v3359 = vunpack.c.l.b16 %v2702
  %v3360 = vunpack.c.l.b16 %v2703
  %v3361 = vunpack.c.h.b16 %v2703
  %v3362 = vunpack.c.l.b16 %v2704
  %v3363 = vunpack.c.h.b16 %v2704
  %v3364 = vunpack.c.l.b16 %v2705
  %v3365 = vunpack.c.h.b16 %v2705
  %v3366 = vunpack.c.l.b16 %v2706
  %v3367 = vunpack.c.l.b16 %v2707
  %v3368 = vunpack.c.h.b16 %v2707
  %v3369 = vunpack.c.l.b16 %v2708
  %v3370 = vunpack.c.h.b16 %v2708
  %v3371 = vunpack.c.l.b16 %v2709
  %v3372 = vunpack.c.h.b16 %v2709
  %v3373 = vunpack.c.l.b16 %v2710
  %v3374 = vunpack.c.l.b16 %v2711
  %v3375 = vunpack.c.h.b16 %v2711
  %v3376 = vunpack.c.l.b16 %v2712
  %v3377 = vunpack.c.h.b16 %v2712
  %v3378 = vunpack.c.l.b16 %v2713
  %v3379 = vunpack.c.h.b16 %v2713
  %v3380 = vunpack.c.l.b16 %v2714
  %v3381 = vunpack.c.l.b16 %v2715
  %v3382 = vunpack.c.h.b16 %v2715
  %v3383 = vunpack.c.l.b16 %v2716
  %v3384 = vunpack.c.h.b16 %v2716
  %v3385 = vunpack.c.l.b16 %v2717
  %v3386 = vunpack.c.h.b16 %v2717
  %v3387 = vunpack.c.l.b16 %v2718
  %v3388 = vunpack.c.l.b16 %v2719
  %v3389 = vunpack.c.h.b16 %v2719
  %v3390 = vunpack.c.l.b16 %v2720
  %v3391 = vunpack.c.h.b16 %v2720
  %v3392 = vunpack.c.l.b16 %v2721
  %v3393 = vunpack.c.h.b16 %v2721
  %v3394 = vunpack.c.l.b16 %v2722
  %v3395 = vunpack.c.l.b16 %v2723
  %v3396 = vunpack.c.h.b16 %v2723
  %v3397 = vunpack.c.l.b16 %v2724
  %v3398 = vunpack.c.h.b16 %v2724
  %v3399 = vunpack.c.l.b16 %v2725
  %v3400 = vunpack.c.h.b16 %v2725
  %v3401 = vunpack.c.l.b16 %v2726
  %v3402 = vunpack.c.l.b16 %v2727
  %v3403 = vunpack.c.h.b16 %v2727
  %v3404 = vunpack.c.l.b16 %v2728
  %v3405 = vunpack.c.h.b16 %v2728
  %v3406 = vunpack.c.l.b16 %v2729
  %v3407 = vunpack.c.h.b16 %v2729
  %v3408 = vunpack.c.l.b16 %v2730
  %v3409 = vunpack.c.l.b16 %v2731
  %v3410 = vunpack.c.h.b16 %v2731
  %v3411 = vunpack.c.l.b16 %v2732
  %v3412 = vunpack.c.h.b16 %v2732
  %v3413 = vunpack.c.l.b16 %v2733
  %v3414 = vunpack.c.h.b16 %v2733
  %v3415 = vunpack.c.l.b16 %v2734
  %v3416 = vunpack.c.l.b16 %v2735
  %v3417 = vunpack.c.h.b16 %v2735
  %v3418 = vunpack.c.l.b16 %v2736
  %v3419 = vunpack.c.h.b16 %v2736
  %v3420 = vunpack.c.l.b16 %v2737
  %v3421 = vunpack.c.h.b16 %v2737
  %v3422 = vunpack.c.l.b16 %v2738
  %v3423 = vunpack.c.l.b16 %v2739
  %v3424 = vunpack.c.h.b16 %v2739
  %v3425 = vunpack.c.l.b16 %v2740
  %v3426 = vunpack.c.h.b16 %v2740
  %v3427 = vunpack.c.l.b16 %v2741
  %v3428 = vunpack.c.h.b16 %v2741
  %v3429 = vunpack.c.l.b16 %v2742
  %v3430 = vunpack.c.l.b16 %v2743
  %v3431 = vunpack.c.h.b16 %v2743
  %v3432 = vunpack.c.l.b16 %v2744
  %v3433 = vunpack.c.h.b16 %v2744
  %v3434 = vunpack.c.l.b16 %v2745
  %v3435 = vunpack.c.h.b16 %v2745
  %v3436 = vunpack.c.l.b16 %v2746
  %v3437 = vunpack.c.l.b16 %v2747
  %v3438 = vunpack.c.h.b16 %v2747
  %v3439 = vunpack.c.l.b16 %v2748
  %v3440 = vunpack.c.h.b16 %v2748
  %v3441 = vunpack.c.l.b16 %v2749
  %v3442 = vunpack.c.h.b16 %v2749
  %v3443 = vunpack.c.l.b16 %v2750
  %v3444 = vunpack.c.l.b16 %v2751
  %v3445 = vunpack.c.h.b16 %v2751
  %v3446 = vunpack.c.l.b16 %v2752
  %v3447 = vunpack.c.h.b16 %v2752
  %v3448 = vunpack.c.l.b16 %v2753
  %v3449 = vunpack.c.h.b16 %v2753
  %v3450 = vunpack.c.l.b16 %v2754
  %v3451 = vunpack.c.l.b16 %v2755
  %v3452 = vunpack.c.h.b16 %v2755
  %v3453 = vunpack.c.l.b16 %v2756
  %v3454 = vunpack.c.h.b16 %v2756
  %v3455 = vunpack.c.l.b16 %v2757
  %v3456 = vunpack.c.h.b16 %v2757
  %v3457 = vunpack.c.l.b16 %v2758
  %v3458 = vunpack.c.l.b16 %v2759
  %v3459 = vunpack.c.h.b16 %v2759
  %v3460 = vunpack.c.l.b16 %v2760
  %v3461 = vunpack.c.h.b16 %v2760
  %v3462 = vunpack.c.l.b16 %v2761
  %v3463 = vunpack.c.h.b16 %v2761
  %v3464 = vunpack.c.l.b16 %v2762
  %v3465 = vunpack.c.l.b16 %v2763
  %v3466 = vunpack.c.h.b16 %v2763
  %v3467 = vunpack.c.l.b16 %v2764
  %v3468 = vunpack.c.h.b16 %v2764
  %v3469 = vunpack.c.l.b16 %v2765
  %v3470 = vunpack.c.h.b16 %v2765
  %v3471 = vunpack.c.l.b16 %v2766
  %v3472 = vunpack.c.l.b16 %v2767
  %v3473 = vunpack.c.h.b16 %v2767
  %v3474 = vunpack.c.l.b16 %v2768
  %v3475 = vunpack.c.h.b16 %v2768
  %v3476 = vunpack.c.l.b16 %v2769
  %v3477 = vunpack.c.h.b16 %v2769
  %v3478 = vunpack.c.l.b16 %v2770
  %v3479 = vunpack.c.l.b16 %v2771
  %v3480 = vunpack.c.h.b16 %v2771
  %v3481 = vunpack.c.l.b16 %v2772
  %v3482 = vunpack.c.h.b16 %v2772
  %v3483 = vunpack.c.l.b16 %v2773
  %v3484 = vunpack.c.h.b16 %v2773
  %v3485 = vunpack.c.l.b16 %v2774
  %v3486 = vunpack.c.l.b16 %v2775
  %v3487 = vunpack.c.h.b16 %v2775
  %v3488 = vunpack.c.l.b16 %v2776
  %v3489 = vunpack.c.h.b16 %v2776
  %v3490 = vunpack.c.l.b16 %v2777
  %v3491 = vunpack.c.h.b16 %v2777
  %v3492 = vunpack.c.l.b16 %v2778
  %v3493 = vunpack.c.l.b16 %v2779
  %v3494 = vunpack.c.h.b16 %v2779
  %v3495 = vunpack.c.l.b16 %v2780
  %v3496 = vunpack.c.h.b16 %v2780
  %v3497 = vunpack.c.l.b16 %v2781
  %v3498 = vunpack.c.h.b16 %v2781
  %v3499 = vunpack.c.l.b16 %v2782
  %v3500 = vunpack.c.l.b16 %v2783
  %v3501 = vunpack.c.h.b16 %v2783
  %v3502 = vunpack.c.l.b16 %v2784
  %v3503 = vunpack.c.h.b16 %v2784
  %v3504 = vunpack.c.l.b16 %v2785
  %v3505 = vunpack.c.h.b16 %v2785
  %v3506 = vunpack.c.l.b16 %v2786
  %v3507 = vunpack.c.l.b16 %v2787
  %v3508 = vunpack.c.h.b16 %v2787
  %v3509 = vunpack.c.l.b16 %v2788
  %v3510 = vunpack.c.h.b16 %v2788
  %v3511 = vunpack.c.l.b16 %v2789
  %v3512 = vunpack.c.h.b16 %v2789
  %v3513 = vunpack.c.l.b16 %v2790
  %v3514 = vunpack.c.l.b16 %v2791
  %v3515 = vunpack.c.h.b16 %v2791
  %v3516 = vunpack.c.l.b16 %v2792
  %v3517 = vunpack.c.h.b16 %v2792
  %v3518 = vunpack.c.l.b16 %v2793
  %v3519 = vunpack.c.h.b16 %v2793
  %v3520 = vunpack.c.l.b16 %v2794
  %v3521 = vunpack.c.l.b16 %v2795
  %v3522 = vunpack.c.h.b16 %v2795
  %v3523 = vunpack.c.l.b16 %v2796
  %v3524 = vunpack.c.h.b16 %v2796
  %v3525 = vunpack.c.l.b16 %v2797
  %v3526 = vunpack.c.h.b16 %v2797
  %v3527 = vunpack.c.l.b16 %v2798
  %v3528 = vunpack.c.l.b16 %v2799
  %v3529 = vunpack.c.h.b16 %v2799
  %v3530 = vunpack.c.l.b16 %v2800
  %v3531 = vunpack.c.h.b16 %v2800
  %v3532 = vunpack.c.l.b16 %v2801
  %v3533 = vunpack.c.h.b16 %v2801
  %v3534 = vunpack.c.l.b16 %v2802
  %v3535 = vunpack.c.l.b16 %v2803
  %v3536 = vunpack.c.h.b16 %v2803
  %v3537 = vunpack.c.l.b16 %v2804
  %v3538 = vunpack.c.h.b16 %v2804
  %v3539 = vunpack.c.l.b16 %v2805
  %v3540 = vunpack.c.h.b16 %v2805
  %v3541 = vunpack.c.l.b16 %v2806
  %v3542 = vunpack.c.l.b16 %v2807
  %v3543 = vunpack.c.h.b16 %v2807
  %v3544 = vunpack.c.l.b16 %v2808
  %v3545 = vunpack.c.h.b16 %v2808
  %v3546 = vunpack.c.l.b16 %v2809
  %v3547 = vunpack.c.h.b16 %v2809
  %v3548 = vunpack.c.l.b16 %v2810
  %v3549 = vunpack.c.l.b16 %v2811
  %v3550 = vunpack.c.h.b16 %v2811
  %v3551 = vunpack.c.l.b16 %v2812
  %v3552 = vunpack.c.h.b16 %v2812
  %v3553 = vunpack.c.l.b16 %v2813
  %v3554 = vunpack.c.h.b16 %v2813
  %v3555 = vunpack.c.l.b16 %v2814
  %v3556 = vpack.c.b16 %v3115, %v3108
  %v3557 = vpack.c.b16 %v3116, %v3109
  %v3558 = vpack.c.b16 %v3117, %v3110
  %v3559 = vpack.c.b16 %v3118, %v3111
  %v3560 = vpack.c.b16 %v3119, %v3112
  %v3561 = vpack.c.b16 %v3120, %v3113
  %v3562 = vpack.c.b16 %v3121, %v3114
  %v3563 = vpack.c.b16 %v3129, %v3122
  %v3564 = vpack.c.b16 %v3130, %v3123
  %v3565 = vpack.c.b16 %v3131, %v3124
  %v3566 = vpack.c.b16 %v3132, %v3125
  %v3567 = vpack.c.b16 %v3133, %v3126
  %v3568 = vpack.c.b16 %v3134, %v3127
  %v3569 = vpack.c.b16 %v3135, %v3128
  %v3570 = vpack.c.b16 %v3143, %v3136
  %v3571 = vpack.c.b16 %v3144, %v3137
  %v3572 = vpack.c.b16 %v3145, %v3138
  %v3573 = vpack.c.b16 %v3146, %v3139
  %v3574 = vpack.c.b16 %v3147, %v3140
  %v3575 = vpack.c.b16 %v3148, %v3141
  %v3576 = vpack.c.b16 %v3149, %v3142
  %v3577 = vpack.c.b16 %v3157, %v3150
  %v3578 = vpack.c.b16 %v3158, %v3151
  %v3579 = vpack.c.b16 %v3159, %v3152
  %v3580 = vpack.c.b16 %v3160, %v3153
  %v3581 = vpack.c.b16 %v3161, %v3154
  %v3582 = vpack.c.b16 %v3162, %v3155
  %v3583 = vpack.c.b16 %v3163, %v3156
  %v3584 = vpack.c.b16 %v3171, %v3164
  %v3585 = vpack.c.b16 %v3172, %v3165
  %v3586 = vpack.c.b16 %v3173, %v3166
  %v3587 = vpack.c.b16 %v3174, %v3167
  %v3588 = vpack.c.b16 %v3175, %v3168
  %v3589 = vpack.c.b16 %v3176, %v3169
  %v3590 = vpack.c.b16 %v3177, %v3170
  %v3591 = vpack.c.b16 %v3185, %v3178
  %v3592 = vpack.c.b16 %v3186, %v3179
  %v3593 = vpack.c.b16 %v3187, %v3180
  %v3594 = vpack.c.b16 %v3188, %v3181
  %v3595 = vpack.c.b16 %v3189, %v3182
  %v3596 = vpack.c.b16 %v3190, %v3183
  %v3597 = vpack.c.b16 %v3191, %v3184
  %v3598 = vpack.c.b16 %v3199, %v3192
  %v3599 = vpack.c.b16 %v3200, %v3193
  %v3600 = vpack.c.b16 %v3201, %v3194
  %v3601 = vpack.c.b16 %v3202, %v3195
  %v3602 = vpack.c.b16 %v3203, %v3196
  %v3603 = vpack.c.b16 %v3204, %v3197
  %v3604 = vpack.c.b16 %v3205, %v3198
  %v3605 = vpack.c.b16 %v3213, %v3206
  %v3606 = vpack.c.b16 %v3214, %v3207
  %v3607 = vpack.c.b16 %v3215, %v3208
  %v3608 = vpack.c.b16 %v3216, %v3209
  %v3609 = vpack.c.b16 %v3217, %v3210
  %v3610 = vpack.c.b16 %v3218, %v3211
  %v3611 = vpack.c.b16 %v3219, %v3212
  %v3612 = vpack.c.b16 %v3227, %v3220
  %v3613 = vpack.c.b16 %v3228, %v3221
  %v3614 = vpack.c.b16 %v3229, %v3222
  %v3615 = vpack.c.b16 %v3230, %v3223
  %v3616 = vpack.c.b16 %v3231, %v3224
  %v3617 = vpack.c.b16 %v3232, %v3225
  %v3618 = vpack.c.b16 %v3233, %v3226
  %v3619 = vpack.c.b16 %v3241, %v3234
  %v3620 = vpack.c.b16 %v3242, %v3235
  %v3621 = vpack.c.b16 %v3243, %v3236
  %v3622 = vpack.c.b16 %v3244, %v3237
  %v3623 = vpack.c.b16 %v3245, %v3238
  %v3624 = vpack.c.b16 %v3246, %v3239
  %v3625 = vpack.c.b16 %v3247, %v3240
  %v3626 = vpack.c.b16 %v3255, %v3248
  %v3627 = vpack.c.b16 %v3256, %v3249
  %v3628 = vpack.c.b16 %v3257, %v3250
  %v3629 = vpack.c.b16 %v3258, %v3251
  %v3630 = vpack.c.b16 %v3259, %v3252
  %v3631 = vpack.c.b16 %v3260, %v3253
  %v3632 = vpack.c.b16 %v3261, %v3254
  %v3633 = vpack.c.b16 %v3269, %v3262
  %v3634 = vpack.c.b16 %v3270, %v3263
  %v3635 = vpack.c.b16 %v3271, %v3264
  %v3636 = vpack.c.b16 %v3272, %v3265
  %v3637 = vpack.c.b16 %v3273, %v3266
  %v3638 = vpack.c.b16 %v3274, %v3267
  %v3639 = vpack.c.b16 %v3275, %v3268
  %v3640 = vpack.c.b16 %v3283, %v3276
  %v3641 = vpack.c.b16 %v3284, %v3277
  %v3642 = vpack.c.b16 %v3285, %v3278
  %v3643 = vpack.c.b16 %v3286, %v3279
  %v3644 = vpack.c.b16 %v3287, %v3280
  %v3645 = vpack.c.b16 %v3288, %v3281
  %v3646 = vpack.c.b16 %v3289, %v3282
  %v3647 = vpack.c.b16 %v3297, %v3290
  %v3648 = vpack.c.b16 %v3298, %v3291
  %v3649 = vpack.c.b16 %v3299, %v3292
  %v3650 = vpack.c.b16 %v3300, %v3293
  %v3651 = vpack.c.b16 %v3301, %v3294
  %v3652 = vpack.c.b16 %v3302, %v3295
  %v3653 = vpack.c.b16 %v3303, %v3296
  %v3654 = vpack.c.b16 %v3311, %v3304
  %v3655 = vpack.c.b16 %v3312, %v3305
  %v3656 = vpack.c.b16 %v3313, %v3306
  %v3657 = vpack.c.b16 %v3314, %v3307
  %v3658 = vpack.c.b16 %v3315, %v3308
  %v3659 = vpack.c.b16 %v3316, %v3309
  %v3660 = vpack.c.b16 %v3317, %v3310
  %v3661 = vpack.c.b16 %v3325, %v3318
  %v3662 = vpack.c.b16 %v3326, %v3319
  %v3663 = vpack.c.b16 %v3327, %v3320
  %v3664 = vpack.c.b16 %v3328, %v3321
  %v3665 = vpack.c.b16 %v3329, %v3322
  %v3666 = vpack.c.b16 %v3330, %v3323
  %v3667 = vpack.c.b16 %v3331, %v3324
  %v3668 = vpack.c.b16 %v3339, %v3332
  %v3669 = vpack.c.b16 %v3340, %v3333
  %v3670 = vpack.c.b16 %v3341, %v3334
  %v3671 = vpack.c.b16 %v3342, %v3335
  %v3672 = vpack.c.b16 %v3343, %v3336
  %v3673 = vpack.c.b16 %v3344, %v3337
  %v3674 = vpack.c.b16 %v3345, %v3338
  %v3675 = vpack.c.b16 %v3353, %v3346
  %v3676 = vpack.c.b16 %v3354, %v3347
  %v3677 = vpack.c.b16 %v3355, %v3348
  %v3678 = vpack.c.b16 %v3356, %v3349
  %v3679 = vpack.c.b16 %v3357, %v3350
  %v3680 = vpack.c.b16 %v3358, %v3351
  %v3681 = vpack.c.b16 %v3359, %v3352
  %v3682 = vpack.c.b16 %v3367, %v3360
  %v3683 = vpack.c.b16 %v3368, %v3361
  %v3684 = vpack.c.b16 %v3369, %v3362
  %v3685 = vpack.c.b16 %v3370, %v3363
  %v3686 = vpack.c.b16 %v3371, %v3364
  %v3687 = vpack.c.b16 %v3372, %v3365
  %v3688 = vpack.c.b16 %v3373, %v3366
  %v3689 = vpack.c.b16 %v3381, %v3374
  %v3690 = vpack.c.b16 %v3382, %v3375
  %v3691 = vpack.c.b16 %v3383, %v3376
  %v3692 = vpack.c.b16 %v3384, %v3377
  %v3693 = vpack.c.b16 %v3385, %v3378
  %v3694 = vpack.c.b16 %v3386, %v3379
  %v3695 = vpack.c.b16 %v3387, %v3380
  %v3696 = vpack.c.b16 %v3395, %v3388
  %v3697 = vpack.c.b16 %v3396, %v3389
  %v3698 = vpack.c.b16 %v3397, %v3390
  %v3699 = vpack.c.b16 %v3398, %v3391
  %v3700 = vpack.c.b16 %v3399, %v3392
  %v3701 = vpack.c.b16 %v3400, %v3393
  %v3702 = vpack.c.b16 %v3401, %v3394
  %v3703 = vpack.c.b16 %v3409, %v3402
  %v3704 = vpack.c.b16 %v3410, %v3403
  %v3705 = vpack.c.b16 %v3411, %v3404
  %v3706 = vpack.c.b16 %v3412, %v3405
  %v3707 = vpack.c.b16 %v3413, %v3406
  %v3708 = vpack.c.b16 %v3414, %v3407
  %v3709 = vpack.c.b16 %v3415, %v3408
  %v3710 = vpack.c.b16 %v3423, %v3416
  %v3711 = vpack.c.b16 %v3424, %v3417
  %v3712 = vpack.c.b16 %v3425, %v3418
  %v3713 = vpack.c.b16 %v3426, %v3419
  %v3714 = vpack.c.b16 %v3427, %v3420
  %v3715 = vpack.c.b16 %v3428, %v3421
  %v3716 = vpack.c.b16 %v3429, %v3422
  %v3717 = vpack.c.b16 %v3437, %v3430
  %v3718 = vpack.c.b16 %v3438, %v3431
  %v3719 = vpack.c.b16 %v3439, %v3432
  %v3720 = vpack.c.b16 %v3440, %v3433
  %v3721 = vpack.c.b16 %v3441, %v3434
  %v3722 = vpack.c.b16 %v3442, %v3435
  %v3723 = vpack.c.b16 %v3443, %v3436
  %v3724 = vpack.c.b16 %v3451, %v3444
  %v3725 = vpack.c.b16 %v3452, %v3445
  %v3726 = vpack.c.b16 %v3453, %v3446
  %v3727 = vpack.c.b16 %v3454, %v3447
  %v3728 = vpack.c.b16 %v3455, %v3448
  %v3729 = vpack.c.b16 %v3456, %v3449
  %v3730 = vpack.c.b16 %v3457, %v3450
  %v3731 = vpack.c.b16 %v3465, %v3458
  %v3732 = vpack.c.b16 %v3466, %v3459
  %v3733 = vpack.c.b16 %v3467, %v3460
  %v3734 = vpack.c.b16 %v3468, %v3461
  %v3735 = vpack.c.b16 %v3469, %v3462
  %v3736 = vpack.c.b16 %v3470, %v3463
  %v3737 = vpack.c.b16 %v3471, %v3464
  %v3738 = vpack.c.b16 %v3479, %v3472
  %v3739 = vpack.c.b16 %v3480, %v3473
  %v3740 = vpack.c.b16 %v3481, %v3474
  %v3741 = vpack.c.b16 %v3482, %v3475
  %v3742 = vpack.c.b16 %v3483, %v3476
  %v3743 = vpack.c.b16 %v3484, %v3477
  %v3744 = vpack.c.b16 %v3485, %v3478
  %v3745 = vpack.c.b16 %v3493, %v3486
  %v3746 = vpack.c.b16 %v3494, %v3487
  %v3747 = vpack.c.b16 %v3495, %v3488
  %v3748 = vpack.c.b16 %v3496, %v3489
  %v3749 = vpack.c.b16 %v3497, %v3490
  %v3750 = vpack.c.b16 %v3498, %v3491
  %v3751 = vpack.c.b16 %v3499, %v3492
  %v3752 = vpack.c.b16 %v3507, %v3500
  %v3753 = vpack.c.b16 %v3508, %v3501
  %v3754 = vpack.c.b16 %v3509, %v3502
  %v3755 = vpack.c.b16 %v3510, %v3503
  %v3756 = vpack.c.b16 %v3511, %v3504
  %v3757 = vpack.c.b16 %v3512, %v3505
  %v3758 = vpack.c.b16 %v3513, %v3506
  %v3759 = vpack.c.b16 %v3521, %v3514
  %v3760 = vpack.c.b16 %v3522, %v3515
  %v3761 = vpack.c.b16 %v3523, %v3516
  %v3762 = vpack.c.b16 %v3524, %v3517
  %v3763 = vpack.c.b16 %v3525, %v3518
  %v3764 = vpack.c.b16 %v3526, %v3519
  %v3765 = vpack.c.b16 %v3527, %v3520
  %v3766 = vpack.c.b16 %v3535, %v3528
  %v3767 = vpack.c.b16 %v3536, %v3529
  %v3768 = vpack.c.b16 %v3537, %v3530
  %v3769 = vpack.c.b16 %v3538, %v3531
  %v3770 = vpack.c.b16 %v3539, %v3532
  %v3771 = vpack.c.b16 %v3540, %v3533
  %v3772 = vpack.c.b16 %v3541, %v3534
  %v3773 = vpack.c.b16 %v3549, %v3542
  %v3774 = vpack.c.b16 %v3550, %v3543
  %v3775 = vpack.c.b16 %v3551, %v3544
  %v3776 = vpack.c.b16 %v3552, %v3545
  %v3777 = vpack.c.b16 %v3553, %v3546
  %v3778 = vpack.c.b16 %v3554, %v3547
  %v3779 = vpack.c.b16 %v3555, %v3548
  %4004 = vmatprep.subr.bf16.mxu0 %v3557
  %4005 = vmatpush1.bf16.msra.mxu0 %v3556
  %4006 = vmatprep.subr.bf16.mxu0 %v3564
  %4007 = vmatpush1.bf16.msra.mxu0 %v3563
  %4008 = vmatprep.subr.bf16.mxu0 %v3571
  %4009 = vmatpush1.bf16.msra.mxu0 %v3570
  %4010 = vmatprep.subr.bf16.mxu0 %v3578
  %4011 = vmatpush1.bf16.msra.mxu0 %v3577
  %4012 = vmatprep.subr.bf16.mxu0 %v3585
  %4013 = vmatpush1.bf16.msra.mxu0 %v3584
  %4014 = vmatprep.subr.bf16.mxu0 %v3592
  %4015 = vmatpush1.bf16.msra.mxu0 %v3591
  %4016 = vmatprep.subr.bf16.mxu0 %v3599
  %4017 = vmatpush1.bf16.msra.mxu0 %v3598
  %4018 = vmatprep.subr.bf16.mxu0 %v3606
  %4019 = vmatpush1.bf16.msra.mxu0 %v3605
  %4020 = vmatprep.subr.bf16.mxu0 %v3613
  %4021 = vmatpush1.bf16.msra.mxu0 %v3612
  %4022 = vmatprep.subr.bf16.mxu0 %v3620
  %4023 = vmatpush1.bf16.msra.mxu0 %v3619
  %4024 = vmatprep.subr.bf16.mxu0 %v3627
  %4025 = vmatpush1.bf16.msra.mxu0 %v3626
  %4026 = vmatprep.subr.bf16.mxu0 %v3634
  %4027 = vmatpush1.bf16.msra.mxu0 %v3633
  %4028 = vmatprep.subr.bf16.mxu0 %v3641
  %4029 = vmatpush1.bf16.msra.mxu0 %v3640
  %4030 = vmatprep.subr.bf16.mxu0 %v3648
  %4031 = vmatpush1.bf16.msra.mxu0 %v3647
  %4032 = vmatprep.subr.bf16.mxu0 %v3655
  %4033 = vmatpush1.bf16.msra.mxu0 %v3654
  %4034 = vmatprep.subr.bf16.mxu0 %v3662
  %4035 = vmatpush1.bf16.msra.mxu0 %v3661
  %4036 = vmatprep.mubr.bf16.mxu0 %v2556
  %4037 = vmatmul.mubr.bf16.gmra.mrb[0].mxu0 %v2555
  %v4038 = vpop.f32.mrb[0].mxu0
  %v4039 = vadd.f32 %v2820, %v4038
  %v4040 = vpop.f32.mrb[0].mxu0
  %v4041 = vadd.f32 %v2824, %v4040
  %v4042 = vpop.f32.mrb[0].mxu0
  %v4043 = vpop.f32.mrb[0].mxu0
  %4044 = vdwg.mxu0
  %4045 = vmatprep.subr.bf16.mxu0 %v3669
  %4046 = vmatpush1.bf16.msra.mxu0 %v3668
  %4047 = vmatprep.subr.bf16.mxu0 %v3676
  %4048 = vmatpush1.bf16.msra.mxu0 %v3675
  %4049 = vmatprep.subr.bf16.mxu0 %v3683
  %4050 = vmatpush1.bf16.msra.mxu0 %v3682
  %4051 = vmatprep.subr.bf16.mxu0 %v3690
  %4052 = vmatpush1.bf16.msra.mxu0 %v3689
  %4053 = vmatprep.subr.bf16.mxu0 %v3697
  %4054 = vmatpush1.bf16.msra.mxu0 %v3696
  %4055 = vmatprep.subr.bf16.mxu0 %v3704
  %4056 = vmatpush1.bf16.msra.mxu0 %v3703
  %4057 = vmatprep.subr.bf16.mxu0 %v3711
  %4058 = vmatpush1.bf16.msra.mxu0 %v3710
  %4059 = vmatprep.subr.bf16.mxu0 %v3718
  %4060 = vmatpush1.bf16.msra.mxu0 %v3717
  %4061 = vmatprep.subr.bf16.mxu0 %v3725
  %4062 = vmatpush1.bf16.msra.mxu0 %v3724
  %4063 = vmatprep.subr.bf16.mxu0 %v3732
  %4064 = vmatpush1.bf16.msra.mxu0 %v3731
  %4065 = vmatprep.subr.bf16.mxu0 %v3739
  %4066 = vmatpush1.bf16.msra.mxu0 %v3738
  %4067 = vmatprep.subr.bf16.mxu0 %v3746
  %4068 = vmatpush1.bf16.msra.mxu0 %v3745
  %4069 = vmatprep.subr.bf16.mxu0 %v3753
  %4070 = vmatpush1.bf16.msra.mxu0 %v3752
  %4071 = vmatprep.subr.bf16.mxu0 %v3760
  %4072 = vmatpush1.bf16.msra.mxu0 %v3759
  %4073 = vmatprep.subr.bf16.mxu0 %v3767
  %4074 = vmatpush1.bf16.msra.mxu0 %v3766
  %4075 = vmatprep.subr.bf16.mxu0 %v3774
  %4076 = vmatpush1.bf16.msra.mxu0 %v3773
  %4077 = vmatprep.mubr.bf16.mxu0 %v2558
  %4078 = vmatmul.mubr.bf16.gmra.mrb[0].mxu0 %v2557
  %v4079 = vpop.f32.mrb[0].mxu0
  %v4080 = vadd.f32 %v4039, %v4079
  %v4081 = vpop.f32.mrb[0].mxu0
  %v4082 = vadd.f32 %v4041, %v4081
  %v4083 = vpop.f32.mrb[0].mxu0
  %v4084 = vpop.f32.mrb[0].mxu0
  %4085 = vdwg.mxu0
  %4086 = vmatprep.subr.bf16.mxu0 %v3559
  %4087 = vmatpush1.bf16.msra.mxu0 %v3558
  %4088 = vmatprep.subr.bf16.mxu0 %v3566
  %4089 = vmatpush1.bf16.msra.mxu0 %v3565
  %4090 = vmatprep.subr.bf16.mxu0 %v3573
  %4091 = vmatpush1.bf16.msra.mxu0 %v3572
  %4092 = vmatprep.subr.bf16.mxu0 %v3580
  %4093 = vmatpush1.bf16.msra.mxu0 %v3579
  %4094 = vmatprep.subr.bf16.mxu0 %v3587
  %4095 = vmatpush1.bf16.msra.mxu0 %v3586
  %4096 = vmatprep.subr.bf16.mxu0 %v3594
  %4097 = vmatpush1.bf16.msra.mxu0 %v3593
  %4098 = vmatprep.subr.bf16.mxu0 %v3601
  %4099 = vmatpush1.bf16.msra.mxu0 %v3600
  %4100 = vmatprep.subr.bf16.mxu0 %v3608
  %4101 = vmatpush1.bf16.msra.mxu0 %v3607
  %4102 = vmatprep.subr.bf16.mxu0 %v3615
  %4103 = vmatpush1.bf16.msra.mxu0 %v3614
  %4104 = vmatprep.subr.bf16.mxu0 %v3622
  %4105 = vmatpush1.bf16.msra.mxu0 %v3621
  %4106 = vmatprep.subr.bf16.mxu0 %v3629
  %4107 = vmatpush1.bf16.msra.mxu0 %v3628
  %4108 = vmatprep.subr.bf16.mxu0 %v3636
  %4109 = vmatpush1.bf16.msra.mxu0 %v3635
  %4110 = vmatprep.subr.bf16.mxu0 %v3643
  %4111 = vmatpush1.bf16.msra.mxu0 %v3642
  %4112 = vmatprep.subr.bf16.mxu0 %v3650
  %4113 = vmatpush1.bf16.msra.mxu0 %v3649
  %4114 = vmatprep.subr.bf16.mxu0 %v3657
  %4115 = vmatpush1.bf16.msra.mxu0 %v3656
  %4116 = vmatprep.subr.bf16.mxu0 %v3664
  %4117 = vmatpush1.bf16.msra.mxu0 %v3663
  %4118 = vmatprep.mubr.bf16.mxu0 %v2556
  %4119 = vmatmul.mubr.bf16.gmra.mrb[0].mxu0 %v2555
  %v4120 = vpop.f32.mrb[0].mxu0
  %v4121 = vadd.f32 %v2828, %v4120
  %v4122 = vpop.f32.mrb[0].mxu0
  %v4123 = vadd.f32 %v2832, %v4122
  %v4124 = vpop.f32.mrb[0].mxu0
  %v4125 = vpop.f32.mrb[0].mxu0
  %4126 = vdwg.mxu0
  %4127 = vmatprep.subr.bf16.mxu0 %v3671
  %4128 = vmatpush1.bf16.msra.mxu0 %v3670
  %4129 = vmatprep.subr.bf16.mxu0 %v3678
  %4130 = vmatpush1.bf16.msra.mxu0 %v3677
  %4131 = vmatprep.subr.bf16.mxu0 %v3685
  %4132 = vmatpush1.bf16.msra.mxu0 %v3684
  %4133 = vmatprep.subr.bf16.mxu0 %v3692
  %4134 = vmatpush1.bf16.msra.mxu0 %v3691
  %4135 = vmatprep.subr.bf16.mxu0 %v3699
  %4136 = vmatpush1.bf16.msra.mxu0 %v3698
  %4137 = vmatprep.subr.bf16.mxu0 %v3706
  %4138 = vmatpush1.bf16.msra.mxu0 %v3705
  %4139 = vmatprep.subr.bf16.mxu0 %v3713
  %4140 = vmatpush1.bf16.msra.mxu0 %v3712
  %4141 = vmatprep.subr.bf16.mxu0 %v3720
  %4142 = vmatpush1.bf16.msra.mxu0 %v3719
  %4143 = vmatprep.subr.bf16.mxu0 %v3727
  %4144 = vmatpush1.bf16.msra.mxu0 %v3726
  %4145 = vmatprep.subr.bf16.mxu0 %v3734
  %4146 = vmatpush1.bf16.msra.mxu0 %v3733
  %4147 = vmatprep.subr.bf16.mxu0 %v3741
  %4148 = vmatpush1.bf16.msra.mxu0 %v3740
  %4149 = vmatprep.subr.bf16.mxu0 %v3748
  %4150 = vmatpush1.bf16.msra.mxu0 %v3747
  %4151 = vmatprep.subr.bf16.mxu0 %v3755
  %4152 = vmatpush1.bf16.msra.mxu0 %v3754
  %4153 = vmatprep.subr.bf16.mxu0 %v3762
  %4154 = vmatpush1.bf16.msra.mxu0 %v3761
  %4155 = vmatprep.subr.bf16.mxu0 %v3769
  %4156 = vmatpush1.bf16.msra.mxu0 %v3768
  %4157 = vmatprep.subr.bf16.mxu0 %v3776
  %4158 = vmatpush1.bf16.msra.mxu0 %v3775
  %4159 = vmatprep.mubr.bf16.mxu0 %v2558
  %4160 = vmatmul.mubr.bf16.gmra.mrb[0].mxu0 %v2557
  %v4161 = vpop.f32.mrb[0].mxu0
  %v4162 = vadd.f32 %v4121, %v4161
  %v4163 = vpop.f32.mrb[0].mxu0
  %v4164 = vadd.f32 %v4123, %v4163
  %v4165 = vpop.f32.mrb[0].mxu0
  %v4166 = vpop.f32.mrb[0].mxu0
  %4167 = vdwg.mxu0
  %4168 = vmatprep.subr.bf16.mxu0 %v3561
  %4169 = vmatpush1.bf16.msra.mxu0 %v3560
  %4170 = vmatprep.subr.bf16.mxu0 %v3568
  %4171 = vmatpush1.bf16.msra.mxu0 %v3567
  %4172 = vmatprep.subr.bf16.mxu0 %v3575
  %4173 = vmatpush1.bf16.msra.mxu0 %v3574
  %4174 = vmatprep.subr.bf16.mxu0 %v3582
  %4175 = vmatpush1.bf16.msra.mxu0 %v3581
  %4176 = vmatprep.subr.bf16.mxu0 %v3589
  %4177 = vmatpush1.bf16.msra.mxu0 %v3588
  %4178 = vmatprep.subr.bf16.mxu0 %v3596
  %4179 = vmatpush1.bf16.msra.mxu0 %v3595
  %4180 = vmatprep.subr.bf16.mxu0 %v3603
  %4181 = vmatpush1.bf16.msra.mxu0 %v3602
  %4182 = vmatprep.subr.bf16.mxu0 %v3610
  %4183 = vmatpush1.bf16.msra.mxu0 %v3609
  %4184 = vmatprep.subr.bf16.mxu0 %v3617
  %4185 = vmatpush1.bf16.msra.mxu0 %v3616
  %4186 = vmatprep.subr.bf16.mxu0 %v3624
  %4187 = vmatpush1.bf16.msra.mxu0 %v3623
  %4188 = vmatprep.subr.bf16.mxu0 %v3631
  %4189 = vmatpush1.bf16.msra.mxu0 %v3630
  %4190 = vmatprep.subr.bf16.mxu0 %v3638
  %4191 = vmatpush1.bf16.msra.mxu0 %v3637
  %4192 = vmatprep.subr.bf16.mxu0 %v3645
  %4193 = vmatpush1.bf16.msra.mxu0 %v3644
  %4194 = vmatprep.subr.bf16.mxu0 %v3652
  %4195 = vmatpush1.bf16.msra.mxu0 %v3651
  %4196 = vmatprep.subr.bf16.mxu0 %v3659
  %4197 = vmatpush1.bf16.msra.mxu0 %v3658
  %4198 = vmatprep.subr.bf16.mxu0 %v3666
  %4199 = vmatpush1.bf16.msra.mxu0 %v3665
  %4200 = vmatprep.mubr.bf16.mxu0 %v2556
  %4201 = vmatmul.mubr.bf16.gmra.mrb[0].mxu0 %v2555
  %v4202 = vpop.f32.mrb[0].mxu0
  %v4203 = vadd.f32 %v2836, %v4202
  %v4204 = vpop.f32.mrb[0].mxu0
  %v4205 = vadd.f32 %v2840, %v4204
  %v4206 = vpop.f32.mrb[0].mxu0
  %v4207 = vpop.f32.mrb[0].mxu0
  %4208 = vdwg.mxu0
  %4209 = vmatprep.subr.bf16.mxu0 %v3673
  %4210 = vmatpush1.bf16.msra.mxu0 %v3672
  %4211 = vmatprep.subr.bf16.mxu0 %v3680
  %4212 = vmatpush1.bf16.msra.mxu0 %v3679
  %4213 = vmatprep.subr.bf16.mxu0 %v3687
  %4214 = vmatpush1.bf16.msra.mxu0 %v3686
  %4215 = vmatprep.subr.bf16.mxu0 %v3694
  %4216 = vmatpush1.bf16.msra.mxu0 %v3693
  %4217 = vmatprep.subr.bf16.mxu0 %v3701
  %4218 = vmatpush1.bf16.msra.mxu0 %v3700
  %4219 = vmatprep.subr.bf16.mxu0 %v3708
  %4220 = vmatpush1.bf16.msra.mxu0 %v3707
  %4221 = vmatprep.subr.bf16.mxu0 %v3715
  %4222 = vmatpush1.bf16.msra.mxu0 %v3714
  %4223 = vmatprep.subr.bf16.mxu0 %v3722
  %4224 = vmatpush1.bf16.msra.mxu0 %v3721
  %4225 = vmatprep.subr.bf16.mxu0 %v3729
  %4226 = vmatpush1.bf16.msra.mxu0 %v3728
  %4227 = vmatprep.subr.bf16.mxu0 %v3736
  %4228 = vmatpush1.bf16.msra.mxu0 %v3735
  %4229 = vmatprep.subr.bf16.mxu0 %v3743
  %4230 = vmatpush1.bf16.msra.mxu0 %v3742
  %4231 = vmatprep.subr.bf16.mxu0 %v3750
  %4232 = vmatpush1.bf16.msra.mxu0 %v3749
  %4233 = vmatprep.subr.bf16.mxu0 %v3757
  %4234 = vmatpush1.bf16.msra.mxu0 %v3756
  %4235 = vmatprep.subr.bf16.mxu0 %v3764
  %4236 = vmatpush1.bf16.msra.mxu0 %v3763
  %4237 = vmatprep.subr.bf16.mxu0 %v3771
  %4238 = vmatpush1.bf16.msra.mxu0 %v3770
  %4239 = vmatprep.subr.bf16.mxu0 %v3778
  %4240 = vmatpush1.bf16.msra.mxu0 %v3777
  %4241 = vmatprep.mubr.bf16.mxu0 %v2558
  %4242 = vmatmul.mubr.bf16.gmra.mrb[0].mxu0 %v2557
  %v4243 = vpop.f32.mrb[0].mxu0
  %v4244 = vadd.f32 %v4203, %v4243
  %v4245 = vpop.f32.mrb[0].mxu0
  %v4246 = vadd.f32 %v4205, %v4245
  %v4247 = vpop.f32.mrb[0].mxu0
  %v4248 = vpop.f32.mrb[0].mxu0
  %4249 = vdwg.mxu0
  %4250 = vmatprep.subr.bf16.mxu0 0
  %4251 = vmatpush1.bf16.msra.mxu0 %v3562
  %4252 = vmatprep.subr.bf16.mxu0 0
  %4253 = vmatpush1.bf16.msra.mxu0 %v3569
  %4254 = vmatprep.subr.bf16.mxu0 0
  %4255 = vmatpush1.bf16.msra.mxu0 %v3576
  %4256 = vmatprep.subr.bf16.mxu0 0
  %4257 = vmatpush1.bf16.msra.mxu0 %v3583
  %4258 = vmatprep.subr.bf16.mxu0 0
  %4259 = vmatpush1.bf16.msra.mxu0 %v3590
  %4260 = vmatprep.subr.bf16.mxu0 0
  %4261 = vmatpush1.bf16.msra.mxu0 %v3597
  %4262 = vmatprep.subr.bf16.mxu0 0
  %4263 = vmatpush1.bf16.msra.mxu0 %v3604
  %4264 = vmatprep.subr.bf16.mxu0 0
  %4265 = vmatpush1.bf16.msra.mxu0 %v3611
  %4266 = vmatprep.subr.bf16.mxu0 0
  %4267 = vmatpush1.bf16.msra.mxu0 %v3618
  %4268 = vmatprep.subr.bf16.mxu0 0
  %4269 = vmatpush1.bf16.msra.mxu0 %v3625
  %4270 = vmatprep.subr.bf16.mxu0 0
  %4271 = vmatpush1.bf16.msra.mxu0 %v3632
  %4272 = vmatprep.subr.bf16.mxu0 0
  %4273 = vmatpush1.bf16.msra.mxu0 %v3639
  %4274 = vmatprep.subr.bf16.mxu0 0
  %4275 = vmatpush1.bf16.msra.mxu0 %v3646
  %4276 = vmatprep.subr.bf16.mxu0 0
  %4277 = vmatpush1.bf16.msra.mxu0 %v3653
  %4278 = vmatprep.subr.bf16.mxu0 0
  %4279 = vmatpush1.bf16.msra.mxu0 %v3660
  %4280 = vmatprep.subr.bf16.mxu0 0
  %4281 = vmatpush1.bf16.msra.mxu0 %v3667
  %4282 = vmatprep.mubr.bf16.mxu0 %v2556
  %4283 = vmatmul.mubr.bf16.gmra.mrb[0].mxu0 %v2555
  %v4284 = vpop.f32.mrb[0].mxu0
  %v4285 = vadd.f32 %v2844, %v4284
  %v4286 = vpop.f32.mrb[0].mxu0
  %v4287 = vpop.f32.mrb[0].mxu0
  %v4288 = vpop.f32.mrb[0].mxu0
  %4289 = vdwg.mxu0
  %4290 = vmatprep.subr.bf16.mxu0 0
  %4291 = vmatpush1.bf16.msra.mxu0 %v3674
  %4292 = vmatprep.subr.bf16.mxu0 0
  %4293 = vmatpush1.bf16.msra.mxu0 %v3681
  %4294 = vmatprep.subr.bf16.mxu0 0
  %4295 = vmatpush1.bf16.msra.mxu0 %v3688
  %4296 = vmatprep.subr.bf16.mxu0 0
  %4297 = vmatpush1.bf16.msra.mxu0 %v3695
  %4298 = vmatprep.subr.bf16.mxu0 0
  %4299 = vmatpush1.bf16.msra.mxu0 %v3702
  %4300 = vmatprep.subr.bf16.mxu0 0
  %4301 = vmatpush1.bf16.msra.mxu0 %v3709
  %4302 = vmatprep.subr.bf16.mxu0 0
  %4303 = vmatpush1.bf16.msra.mxu0 %v3716
  %4304 = vmatprep.subr.bf16.mxu0 0
  %4305 = vmatpush1.bf16.msra.mxu0 %v3723
  %4306 = vmatprep.subr.bf16.mxu0 0
  %4307 = vmatpush1.bf16.msra.mxu0 %v3730
  %4308 = vmatprep.subr.bf16.mxu0 0
  %4309 = vmatpush1.bf16.msra.mxu0 %v3737
  %4310 = vmatprep.subr.bf16.mxu0 0
  %4311 = vmatpush1.bf16.msra.mxu0 %v3744
  %4312 = vmatprep.subr.bf16.mxu0 0
  %4313 = vmatpush1.bf16.msra.mxu0 %v3751
  %4314 = vmatprep.subr.bf16.mxu0 0
  %4315 = vmatpush1.bf16.msra.mxu0 %v3758
  %4316 = vmatprep.subr.bf16.mxu0 0
  %4317 = vmatpush1.bf16.msra.mxu0 %v3765
  %4318 = vmatprep.subr.bf16.mxu0 0
  %4319 = vmatpush1.bf16.msra.mxu0 %v3772
  %4320 = vmatprep.subr.bf16.mxu0 0
  %4321 = vmatpush1.bf16.msra.mxu0 %v3779
  %4322 = vmatprep.mubr.bf16.mxu0 %v2558
  %4323 = vmatmul.mubr.bf16.gmra.mrb[0].mxu0 %v2557
  %v4324 = vpop.f32.mrb[0].mxu0
  %v4325 = vadd.f32 %v4285, %v4324
  %v4326 = vpop.f32.mrb[0].mxu0
  %v4327 = vpop.f32.mrb[0].mxu0
  %v4328 = vpop.f32.mrb[0].mxu0
  %4329 = vdwg.mxu0
  %v4330 = vsub.f32 0.0, %v4080
  %v4331 = vsub.f32 0.0, %v4082
  %v4332 = vsub.f32 0.0, %v4162
  %v4333 = vsub.f32 0.0, %v4164
  %v4334 = vsub.f32 0.0, %v4244
  %v4335 = vsub.f32 0.0, %v4246
  %v4336 = vsub.f32 0.0, %v4325
  %v4337 = vmul.f32 %v4330, 1.442695
  %v4338 = vpow.pop %v4337
  %v4339 = vmul.f32 %v4331, 1.442695
  %v4340 = vpow.pop %v4339
  %v4341 = vmul.f32 %v4332, 1.442695
  %v4342 = vpow.pop %v4341
  %v4343 = vmul.f32 %v4333, 1.442695
  %v4344 = vpow.pop %v4343
  %v4345 = vmul.f32 %v4334, 1.442695
  %v4346 = vpow.pop %v4345
  %v4347 = vmul.f32 %v4335, 1.442695
  %v4348 = vpow.pop %v4347
  %v4349 = vmul.f32 %v4336, 1.442695
  %v4350 = vpow.pop %v4349
  %v4351 = vadd.f32 %v4338, 1.0
  %v4352 = vadd.f32 %v4340, 1.0
  %v4353 = vadd.f32 %v4342, 1.0
  %v4354 = vadd.f32 %v4344, 1.0
  %v4355 = vadd.f32 %v4346, 1.0
  %v4356 = vadd.f32 %v4348, 1.0
  %v4357 = vadd.f32 %v4350, 1.0
  %v4358 = vrcp.pop %v4351
  %v4359 = vrcp.pop %v4352
  %v4360 = vrcp.pop %v4353
  %v4361 = vrcp.pop %v4354
  %v4362 = vrcp.pop %v4355
  %v4363 = vrcp.pop %v4356
  %v4364 = vrcp.pop %v4357
  %4365 = vst [vmem:[%s10] sm:$0xff] %v4358
  %4366 = vst [vmem:[%s10 + $0x8] sm:$0xff] %v4359
  %4367 = vst [vmem:[%s10 + $0x10] sm:$0xff] %v4360
  %4368 = vst [vmem:[%s10 + $0x18] sm:$0xff] %v4361
  %4369 = vst [vmem:[%s10 + $0x20] sm:$0xff] %v4362
  %4370 = vst [vmem:[%s10 + $0x28] sm:$0xff] %v4363
  %4371 = vst [vmem:[%s10 + $0x30] sm:$0xff] %v4364
  %4372 = vst [vmem:[%s11] sm:$0xff] %v2242
  %4373 = vst [vmem:[%s12] sm:$0xff] %v2244
  // Predicated region
  $region42: #{vae_forward.1} parent=0 // pred_check
    _
  $region43: #{vae_forward.1} parent=0 // pred_check_branch
    %4375 = sbr.rel (0) target = $region45
  $region44: #{vae_forward.1} parent=0 // pred_region
    _
  $region45: #{vae_forward.1} parent=0 // pred_fallthru
    _
  // Predicated region
  $region46: #{vae_forward.1} parent=0 // pred_check
    _
  $region47: #{vae_forward.1} parent=0 // pred_check_branch
    %4377 = sbr.rel (0) target = $region49
  $region48: #{vae_forward.1} parent=0 // pred_region
    _
  $region49: #{vae_forward.1} parent=0 // pred_fallthru
    _
  // Predicated region
  $region50: #{vae_forward.1} parent=0 // pred_check
    _
  $region51: #{vae_forward.1} parent=0 // pred_check_branch
    %4379 = sbr.rel (0) target = $region53
  $region52: #{vae_forward.1} parent=0 // pred_region
    _
  $region53: #{vae_forward.1} parent=0 // pred_fallthru
    _
  // Predicated region
  $region54: #{vae_forward.1} parent=0 // pred_check
    _
  $region55: #{vae_forward.1} parent=0 // pred_check_branch
    %4381 = sbr.rel (0) target = $region57
  $region56: #{vae_forward.1} parent=0 // pred_region
    _
  $region57: #{vae_forward.1} parent=0 // pred_fallthru
    _
  // Predicated region
  $region58: #{vae_forward.1} parent=0 // pred_check
    _
  $region59: #{vae_forward.1} parent=0 // pred_check_branch
    %4383 = sbr.rel (0) target = $region61
  $region60: #{vae_forward.1} parent=0 // pred_region
    _
  $region61: #{vae_forward.1} parent=0 // pred_fallthru
    _
  // Predicated region
  $region62: #{vae_forward.1} parent=0 // pred_check
    _
  $region63: #{vae_forward.1} parent=0 // pred_check_branch
    %4385 = sbr.rel (0) target = $region65
  $region64: #{vae_forward.1} parent=0 // pred_region
    _
  $region65: #{vae_forward.1} parent=0 // pred_fallthru
    _

</llo_original>
